<compile_context>
chip_gen: v5e
topology: v5e:2x2
jax: 0.10.0
libtpu: 0.0.40
codegen_flags: <defaults>
</compile_context>

<pallas_src>
import functools

import jax
import jax.numpy as jnp
from jax.experimental import pallas as pl
from jax.experimental.pallas import tpu as pltpu

_LANE = 128


def _round_up(x, m):
    return (x + m - 1) // m * m


def _choose_tile_b(b):
    """Largest convenient batch tile; full batch for small B."""
    if b % 8 != 0:
        return b                      # full-extent block (no divisibility needed)
    for t in (512, 256, 128):
        if b % t == 0:
            return t
    return b


def _layernorm(y, w, b, mask, inv_h, eps=1e-5):
    """LayerNorm over the true hidden dim; padded columns of y are exactly 0."""
    mu = jnp.sum(y, axis=-1, keepdims=True) * inv_h
    c = jnp.where(mask, y - mu, 0.0)          # mask out padded columns
    var = jnp.sum(c * c, axis=-1, keepdims=True) * inv_h
    return c * jax.lax.rsqrt(var + eps) * w + b


def _make_fused_kernel(h_true, hp):
    """Kernel over grid (batch_tile, layer)."""
    inv_h = 1.0 / float(h_true)

    def kernel(x_ref, w_in_ref, b_in_ref,
               wv_ref, bv_ref, wo_ref, bo_ref, ln1w_ref, ln1b_ref,
               w1_ref, b1_ref, w2_ref, b2_ref, ln2w_ref, ln2b_ref,
               w_fc_ref, b_fc_ref, o_ref, h_ref):
        l = pl.program_id(1)

        # Mask of "true" (un-padded) hidden columns for LayerNorm statistics.
        col = jax.lax.broadcasted_iota(jnp.int32, (1, hp), 1)
        mask = col < h_true

        # --- fc_input: only on the first layer step of each batch tile ---
        @pl.when(l == 0)
        def _():
            h_ref[...] = (jnp.dot(x_ref[...].astype(jnp.bfloat16), w_in_ref[...],
                                  preferred_element_type=jnp.float32)
                          + b_in_ref[...])

        h = h_ref[...]
        hb = h.astype(jnp.bfloat16)

        # --- self-attention block (seq_len == 1 => softmax == 1 exactly) ---
        v = jnp.dot(hb, wv_ref[0], preferred_element_type=jnp.float32) + bv_ref[0]
        attn = (jnp.dot(v.astype(jnp.bfloat16), wo_ref[0],
                        preferred_element_type=jnp.float32) + bo_ref[0])
        y = _layernorm(h + attn, ln1w_ref[0], ln1b_ref[0], mask, inv_h)

        # --- feed-forward block: linear2(relu(linear1(y))) ---
        m = (jnp.dot(y.astype(jnp.bfloat16), w1_ref[0],
                     preferred_element_type=jnp.float32) + b1_ref[0])
        m = jnp.maximum(m, 0.0)
        f = (jnp.dot(m.astype(jnp.bfloat16), w2_ref[0],
                     preferred_element_type=jnp.float32) + b2_ref[0])
        z = _layernorm(y + f, ln2w_ref[0], ln2b_ref[0], mask, inv_h)

        h_ref[...] = z                # carry activation to the next layer step

        # --- final fc (mean over length-1 seq is identity), last step only ---
        @pl.when(l == pl.num_programs(1) - 1)
        def _():
            o_ref[...] = (jnp.dot(z.astype(jnp.bfloat16), w_fc_ref[...],
                                  preferred_element_type=jnp.float32)
                          + b_fc_ref[...]).astype(o_ref.dtype)

    return kernel


# ----------------------------------------------------------------------------
# One-time parameter preparation: transpose to (in, out), zero-pad feature
# dims to multiples of 128, stack per-layer weights, cast matmul weights bf16.
# ----------------------------------------------------------------------------
def prepare_params(params, input_dim, hidden_dim, output_dim):
    H = hidden_dim
    HP = _round_up(H, _LANE)
    OP = _round_up(output_dim, _LANE)
    layers = params["layers"]
    F = layers[0]["w1"].shape[0]

    def mat(w, rows, cols):
        """torch-layout (out, in) -> (in, out), zero-padded, bf16."""
        wt = jnp.transpose(w).astype(jnp.float32)
        wt = jnp.pad(wt, ((0, rows - wt.shape[0]), (0, cols - wt.shape[1])))
        return wt.astype(jnp.bfloat16)

    def vec(b, n):
        return jnp.pad(b.astype(jnp.float32), (0, n - b.shape[0])).reshape(1, n)

    def stack(fn):
        return jnp.stack([fn(lp) for lp in layers])

    return {
        "hidden_dim": H, "hp": HP, "op": OP, "output_dim": output_dim, "ffn": F,
        "w_in": mat(params["fc_in_w"], input_dim, HP),
        "b_in": vec(params["fc_in_b"], HP),
        "w_fc": mat(params["fc_w"], HP, OP),
        "b_fc": vec(params["fc_b"], OP),
        "wv": stack(lambda p: mat(p["wv"], HP, HP)),
        "bv": stack(lambda p: vec(p["bv"], HP)),
        "wo": stack(lambda p: mat(p["wo"], HP, HP)),
        "bo": stack(lambda p: vec(p["bo"], HP)),
        "ln1w": stack(lambda p: vec(p["ln1_w"], HP)),
        "ln1b": stack(lambda p: vec(p["ln1_b"], HP)),
        "w1": stack(lambda p: mat(p["w1"], HP, F)),
        "b1": stack(lambda p: vec(p["b1"], F)),
        "w2": stack(lambda p: mat(p["w2"], F, HP)),
        "b2": stack(lambda p: vec(p["b2"], HP)),
        "ln2w": stack(lambda p: vec(p["ln2_w"], HP)),
        "ln2b": stack(lambda p: vec(p["ln2_b"], HP)),
    }


# ----------------------------------------------------------------------------
# Full model forward: one fused pallas_call.
# ----------------------------------------------------------------------------
def transformer_classification_forward(prepared, x):
    H, HP, OP = prepared["hidden_dim"], prepared["hp"], prepared["op"]
    out_dim, F = prepared["output_dim"], prepared["ffn"]
    L = prepared["wv"].shape[0]
    B, I = x.shape

    tile_b = _choose_tile_b(B)
    grid = (B // tile_b, L)

    def layer_blk(shape):      # per-layer stacked weight: pick block l
        return pl.BlockSpec((1,) + shape, lambda b, l: (l, 0, 0))

    def const_blk(shape):      # resident weight: DMA'd once
        return pl.BlockSpec(shape, lambda b, l: (0, 0))

    in_specs = [
        pl.BlockSpec((tile_b, I), lambda b, l: (b, 0)),      # x
        const_blk((I, HP)), const_blk((1, HP)),              # w_in, b_in
        layer_blk((HP, HP)), layer_blk((1, HP)),             # wv, bv
        layer_blk((HP, HP)), layer_blk((1, HP)),             # wo, bo
        layer_blk((1, HP)), layer_blk((1, HP)),              # ln1w, ln1b
        layer_blk((HP, F)), layer_blk((1, F)),               # w1, b1
        layer_blk((F, HP)), layer_blk((1, HP)),              # w2, b2
        layer_blk((1, HP)), layer_blk((1, HP)),              # ln2w, ln2b
        const_blk((HP, OP)), const_blk((1, OP)),             # w_fc, b_fc
    ]

    out_padded = pl.pallas_call(
        _make_fused_kernel(H, HP),
        out_shape=jax.ShapeDtypeStruct((B, OP), jnp.float32),
        grid_spec=pltpu.PrefetchScalarGridSpec(
            num_scalar_prefetch=0,
            grid=grid,
            in_specs=in_specs,
            out_specs=pl.BlockSpec((tile_b, OP), lambda b, l: (b, 0)),
            scratch_shapes=[pltpu.VMEM((tile_b, HP), jnp.float32)],
        ),
        compiler_params=pltpu.CompilerParams(
            dimension_semantics=("parallel", "arbitrary")),
    )(x,
      prepared["w_in"], prepared["b_in"],
      prepared["wv"], prepared["bv"], prepared["wo"], prepared["bo"],
      prepared["ln1w"], prepared["ln1b"],
      prepared["w1"], prepared["b1"], prepared["w2"], prepared["b2"],
      prepared["ln2w"], prepared["ln2b"],
      prepared["w_fc"], prepared["b_fc"])

    return out_padded[:, :out_dim]


# ----------------------------------------------------------------------------
# Deterministic parameter init (shapes mirror the PyTorch module's __init__).
# ----------------------------------------------------------------------------
def init_params(key, input_dim, hidden_dim, num_layers, output_dim, ffn_dim=2048):
    def dense(k, fan_in, shape):
        return jax.random.normal(k, shape, dtype=jnp.float32) / jnp.sqrt(
            jnp.asarray(fan_in, jnp.float32))

    def layer_params(k):
        ks = jax.random.split(k, 8)
        H, F = hidden_dim, ffn_dim
        in_proj_w = dense(ks[0], H, (3 * H, H))      # MHA in_proj_weight
        in_proj_b = dense(ks[1], H, (3 * H,))        # MHA in_proj_bias
        return {
            # only the V slice of in_proj affects the output when seq_len == 1
            "wv": in_proj_w[2 * H:], "bv": in_proj_b[2 * H:],
            "wo": dense(ks[2], H, (H, H)), "bo": dense(ks[3], H, (H,)),
            "ln1_w": jnp.ones((H,), jnp.float32), "ln1_b": jnp.zeros((H,), jnp.float32),
            "w1": dense(ks[4], H, (F, H)), "b1": dense(ks[5], H, (F,)),
            "w2": dense(ks[6], F, (H, F)), "b2": dense(ks[7], F, (H,)),
            "ln2_w": jnp.ones((H,), jnp.float32), "ln2_b": jnp.zeros((H,), jnp.float32),
        }

    keys = jax.random.split(key, 4 + num_layers)
    return {
        "fc_in_w": dense(keys[0], input_dim, (hidden_dim, input_dim)),
        "fc_in_b": dense(keys[1], input_dim, (hidden_dim,)),
        "fc_w": dense(keys[2], hidden_dim, (output_dim, hidden_dim)),
        "fc_b": dense(keys[3], hidden_dim, (output_dim,)),
        "layers": [layer_params(k) for k in keys[4:]],
    }


if __name__ == "__main__":
    B, input_dim, hidden_dim, num_heads, num_layers, output_dim = 8, 16, 32, 4, 2, 2
    assert hidden_dim % num_heads == 0

    key = jax.random.PRNGKey(0)
    kx, kp = jax.random.split(key)
    x = jax.random.normal(kx, (B, input_dim), dtype=jnp.float32)
    params = init_params(kp, input_dim, hidden_dim, num_layers, output_dim)
    prepared = prepare_params(params, input_dim, hidden_dim, output_dim)

    fwd = jax.jit(functools.partial(transformer_classification_forward, prepared))
    out = jax.block_until_ready(fwd(x))

    assert out.shape == (B, output_dim)
    assert out.dtype == jnp.float32
    assert bool(jnp.all(jnp.isfinite(out)))
    print("KERNEL_OK")
</pallas_src>

<mosaic_0001>
module attributes {stable_mosaic.version = 11 : i64} {
  func.func @kernel(%arg0: i32, %arg1: i32, %arg2: memref<8x16xf32, #tpu.memory_space<vmem>>, %arg3: memref<16x128xbf16, #tpu.memory_space<vmem>>, %arg4: memref<1x128xf32, #tpu.memory_space<vmem>>, %arg5: memref<1x128x128xbf16, #tpu.memory_space<vmem>>, %arg6: memref<1x1x128xf32, #tpu.memory_space<vmem>>, %arg7: memref<1x128x128xbf16, #tpu.memory_space<vmem>>, %arg8: memref<1x1x128xf32, #tpu.memory_space<vmem>>, %arg9: memref<1x1x128xf32, #tpu.memory_space<vmem>>, %arg10: memref<1x1x128xf32, #tpu.memory_space<vmem>>, %arg11: memref<1x128x2048xbf16, #tpu.memory_space<vmem>>, %arg12: memref<1x1x2048xf32, #tpu.memory_space<vmem>>, %arg13: memref<1x2048x128xbf16, #tpu.memory_space<vmem>>, %arg14: memref<1x1x128xf32, #tpu.memory_space<vmem>>, %arg15: memref<1x1x128xf32, #tpu.memory_space<vmem>>, %arg16: memref<1x1x128xf32, #tpu.memory_space<vmem>>, %arg17: memref<128x128xbf16, #tpu.memory_space<vmem>>, %arg18: memref<1x128xf32, #tpu.memory_space<vmem>>, %arg19: memref<8x128xf32, #tpu.memory_space<vmem>>, %arg20: memref<8x128xf32, #tpu.memory_space<vmem>>) attributes {dimension_semantics = [#tpu.dimension_semantics<parallel>, #tpu.dimension_semantics<arbitrary>], iteration_bounds = array<i64: 1, 2>, scalar_prefetch = 0 : i64, scratch_operands = 1 : i64, tpu.core_type = #tpu.core_type<tc>, window_params = [{transform_indices = @transform_0, window_bounds = array<i64: 8, 16>}, {pipeline_mode = #tpu.pipeline_mode<synchronous>, transform_indices = @transform_1, window_bounds = array<i64: 16, 128>}, {pipeline_mode = #tpu.pipeline_mode<synchronous>, transform_indices = @transform_2, window_bounds = array<i64: 1, 128>}, {transform_indices = @transform_3, window_bounds = array<i64: 1, 128, 128>}, {transform_indices = @transform_4, window_bounds = array<i64: 1, 1, 128>}, {transform_indices = @transform_5, window_bounds = array<i64: 1, 128, 128>}, {transform_indices = @transform_6, window_bounds = array<i64: 1, 1, 128>}, {transform_indices = @transform_7, window_bounds = array<i64: 1, 1, 128>}, {transform_indices = @transform_8, window_bounds = array<i64: 1, 1, 128>}, {transform_indices = @transform_9, window_bounds = array<i64: 1, 128, 2048>}, {transform_indices = @transform_10, window_bounds = array<i64: 1, 1, 2048>}, {transform_indices = @transform_11, window_bounds = array<i64: 1, 2048, 128>}, {transform_indices = @transform_12, window_bounds = array<i64: 1, 1, 128>}, {transform_indices = @transform_13, window_bounds = array<i64: 1, 1, 128>}, {transform_indices = @transform_14, window_bounds = array<i64: 1, 1, 128>}, {pipeline_mode = #tpu.pipeline_mode<synchronous>, transform_indices = @transform_15, window_bounds = array<i64: 128, 128>}, {pipeline_mode = #tpu.pipeline_mode<synchronous>, transform_indices = @transform_16, window_bounds = array<i64: 1, 128>}, {transform_indices = @transform_17, window_bounds = array<i64: 8, 128>}]} {
    %0 = tpu.iota {dimensions = array<i32: 1>} : vector<1x128xi32>
    %c32_i32 = arith.constant 32 : i32
    %1 = vector.broadcast %c32_i32 : i32 to vector<1x128xi32>
    %2 = arith.cmpi slt, %0, %1 : vector<1x128xi32>
    %c0_i32 = arith.constant 0 : i32
    %3 = arith.cmpi eq, %arg1, %c0_i32 : i32
    %4 = arith.extui %3 : i1 to i32
    %c0_i32_0 = arith.constant 0 : i32
    %5 = arith.cmpi ne, %4, %c0_i32_0 : i32
    scf.if %5 {
      %c0_57 = arith.constant 0 : index
      %c0_58 = arith.constant 0 : index
      %103 = vector.load %arg2[%c0_57, %c0_58] : memref<8x16xf32, #tpu.memory_space<vmem>>, vector<8x16xf32>
      %104 = arith.truncf %103 : vector<8x16xf32> to vector<8x16xbf16>
      %c0_59 = arith.constant 0 : index
      %c0_60 = arith.constant 0 : index
      %105 = vector.load %arg3[%c0_59, %c0_60] : memref<16x128xbf16, #tpu.memory_space<vmem>>, vector<16x128xbf16>
      %cst_61 = arith.constant dense<0.000000e+00> : vector<8x128xf32>
      %106 = tpu.matmul %104, %105, %cst_61 {dimension_numbers = #tpu.dot_dimension_numbers<[1], [0], [0], [1], [0, 0, 1, 1], [], []>} : vector<8x16xbf16>, vector<16x128xbf16>, vector<8x128xf32> -> vector<8x128xf32>
      %c0_62 = arith.constant 0 : index
      %c0_63 = arith.constant 0 : index
      %107 = vector.load %arg4[%c0_62, %c0_63] : memref<1x128xf32, #tpu.memory_space<vmem>>, vector<1x128xf32>
      %108 = vector.broadcast %107 : vector<1x128xf32> to vector<8x128xf32>
      %109 = arith.addf %106, %108 : vector<8x128xf32>
      %c0_64 = arith.constant 0 : index
      %c0_65 = arith.constant 0 : index
      %110 = vector.load %arg20[%c0_64, %c0_65] : memref<8x128xf32, #tpu.memory_space<vmem>>, vector<8x128xf32>
      tpu.vector_store %arg20[%c0_64, %c0_65], %109 {strides = array<i32>} : memref<8x128xf32, #tpu.memory_space<vmem>>, vector<8x128xf32>,
    } else {
    }
    %c0 = arith.constant 0 : index
    %c0_1 = arith.constant 0 : index
    %6 = vector.load %arg20[%c0, %c0_1] : memref<8x128xf32, #tpu.memory_space<vmem>>, vector<8x128xf32>
    %7 = arith.truncf %6 : vector<8x128xf32> to vector<8x128xbf16>
    %c0_2 = arith.constant 0 : index
    %c0_3 = arith.constant 0 : index
    %c0_4 = arith.constant 0 : index
    %8 = vector.load %arg5[%c0_2, %c0_3, %c0_4] : memref<1x128x128xbf16, #tpu.memory_space<vmem>>, vector<1x128x128xbf16>
    %9 = vector.shape_cast %8 : vector<1x128x128xbf16> to vector<128x128xbf16>
    %cst = arith.constant dense<0.000000e+00> : vector<8x128xf32>
    %10 = tpu.matmul %7, %9, %cst {dimension_numbers = #tpu.dot_dimension_numbers<[1], [0], [0], [1], [0, 0, 1, 1], [], []>} : vector<8x128xbf16>, vector<128x128xbf16>, vector<8x128xf32> -> vector<8x128xf32>
    %c0_5 = arith.constant 0 : index
    %c0_6 = arith.constant 0 : index
    %c0_7 = arith.constant 0 : index
    %11 = vector.load %arg6[%c0_5, %c0_6, %c0_7] : memref<1x1x128xf32, #tpu.memory_space<vmem>>, vector<1x1x128xf32>
    %12 = vector.shape_cast %11 : vector<1x1x128xf32> to vector<1x128xf32>
    %13 = vector.broadcast %12 : vector<1x128xf32> to vector<8x128xf32>
    %14 = arith.addf %10, %13 : vector<8x128xf32>
    %15 = arith.truncf %14 : vector<8x128xf32> to vector<8x128xbf16>
    %c0_8 = arith.constant 0 : index
    %c0_9 = arith.constant 0 : index
    %c0_10 = arith.constant 0 : index
    %16 = vector.load %arg7[%c0_8, %c0_9, %c0_10] : memref<1x128x128xbf16, #tpu.memory_space<vmem>>, vector<1x128x128xbf16>
    %17 = vector.shape_cast %16 : vector<1x128x128xbf16> to vector<128x128xbf16>
    %cst_11 = arith.constant dense<0.000000e+00> : vector<8x128xf32>
    %18 = tpu.matmul %15, %17, %cst_11 {dimension_numbers = #tpu.dot_dimension_numbers<[1], [0], [0], [1], [0, 0, 1, 1], [], []>} : vector<8x128xbf16>, vector<128x128xbf16>, vector<8x128xf32> -> vector<8x128xf32>
    %c0_12 = arith.constant 0 : index
    %c0_13 = arith.constant 0 : index
    %c0_14 = arith.constant 0 : index
    %19 = vector.load %arg8[%c0_12, %c0_13, %c0_14] : memref<1x1x128xf32, #tpu.memory_space<vmem>>, vector<1x1x128xf32>
    %20 = vector.shape_cast %19 : vector<1x1x128xf32> to vector<1x128xf32>
    %21 = vector.broadcast %20 : vector<1x128xf32> to vector<8x128xf32>
    %22 = arith.addf %18, %21 : vector<8x128xf32>
    %23 = arith.addf %6, %22 : vector<8x128xf32>
    %c0_15 = arith.constant 0 : index
    %c0_16 = arith.constant 0 : index
    %c0_17 = arith.constant 0 : index
    %24 = vector.load %arg9[%c0_15, %c0_16, %c0_17] : memref<1x1x128xf32, #tpu.memory_space<vmem>>, vector<1x1x128xf32>
    %25 = vector.shape_cast %24 : vector<1x1x128xf32> to vector<1x128xf32>
    %c0_18 = arith.constant 0 : index
    %c0_19 = arith.constant 0 : index
    %c0_20 = arith.constant 0 : index
    %26 = vector.load %arg10[%c0_18, %c0_19, %c0_20] : memref<1x1x128xf32, #tpu.memory_space<vmem>>, vector<1x1x128xf32>
    %27 = vector.shape_cast %26 : vector<1x1x128xf32> to vector<1x128xf32>
    %cst_21 = arith.constant dense<0.000000e+00> : vector<8xf32>
    %28 = vector.multi_reduction <add>, %23, %cst_21 [1] : vector<8x128xf32> to vector<8xf32>
    %29 = vector.shape_cast %28 : vector<8xf32> to vector<8x1xf32>
    %cst_22 = arith.constant 3.125000e-02 : f32
    %30 = vector.broadcast %cst_22 : f32 to vector<8x1xf32>
    %31 = arith.mulf %29, %30 : vector<8x1xf32>
    %32 = vector.broadcast %31 : vector<8x1xf32> to vector<8x128xf32>
    %33 = arith.subf %23, %32 : vector<8x128xf32>
    %cst_23 = arith.constant 0.000000e+00 : f32
    %34 = vector.shape_cast %2 : vector<1x128xi1> to vector<1x128xi1>
    %35 = vector.broadcast %34 : vector<1x128xi1> to vector<8x128xi1>
    %36 = vector.broadcast %cst_23 : f32 to vector<8x128xf32>
    %37 = arith.select %35, %33, %36 : vector<8x128xi1>, vector<8x128xf32>
    %38 = arith.mulf %37, %37 : vector<8x128xf32>
    %cst_24 = arith.constant dense<0.000000e+00> : vector<8xf32>
    %39 = vector.multi_reduction <add>, %38, %cst_24 [1] : vector<8x128xf32> to vector<8xf32>
    %40 = vector.shape_cast %39 : vector<8xf32> to vector<8x1xf32>
    %cst_25 = arith.constant 3.125000e-02 : f32
    %41 = vector.broadcast %cst_25 : f32 to vector<8x1xf32>
    %42 = arith.mulf %40, %41 : vector<8x1xf32>
    %cst_26 = arith.constant 9.99999974E-6 : f32
    %43 = vector.broadcast %cst_26 : f32 to vector<8x1xf32>
    %44 = arith.addf %42, %43 : vector<8x1xf32>
    %45 = math.rsqrt %44 : vector<8x1xf32>
    %46 = vector.broadcast %45 : vector<8x1xf32> to vector<8x128xf32>
    %47 = arith.mulf %37, %46 : vector<8x128xf32>
    %48 = vector.broadcast %25 : vector<1x128xf32> to vector<8x128xf32>
    %49 = arith.mulf %47, %48 : vector<8x128xf32>
    %50 = vector.broadcast %27 : vector<1x128xf32> to vector<8x128xf32>
    %51 = arith.addf %49, %50 : vector<8x128xf32>
    %52 = arith.truncf %51 : vector<8x128xf32> to vector<8x128xbf16>
    %c0_27 = arith.constant 0 : index
    %c0_28 = arith.constant 0 : index
    %c0_29 = arith.constant 0 : index
    %53 = vector.load %arg11[%c0_27, %c0_28, %c0_29] : memref<1x128x2048xbf16, #tpu.memory_space<vmem>>, vector<1x128x2048xbf16>
    %54 = vector.shape_cast %53 : vector<1x128x2048xbf16> to vector<128x2048xbf16>
    %cst_30 = arith.constant dense<0.000000e+00> : vector<8x2048xf32>
    %55 = tpu.matmul %52, %54, %cst_30 {dimension_numbers = #tpu.dot_dimension_numbers<[1], [0], [0], [1], [0, 0, 1, 1], [], []>} : vector<8x128xbf16>, vector<128x2048xbf16>, vector<8x2048xf32> -> vector<8x2048xf32>
    %c0_31 = arith.constant 0 : index
    %c0_32 = arith.constant 0 : index
    %c0_33 = arith.constant 0 : index
    %56 = vector.load %arg12[%c0_31, %c0_32, %c0_33] : memref<1x1x2048xf32, #tpu.memory_space<vmem>>, vector<1x1x2048xf32>
    %57 = vector.shape_cast %56 : vector<1x1x2048xf32> to vector<1x2048xf32>
    %58 = vector.broadcast %57 : vector<1x2048xf32> to vector<8x2048xf32>
    %59 = arith.addf %55, %58 : vector<8x2048xf32>
    %cst_34 = arith.constant 0.000000e+00 : f32
    %60 = vector.broadcast %cst_34 : f32 to vector<8x2048xf32>
    %61 = arith.maximumf %59, %60 : vector<8x2048xf32>
    %62 = arith.truncf %61 : vector<8x2048xf32> to vector<8x2048xbf16>
    %c0_35 = arith.constant 0 : index
    %c0_36 = arith.constant 0 : index
    %c0_37 = arith.constant 0 : index
    %63 = vector.load %arg13[%c0_35, %c0_36, %c0_37] : memref<1x2048x128xbf16, #tpu.memory_space<vmem>>, vector<1x2048x128xbf16>
    %64 = vector.shape_cast %63 : vector<1x2048x128xbf16> to vector<2048x128xbf16>
    %cst_38 = arith.constant dense<0.000000e+00> : vector<8x128xf32>
    %65 = tpu.matmul %62, %64, %cst_38 {dimension_numbers = #tpu.dot_dimension_numbers<[1], [0], [0], [1], [0, 0, 1, 1], [], []>} : vector<8x2048xbf16>, vector<2048x128xbf16>, vector<8x128xf32> -> vector<8x128xf32>
    %c0_39 = arith.constant 0 : index
    %c0_40 = arith.constant 0 : index
    %c0_41 = arith.constant 0 : index
    %66 = vector.load %arg14[%c0_39, %c0_40, %c0_41] : memref<1x1x128xf32, #tpu.memory_space<vmem>>, vector<1x1x128xf32>
    %67 = vector.shape_cast %66 : vector<1x1x128xf32> to vector<1x128xf32>
    %68 = vector.broadcast %67 : vector<1x128xf32> to vector<8x128xf32>
    %69 = arith.addf %65, %68 : vector<8x128xf32>
    %70 = arith.addf %51, %69 : vector<8x128xf32>
    %c0_42 = arith.constant 0 : index
    %c0_43 = arith.constant 0 : index
    %c0_44 = arith.constant 0 : index
    %71 = vector.load %arg15[%c0_42, %c0_43, %c0_44] : memref<1x1x128xf32, #tpu.memory_space<vmem>>, vector<1x1x128xf32>
    %72 = vector.shape_cast %71 : vector<1x1x128xf32> to vector<1x128xf32>
    %c0_45 = arith.constant 0 : index
    %c0_46 = arith.constant 0 : index
    %c0_47 = arith.constant 0 : index
    %73 = vector.load %arg16[%c0_45, %c0_46, %c0_47] : memref<1x1x128xf32, #tpu.memory_space<vmem>>, vector<1x1x128xf32>
    %74 = vector.shape_cast %73 : vector<1x1x128xf32> to vector<1x128xf32>
    %cst_48 = arith.constant dense<0.000000e+00> : vector<8xf32>
    %75 = vector.multi_reduction <add>, %70, %cst_48 [1] : vector<8x128xf32> to vector<8xf32>
    %76 = vector.shape_cast %75 : vector<8xf32> to vector<8x1xf32>
    %cst_49 = arith.constant 3.125000e-02 : f32
    %77 = vector.broadcast %cst_49 : f32 to vector<8x1xf32>
    %78 = arith.mulf %76, %77 : vector<8x1xf32>
    %79 = vector.broadcast %78 : vector<8x1xf32> to vector<8x128xf32>
    %80 = arith.subf %70, %79 : vector<8x128xf32>
    %cst_50 = arith.constant 0.000000e+00 : f32
    %81 = vector.shape_cast %2 : vector<1x128xi1> to vector<1x128xi1>
    %82 = vector.broadcast %81 : vector<1x128xi1> to vector<8x128xi1>
    %83 = vector.broadcast %cst_50 : f32 to vector<8x128xf32>
    %84 = arith.select %82, %80, %83 : vector<8x128xi1>, vector<8x128xf32>
    %85 = arith.mulf %84, %84 : vector<8x128xf32>
    %cst_51 = arith.constant dense<0.000000e+00> : vector<8xf32>
    %86 = vector.multi_reduction <add>, %85, %cst_51 [1] : vector<8x128xf32> to vector<8xf32>
    %87 = vector.shape_cast %86 : vector<8xf32> to vector<8x1xf32>
    %cst_52 = arith.constant 3.125000e-02 : f32
    %88 = vector.broadcast %cst_52 : f32 to vector<8x1xf32>
    %89 = arith.mulf %87, %88 : vector<8x1xf32>
    %cst_53 = arith.constant 9.99999974E-6 : f32
    %90 = vector.broadcast %cst_53 : f32 to vector<8x1xf32>
    %91 = arith.addf %89, %90 : vector<8x1xf32>
    %92 = math.rsqrt %91 : vector<8x1xf32>
    %93 = vector.broadcast %92 : vector<8x1xf32> to vector<8x128xf32>
    %94 = arith.mulf %84, %93 : vector<8x128xf32>
    %95 = vector.broadcast %72 : vector<1x128xf32> to vector<8x128xf32>
    %96 = arith.mulf %94, %95 : vector<8x128xf32>
    %97 = vector.broadcast %74 : vector<1x128xf32> to vector<8x128xf32>
    %98 = arith.addf %96, %97 : vector<8x128xf32>
    %c0_54 = arith.constant 0 : index
    %c0_55 = arith.constant 0 : index
    %99 = vector.load %arg20[%c0_54, %c0_55] : memref<8x128xf32, #tpu.memory_space<vmem>>, vector<8x128xf32>
    tpu.vector_store %arg20[%c0_54, %c0_55], %98 {strides = array<i32>} : memref<8x128xf32, #tpu.memory_space<vmem>>, vector<8x128xf32>,
    %c1_i32 = arith.constant 1 : i32
    %100 = arith.cmpi eq, %arg1, %c1_i32 : i32
    %101 = arith.extui %100 : i1 to i32
    %c0_i32_56 = arith.constant 0 : i32
    %102 = arith.cmpi ne, %101, %c0_i32_56 : i32
    scf.if %102 {
      %103 = arith.truncf %98 : vector<8x128xf32> to vector<8x128xbf16>
      %c0_57 = arith.constant 0 : index
      %c0_58 = arith.constant 0 : index
      %104 = vector.load %arg17[%c0_57, %c0_58] : memref<128x128xbf16, #tpu.memory_space<vmem>>, vector<128x128xbf16>
      %cst_59 = arith.constant dense<0.000000e+00> : vector<8x128xf32>
      %105 = tpu.matmul %103, %104, %cst_59 {dimension_numbers = #tpu.dot_dimension_numbers<[1], [0], [0], [1], [0, 0, 1, 1], [], []>} : vector<8x128xbf16>, vector<128x128xbf16>, vector<8x128xf32> -> vector<8x128xf32>
      %c0_60 = arith.constant 0 : index
      %c0_61 = arith.constant 0 : index
      %106 = vector.load %arg18[%c0_60, %c0_61] : memref<1x128xf32, #tpu.memory_space<vmem>>, vector<1x128xf32>
      %107 = vector.broadcast %106 : vector<1x128xf32> to vector<8x128xf32>
      %108 = arith.addf %105, %107 : vector<8x128xf32>
      %c0_62 = arith.constant 0 : index
      %c0_63 = arith.constant 0 : index
      %109 = vector.load %arg19[%c0_62, %c0_63] : memref<8x128xf32, #tpu.memory_space<vmem>>, vector<8x128xf32>
      tpu.vector_store %arg19[%c0_62, %c0_63], %108 {strides = array<i32>} : memref<8x128xf32, #tpu.memory_space<vmem>>, vector<8x128xf32>,
    } else {
    }
    return
  }
  func.func @transform_0(%arg0: i32, %arg1: i32) -> (i32, i32) {
    %c0_i32 = arith.constant 0 : i32
    %c0_i32_0 = arith.constant 0 : i32
    return %arg0, %c0_i32 : i32, i32
  }
  func.func @transform_1(%arg0: i32, %arg1: i32) -> (i32, i32) {
    %c0_i32 = arith.constant 0 : i32
    %c0_i32_0 = arith.constant 0 : i32
    %c0_i32_1 = arith.constant 0 : i32
    return %c0_i32, %c0_i32_0 : i32, i32
  }
  func.func @transform_2(%arg0: i32, %arg1: i32) -> (i32, i32) {
    %c0_i32 = arith.constant 0 : i32
    %c0_i32_0 = arith.constant 0 : i32
    %c0_i32_1 = arith.constant 0 : i32
    return %c0_i32, %c0_i32_0 : i32, i32
  }
  func.func @transform_3(%arg0: i32, %arg1: i32) -> (i32, i32, i32) {
    %c0_i32 = arith.constant 0 : i32
    %c0_i32_0 = arith.constant 0 : i32
    %c0_i32_1 = arith.constant 0 : i32
    return %arg1, %c0_i32, %c0_i32_0 : i32, i32, i32
  }
  func.func @transform_4(%arg0: i32, %arg1: i32) -> (i32, i32, i32) {
    %c0_i32 = arith.constant 0 : i32
    %c0_i32_0 = arith.constant 0 : i32
    %c0_i32_1 = arith.constant 0 : i32
    return %arg1, %c0_i32, %c0_i32_0 : i32, i32, i32
  }
  func.func @transform_5(%arg0: i32, %arg1: i32) -> (i32, i32, i32) {
    %c0_i32 = arith.constant 0 : i32
    %c0_i32_0 = arith.constant 0 : i32
    %c0_i32_1 = arith.constant 0 : i32
    return %arg1, %c0_i32, %c0_i32_0 : i32, i32, i32
  }
  func.func @transform_6(%arg0: i32, %arg1: i32) -> (i32, i32, i32) {
    %c0_i32 = arith.constant 0 : i32
    %c0_i32_0 = arith.constant 0 : i32
    %c0_i32_1 = arith.constant 0 : i32
    return %arg1, %c0_i32, %c0_i32_0 : i32, i32, i32
  }
  func.func @transform_7(%arg0: i32, %arg1: i32) -> (i32, i32, i32) {
    %c0_i32 = arith.constant 0 : i32
    %c0_i32_0 = arith.constant 0 : i32
    %c0_i32_1 = arith.constant 0 : i32
    return %arg1, %c0_i32, %c0_i32_0 : i32, i32, i32
  }
  func.func @transform_8(%arg0: i32, %arg1: i32) -> (i32, i32, i32) {
    %c0_i32 = arith.constant 0 : i32
    %c0_i32_0 = arith.constant 0 : i32
    %c0_i32_1 = arith.constant 0 : i32
    return %arg1, %c0_i32, %c0_i32_0 : i32, i32, i32
  }
  func.func @transform_9(%arg0: i32, %arg1: i32) -> (i32, i32, i32) {
    %c0_i32 = arith.constant 0 : i32
    %c0_i32_0 = arith.constant 0 : i32
    %c0_i32_1 = arith.constant 0 : i32
    return %arg1, %c0_i32, %c0_i32_0 : i32, i32, i32
  }
  func.func @transform_10(%arg0: i32, %arg1: i32) -> (i32, i32, i32) {
    %c0_i32 = arith.constant 0 : i32
    %c0_i32_0 = arith.constant 0 : i32
    %c0_i32_1 = arith.constant 0 : i32
    return %arg1, %c0_i32, %c0_i32_0 : i32, i32, i32
  }
  func.func @transform_11(%arg0: i32, %arg1: i32) -> (i32, i32, i32) {
    %c0_i32 = arith.constant 0 : i32
    %c0_i32_0 = arith.constant 0 : i32
    %c0_i32_1 = arith.constant 0 : i32
    return %arg1, %c0_i32, %c0_i32_0 : i32, i32, i32
  }
  func.func @transform_12(%arg0: i32, %arg1: i32) -> (i32, i32, i32) {
    %c0_i32 = arith.constant 0 : i32
    %c0_i32_0 = arith.constant 0 : i32
    %c0_i32_1 = arith.constant 0 : i32
    return %arg1, %c0_i32, %c0_i32_0 : i32, i32, i32
  }
  func.func @transform_13(%arg0: i32, %arg1: i32) -> (i32, i32, i32) {
    %c0_i32 = arith.constant 0 : i32
    %c0_i32_0 = arith.constant 0 : i32
    %c0_i32_1 = arith.constant 0 : i32
    return %arg1, %c0_i32, %c0_i32_0 : i32, i32, i32
  }
  func.func @transform_14(%arg0: i32, %arg1: i32) -> (i32, i32, i32) {
    %c0_i32 = arith.constant 0 : i32
    %c0_i32_0 = arith.constant 0 : i32
    %c0_i32_1 = arith.constant 0 : i32
    return %arg1, %c0_i32, %c0_i32_0 : i32, i32, i32
  }
  func.func @transform_15(%arg0: i32, %arg1: i32) -> (i32, i32) {
    %c0_i32 = arith.constant 0 : i32
    %c0_i32_0 = arith.constant 0 : i32
    %c0_i32_1 = arith.constant 0 : i32
    return %c0_i32, %c0_i32_0 : i32, i32
  }
  func.func @transform_16(%arg0: i32, %arg1: i32) -> (i32, i32) {
    %c0_i32 = arith.constant 0 : i32
    %c0_i32_0 = arith.constant 0 : i32
    %c0_i32_1 = arith.constant 0 : i32
    return %c0_i32, %c0_i32_0 : i32, i32
  }
  func.func @transform_17(%arg0: i32, %arg1: i32) -> (i32, i32) {
    %c0_i32 = arith.constant 0 : i32
    %c0_i32_0 = arith.constant 0 : i32
    return %arg0, %c0_i32 : i32, i32
  }
}

</mosaic_0001>

<llo_original>
// kernel: transformer_classification_forward.1
$region0: #{transformer_classification_forward.1}
  #allocation0 [shape = 'u32[]', space=smem, size = 0x4, offset = 0x4, fixed_abs, tag = 'smem constant byte address 0x4 - core index']
  #allocation1 [shape = 'u32[72,128]{1,0:T(1,128)}', space=vmem, size = 0x9000, scoped, tag = 'internal scratch']
  #allocation2 [shape = 'f32[8,128]{1,0:T(8,128)}', space=vmem, size = 0x1000, scoped, tag = 'scratch operand']
  %s0 = inlined_call_operand.hbm [shape: f32[8,16], index: 0, kind: input, shape index: {}]
  %s1 = inlined_call_operand.hbm [shape: bf16[16,128], index: 1, kind: input, shape index: {}]
  %s2 = inlined_call_operand.hbm [shape: f32[1,128], index: 2, kind: input, shape index: {}]
  %s3 = inlined_call_operand.hbm [shape: bf16[2,128,128], index: 3, kind: input, shape index: {}]
  %s4 = inlined_call_operand.hbm [shape: f32[2,1,128], index: 4, kind: input, shape index: {}]
  %s5 = inlined_call_operand.hbm [shape: bf16[2,128,128], index: 5, kind: input, shape index: {}]
  %s6 = inlined_call_operand.vmem [shape: f32[2,1,128], index: 6, kind: input, shape index: {}]
  %s7 = inlined_call_operand.vmem [shape: f32[2,1,128], index: 7, kind: input, shape index: {}, may-alias: {7,13}]
  %s8 = inlined_call_operand.vmem [shape: f32[2,1,128], index: 8, kind: input, shape index: {}, may-alias: {8,14}]
  %s9 = inlined_call_operand.hbm [shape: bf16[2,128,2048], index: 9, kind: input, shape index: {}]
  %s10 = inlined_call_operand.hbm [shape: f32[2,1,2048], index: 10, kind: input, shape index: {}]
  %s11 = inlined_call_operand.hbm [shape: bf16[2,2048,128], index: 11, kind: input, shape index: {}]
  %s12 = inlined_call_operand.vmem [shape: f32[2,1,128], index: 12, kind: input, shape index: {}]
  %s13 = inlined_call_operand.vmem [shape: f32[2,1,128], index: 13, kind: input, shape index: {}, may-alias: {7,13}]
  %s14 = inlined_call_operand.vmem [shape: f32[2,1,128], index: 14, kind: input, shape index: {}, may-alias: {8,14}]
  %s15 = inlined_call_operand.hbm [shape: bf16[128,128], index: 15, kind: input, shape index: {}]
  %s16 = inlined_call_operand.vmem [shape: f32[1,128], index: 16, kind: input, shape index: {}]
  %s17 = inlined_call_operand.vmem [shape: f32[8,128], index: 17, kind: output, shape index: {}]
  %s18 = sld [smem:[#allocation0]]
  $region149: #{transformer_classification_forward.1} parent=0
    _
  %s20 = ssub.s32 1, %s18
  %s21 = scalar_select 0, %s20, %s18
  $region1: #{transformer_classification_forward.1} parent=0
    #allocation3 [shape = 'u8[4096]{0}', space=vmem, size = 0x1000, scoped, tag = 'input window, operand 0, single buffered']
    #allocation4 [shape = 's32[2]{0}', space=sflag, size = 0x8, scoped, tag = 'scoped memory for transformer_classification_forward.1']
    #allocation5 [shape = 'u8[4096]{0}', space=vmem, size = 0x1000, scoped, tag = 'input window, operand 1, single buffered']
    #allocation6 [shape = 's32[1]{0}', space=sflag, size = 0x4, scoped, tag = 'scoped memory for transformer_classification_forward.1']
    #allocation7 [shape = 'u8[512]{0}', space=vmem, size = 0x400, scoped, tag = 'input window, operand 2, single buffered']
    #allocation8 [shape = 'u8[65536]{0}', space=vmem, size = 0x10000, scoped, tag = 'input window, operand 3']
    #allocation9 [shape = 's32[2]{0}', space=sflag, size = 0x8, scoped, tag = 'scoped memory for transformer_classification_forward.1']
    #allocation10 [shape = 'u8[1024]{0}', space=vmem, size = 0x400, scoped, tag = 'input window, operand 4']
    #allocation11 [shape = 'u8[65536]{0}', space=vmem, size = 0x10000, scoped, tag = 'input window, operand 5']
    #allocation12 [shape = 's32[2]{0}', space=sflag, size = 0x8, scoped, tag = 'scoped memory for transformer_classification_forward.1']
    #allocation13 [shape = 'u8[1048576]{0}', space=vmem, size = 0x100000, scoped, tag = 'input window, operand 9']
    #allocation14 [shape = 'u8[16384]{0}', space=vmem, size = 0x4000, scoped, tag = 'input window, operand 10']
    #allocation15 [shape = 's32[2]{0}', space=sflag, size = 0x8, scoped, tag = 'scoped memory for transformer_classification_forward.1']
    #allocation16 [shape = 'u8[1048576]{0}', space=vmem, size = 0x100000, scoped, tag = 'input window, operand 11']
    #allocation17 [shape = 'u8[32768]{0}', space=vmem, size = 0x8000, scoped, tag = 'input window, operand 15, single buffered']
    #allocation18 [shape = 's32[1]{0}', space=sflag, size = 0x4, scoped, tag = 'scoped memory for transformer_classification_forward.1']
    %22 = vsyncpa [#allocation4], 0
    %23 = vsyncpa [#allocation6], 0
    %24 = vsyncpa [#allocation9], 0
    %s25 = scalar_lea.sflag [#allocation9], 1
    %26 = vsyncpa %s25, 0
    %27 = vsyncpa [#allocation12], 0
    %s28 = scalar_lea.sflag [#allocation12], 1
    %29 = vsyncpa %s28, 0
    %30 = vsyncpa [#allocation15], 0
    %s31 = scalar_lea.sflag [#allocation15], 1
    %32 = vsyncpa %s31, 0
    %33 = vsyncpa [#allocation18], 0
    loop: start=0, step=1, limit=4
    $region2: #{transformer_classification_forward.1} parent=1 // loop_pre_header
      _
    $region3: #{transformer_classification_forward.1} parent=1 // loop_header
      %s35 = sphi 0, %s39
      %p36 = scmp.ge.s32.totalorder %s35, 4
      %s42 = sphi 0, %s54
      %s43 = sphi 0, %s50
      %s44 = sphi 0, %s42
      %s45 = sphi 0, %s43
      %s46 = sphi 0, %s44
      %s47 = sphi 0, %s45
      %s57 = sphi 0, %s59
      %s60 = sphi 0, %s57
      %s61 = sphi 0, %s60
      %s77 = sphi 0, %s61
      %s81 = sphi 0, %s81
      %s83 = sphi 0, %s81
      %s84 = sphi 0, %s83
      %s98 = sphi 0, %s84
      %s102 = sphi 0, %s102
      %s104 = sphi 0, %s102
      %s105 = sphi 0, %s104
      %s119 = sphi 0, %s105
      %s125 = sphi 0, %s127
      %s128 = sphi 0, %s125
      %s129 = sphi 0, %s128
      %s145 = sphi 0, %s129
      %s151 = sphi 0, %s153
      %s154 = sphi 0, %s151
      %s155 = sphi 0, %s154
      %s171 = sphi 0, %s155
      %s177 = sphi 0, %s179
      %s180 = sphi 0, %s177
      %s181 = sphi 0, %s180
      %s197 = sphi 0, %s181
      %s203 = sphi 0, %s205
      %s206 = sphi 0, %s203
      %s207 = sphi 0, %s206
      %s223 = sphi 0, %s207
      %s229 = sphi 0, %s231
      %s232 = sphi 0, %s229
      %s233 = sphi 0, %s232
      %s249 = sphi 0, %s233
      %s255 = sphi 0, %s257
      %s258 = sphi 0, %s255
      %s259 = sphi 0, %s258
      %s275 = sphi 0, %s259
      %s281 = sphi 0, %s283
      %s284 = sphi 0, %s281
      %s285 = sphi 0, %s284
      %s301 = sphi 0, %s285
      %s307 = sphi 0, %s309
      %s310 = sphi 0, %s307
      %s311 = sphi 0, %s310
      %s327 = sphi 0, %s311
      %s333 = sphi 0, %s335
      %s336 = sphi 0, %s333
      %s337 = sphi 0, %s336
      %s353 = sphi 0, %s337
      %s359 = sphi 0, %s361
      %s362 = sphi 0, %s359
      %s363 = sphi 0, %s362
      %s379 = sphi 0, %s363
      %s385 = sphi 0, %s387
      %s388 = sphi 0, %s385
      %s389 = sphi 0, %s388
      %s405 = sphi 0, %s389
      %s411 = sphi 0, %s413
      %s414 = sphi 0, %s411
      %s415 = sphi 0, %s414
      %s431 = sphi 0, %s415
      %s435 = sphi 0, %s435
      %s437 = sphi 0, %s435
      %s438 = sphi 0, %s437
      %s452 = sphi 0, %s438
      %s456 = sphi 0, %s456
      %s458 = sphi 0, %s456
      %s459 = sphi 0, %s458
      %s473 = sphi 0, %s459
      %s479 = sphi 0, %s481
      %s482 = sphi 0, %s479
      %s483 = sphi 0, %s482
      %s499 = sphi 0, %s483
    $region4: #{transformer_classification_forward.1} parent=1 // loop_header_branch
      %38 = sbr.rel (%p36) target = $region8
    $region5: #{transformer_classification_forward.1} parent=1 // loop_body
      %s40 = ssub.s32 %s35, 1
      %s41 = ssub.s32 %s35, 2
      %s48 = sadd.s32 1, %s43
      %p49 = scmp.ge.s32.totalorder %s48, 2
      %s50 = scalar_select %p49, 0, %s48
      %s51 = sadd.s32 1, %s42
      %s52 = scalar_select %p49, %s51, %s42
      %p53 = scmp.ge.s32.totalorder %s52, 1
      %s54 = scalar_select %p53, 0, %s52
      %s55 = ssub.s32 %s42, %s54
      %p56 = scmp.eq.s32.totalorder %s55, 0
      %s58 = sadd.s32 %s57, 1
      %s59 = scalar_select %p56, %s57, %s58
      %p62 = pneg %p56
      %p63 = scmp.eq.s32.totalorder %s35, 1
      %p64 = por %p62, %p63
      %p65 = scmp.ne.s32.totalorder %s57, %s60
      %p66 = scmp.eq.s32.totalorder %s35, 0
      %p67 = por %p65, %p66
      %p68 = scmp.ne.s32.totalorder %s57, %s60
      %p69 = scmp.eq.s32.totalorder %s40, 1
      %p70 = por %p68, %p69
      %p71 = scmp.ne.s32.totalorder %s60, %s61
      %p72 = scmp.eq.s32.totalorder %s40, 0
      %p73 = por %p71, %p72
      %p74 = scmp.ne.s32.totalorder %s60, %s61
      %p75 = scmp.eq.s32.totalorder %s41, 1
      %p76 = por %p74, %p75
      %p78 = scmp.ne.s32.totalorder %s61, %s77
      %p79 = scmp.eq.s32.totalorder %s41, 0
      %p80 = por %p78, %p79
      %s82 = sadd.s32 %s81, 1
      %p85 = scmp.eq.s32.totalorder %s35, 1
      %p86 = scmp.ne.s32.totalorder %s81, %s83
      %p87 = scmp.eq.s32.totalorder %s35, 0
      %p88 = por %p86, %p87
      %p89 = scmp.ne.s32.totalorder %s81, %s83
      %p90 = scmp.eq.s32.totalorder %s40, 1
      %p91 = por %p89, %p90
      %p92 = scmp.ne.s32.totalorder %s83, %s84
      %p93 = scmp.eq.s32.totalorder %s40, 0
      %p94 = por %p92, %p93
      %p95 = scmp.ne.s32.totalorder %s83, %s84
      %p96 = scmp.eq.s32.totalorder %s41, 1
      %p97 = por %p95, %p96
      %p99 = scmp.ne.s32.totalorder %s84, %s98
      %p100 = scmp.eq.s32.totalorder %s41, 0
      %p101 = por %p99, %p100
      %s103 = sadd.s32 %s102, 1
      %p106 = scmp.eq.s32.totalorder %s35, 1
      %p107 = scmp.ne.s32.totalorder %s102, %s104
      %p108 = scmp.eq.s32.totalorder %s35, 0
      %p109 = por %p107, %p108
      %p110 = scmp.ne.s32.totalorder %s102, %s104
      %p111 = scmp.eq.s32.totalorder %s40, 1
      %p112 = por %p110, %p111
      %p113 = scmp.ne.s32.totalorder %s104, %s105
      %p114 = scmp.eq.s32.totalorder %s40, 0
      %p115 = por %p113, %p114
      %p116 = scmp.ne.s32.totalorder %s104, %s105
      %p117 = scmp.eq.s32.totalorder %s41, 1
      %p118 = por %p116, %p117
      %p120 = scmp.ne.s32.totalorder %s105, %s119
      %p121 = scmp.eq.s32.totalorder %s41, 0
      %p122 = por %p120, %p121
      %s123 = ssub.s32 %s43, %s50
      %p124 = scmp.eq.s32.totalorder %s123, 0
      %s126 = sadd.s32 %s125, 1
      %s127 = scalar_select %p124, %s125, %s126
      %p130 = pneg %p124
      %p131 = scmp.eq.s32.totalorder %s35, 1
      %p132 = por %p130, %p131
      %p133 = scmp.ne.s32.totalorder %s125, %s128
      %p134 = scmp.eq.s32.totalorder %s35, 0
      %p135 = por %p133, %p134
      %p136 = scmp.ne.s32.totalorder %s125, %s128
      %p137 = scmp.eq.s32.totalorder %s40, 1
      %p138 = por %p136, %p137
      %p139 = scmp.ne.s32.totalorder %s128, %s129
      %p140 = scmp.eq.s32.totalorder %s40, 0
      %p141 = por %p139, %p140
      %p142 = scmp.ne.s32.totalorder %s128, %s129
      %p143 = scmp.eq.s32.totalorder %s41, 1
      %p144 = por %p142, %p143
      %p146 = scmp.ne.s32.totalorder %s129, %s145
      %p147 = scmp.eq.s32.totalorder %s41, 0
      %p148 = por %p146, %p147
      %s149 = ssub.s32 %s43, %s50
      %p150 = scmp.eq.s32.totalorder %s149, 0
      %s152 = sadd.s32 %s151, 1
      %s153 = scalar_select %p150, %s151, %s152
      %p156 = pneg %p150
      %p157 = scmp.eq.s32.totalorder %s35, 1
      %p158 = por %p156, %p157
      %p159 = scmp.ne.s32.totalorder %s151, %s154
      %p160 = scmp.eq.s32.totalorder %s35, 0
      %p161 = por %p159, %p160
      %p162 = scmp.ne.s32.totalorder %s151, %s154
      %p163 = scmp.eq.s32.totalorder %s40, 1
      %p164 = por %p162, %p163
      %p165 = scmp.ne.s32.totalorder %s154, %s155
      %p166 = scmp.eq.s32.totalorder %s40, 0
      %p167 = por %p165, %p166
      %p168 = scmp.ne.s32.totalorder %s154, %s155
      %p169 = scmp.eq.s32.totalorder %s41, 1
      %p170 = por %p168, %p169
      %p172 = scmp.ne.s32.totalorder %s155, %s171
      %p173 = scmp.eq.s32.totalorder %s41, 0
      %p174 = por %p172, %p173
      %s175 = ssub.s32 %s43, %s50
      %p176 = scmp.eq.s32.totalorder %s175, 0
      %s178 = sadd.s32 %s177, 1
      %s179 = scalar_select %p176, %s177, %s178
      %p182 = pneg %p176
      %p183 = scmp.eq.s32.totalorder %s35, 1
      %p184 = por %p182, %p183
      %p185 = scmp.ne.s32.totalorder %s177, %s180
      %p186 = scmp.eq.s32.totalorder %s35, 0
      %p187 = por %p185, %p186
      %p188 = scmp.ne.s32.totalorder %s177, %s180
      %p189 = scmp.eq.s32.totalorder %s40, 1
      %p190 = por %p188, %p189
      %p191 = scmp.ne.s32.totalorder %s180, %s181
      %p192 = scmp.eq.s32.totalorder %s40, 0
      %p193 = por %p191, %p192
      %p194 = scmp.ne.s32.totalorder %s180, %s181
      %p195 = scmp.eq.s32.totalorder %s41, 1
      %p196 = por %p194, %p195
      %p198 = scmp.ne.s32.totalorder %s181, %s197
      %p199 = scmp.eq.s32.totalorder %s41, 0
      %p200 = por %p198, %p199
      %s201 = ssub.s32 %s43, %s50
      %p202 = scmp.eq.s32.totalorder %s201, 0
      %s204 = sadd.s32 %s203, 1
      %s205 = scalar_select %p202, %s203, %s204
      %p208 = pneg %p202
      %p209 = scmp.eq.s32.totalorder %s35, 1
      %p210 = por %p208, %p209
      %p211 = scmp.ne.s32.totalorder %s203, %s206
      %p212 = scmp.eq.s32.totalorder %s35, 0
      %p213 = por %p211, %p212
      %p214 = scmp.ne.s32.totalorder %s203, %s206
      %p215 = scmp.eq.s32.totalorder %s40, 1
      %p216 = por %p214, %p215
      %p217 = scmp.ne.s32.totalorder %s206, %s207
      %p218 = scmp.eq.s32.totalorder %s40, 0
      %p219 = por %p217, %p218
      %p220 = scmp.ne.s32.totalorder %s206, %s207
      %p221 = scmp.eq.s32.totalorder %s41, 1
      %p222 = por %p220, %p221
      %p224 = scmp.ne.s32.totalorder %s207, %s223
      %p225 = scmp.eq.s32.totalorder %s41, 0
      %p226 = por %p224, %p225
      %s227 = ssub.s32 %s43, %s50
      %p228 = scmp.eq.s32.totalorder %s227, 0
      %s230 = sadd.s32 %s229, 1
      %s231 = scalar_select %p228, %s229, %s230
      %p234 = pneg %p228
      %p235 = scmp.eq.s32.totalorder %s35, 1
      %p236 = por %p234, %p235
      %p237 = scmp.ne.s32.totalorder %s229, %s232
      %p238 = scmp.eq.s32.totalorder %s35, 0
      %p239 = por %p237, %p238
      %p240 = scmp.ne.s32.totalorder %s229, %s232
      %p241 = scmp.eq.s32.totalorder %s40, 1
      %p242 = por %p240, %p241
      %p243 = scmp.ne.s32.totalorder %s232, %s233
      %p244 = scmp.eq.s32.totalorder %s40, 0
      %p245 = por %p243, %p244
      %p246 = scmp.ne.s32.totalorder %s232, %s233
      %p247 = scmp.eq.s32.totalorder %s41, 1
      %p248 = por %p246, %p247
      %p250 = scmp.ne.s32.totalorder %s233, %s249
      %p251 = scmp.eq.s32.totalorder %s41, 0
      %p252 = por %p250, %p251
      %s253 = ssub.s32 %s43, %s50
      %p254 = scmp.eq.s32.totalorder %s253, 0
      %s256 = sadd.s32 %s255, 1
      %s257 = scalar_select %p254, %s255, %s256
      %p260 = pneg %p254
      %p261 = scmp.eq.s32.totalorder %s35, 1
      %p262 = por %p260, %p261
      %p263 = scmp.ne.s32.totalorder %s255, %s258
      %p264 = scmp.eq.s32.totalorder %s35, 0
      %p265 = por %p263, %p264
      %p266 = scmp.ne.s32.totalorder %s255, %s258
      %p267 = scmp.eq.s32.totalorder %s40, 1
      %p268 = por %p266, %p267
      %p269 = scmp.ne.s32.totalorder %s258, %s259
      %p270 = scmp.eq.s32.totalorder %s40, 0
      %p271 = por %p269, %p270
      %p272 = scmp.ne.s32.totalorder %s258, %s259
      %p273 = scmp.eq.s32.totalorder %s41, 1
      %p274 = por %p272, %p273
      %p276 = scmp.ne.s32.totalorder %s259, %s275
      %p277 = scmp.eq.s32.totalorder %s41, 0
      %p278 = por %p276, %p277
      %s279 = ssub.s32 %s43, %s50
      %p280 = scmp.eq.s32.totalorder %s279, 0
      %s282 = sadd.s32 %s281, 1
      %s283 = scalar_select %p280, %s281, %s282
      %p286 = pneg %p280
      %p287 = scmp.eq.s32.totalorder %s35, 1
      %p288 = por %p286, %p287
      %p289 = scmp.ne.s32.totalorder %s281, %s284
      %p290 = scmp.eq.s32.totalorder %s35, 0
      %p291 = por %p289, %p290
      %p292 = scmp.ne.s32.totalorder %s281, %s284
      %p293 = scmp.eq.s32.totalorder %s40, 1
      %p294 = por %p292, %p293
      %p295 = scmp.ne.s32.totalorder %s284, %s285
      %p296 = scmp.eq.s32.totalorder %s40, 0
      %p297 = por %p295, %p296
      %p298 = scmp.ne.s32.totalorder %s284, %s285
      %p299 = scmp.eq.s32.totalorder %s41, 1
      %p300 = por %p298, %p299
      %p302 = scmp.ne.s32.totalorder %s285, %s301
      %p303 = scmp.eq.s32.totalorder %s41, 0
      %p304 = por %p302, %p303
      %s305 = ssub.s32 %s43, %s50
      %p306 = scmp.eq.s32.totalorder %s305, 0
      %s308 = sadd.s32 %s307, 1
      %s309 = scalar_select %p306, %s307, %s308
      %p312 = pneg %p306
      %p313 = scmp.eq.s32.totalorder %s35, 1
      %p314 = por %p312, %p313
      %p315 = scmp.ne.s32.totalorder %s307, %s310
      %p316 = scmp.eq.s32.totalorder %s35, 0
      %p317 = por %p315, %p316
      %p318 = scmp.ne.s32.totalorder %s307, %s310
      %p319 = scmp.eq.s32.totalorder %s40, 1
      %p320 = por %p318, %p319
      %p321 = scmp.ne.s32.totalorder %s310, %s311
      %p322 = scmp.eq.s32.totalorder %s40, 0
      %p323 = por %p321, %p322
      %p324 = scmp.ne.s32.totalorder %s310, %s311
      %p325 = scmp.eq.s32.totalorder %s41, 1
      %p326 = por %p324, %p325
      %p328 = scmp.ne.s32.totalorder %s311, %s327
      %p329 = scmp.eq.s32.totalorder %s41, 0
      %p330 = por %p328, %p329
      %s331 = ssub.s32 %s43, %s50
      %p332 = scmp.eq.s32.totalorder %s331, 0
      %s334 = sadd.s32 %s333, 1
      %s335 = scalar_select %p332, %s333, %s334
      %p338 = pneg %p332
      %p339 = scmp.eq.s32.totalorder %s35, 1
      %p340 = por %p338, %p339
      %p341 = scmp.ne.s32.totalorder %s333, %s336
      %p342 = scmp.eq.s32.totalorder %s35, 0
      %p343 = por %p341, %p342
      %p344 = scmp.ne.s32.totalorder %s333, %s336
      %p345 = scmp.eq.s32.totalorder %s40, 1
      %p346 = por %p344, %p345
      %p347 = scmp.ne.s32.totalorder %s336, %s337
      %p348 = scmp.eq.s32.totalorder %s40, 0
      %p349 = por %p347, %p348
      %p350 = scmp.ne.s32.totalorder %s336, %s337
      %p351 = scmp.eq.s32.totalorder %s41, 1
      %p352 = por %p350, %p351
      %p354 = scmp.ne.s32.totalorder %s337, %s353
      %p355 = scmp.eq.s32.totalorder %s41, 0
      %p356 = por %p354, %p355
      %s357 = ssub.s32 %s43, %s50
      %p358 = scmp.eq.s32.totalorder %s357, 0
      %s360 = sadd.s32 %s359, 1
      %s361 = scalar_select %p358, %s359, %s360
      %p364 = pneg %p358
      %p365 = scmp.eq.s32.totalorder %s35, 1
      %p366 = por %p364, %p365
      %p367 = scmp.ne.s32.totalorder %s359, %s362
      %p368 = scmp.eq.s32.totalorder %s35, 0
      %p369 = por %p367, %p368
      %p370 = scmp.ne.s32.totalorder %s359, %s362
      %p371 = scmp.eq.s32.totalorder %s40, 1
      %p372 = por %p370, %p371
      %p373 = scmp.ne.s32.totalorder %s362, %s363
      %p374 = scmp.eq.s32.totalorder %s40, 0
      %p375 = por %p373, %p374
      %p376 = scmp.ne.s32.totalorder %s362, %s363
      %p377 = scmp.eq.s32.totalorder %s41, 1
      %p378 = por %p376, %p377
      %p380 = scmp.ne.s32.totalorder %s363, %s379
      %p381 = scmp.eq.s32.totalorder %s41, 0
      %p382 = por %p380, %p381
      %s383 = ssub.s32 %s43, %s50
      %p384 = scmp.eq.s32.totalorder %s383, 0
      %s386 = sadd.s32 %s385, 1
      %s387 = scalar_select %p384, %s385, %s386
      %p390 = pneg %p384
      %p391 = scmp.eq.s32.totalorder %s35, 1
      %p392 = por %p390, %p391
      %p393 = scmp.ne.s32.totalorder %s385, %s388
      %p394 = scmp.eq.s32.totalorder %s35, 0
      %p395 = por %p393, %p394
      %p396 = scmp.ne.s32.totalorder %s385, %s388
      %p397 = scmp.eq.s32.totalorder %s40, 1
      %p398 = por %p396, %p397
      %p399 = scmp.ne.s32.totalorder %s388, %s389
      %p400 = scmp.eq.s32.totalorder %s40, 0
      %p401 = por %p399, %p400
      %p402 = scmp.ne.s32.totalorder %s388, %s389
      %p403 = scmp.eq.s32.totalorder %s41, 1
      %p404 = por %p402, %p403
      %p406 = scmp.ne.s32.totalorder %s389, %s405
      %p407 = scmp.eq.s32.totalorder %s41, 0
      %p408 = por %p406, %p407
      %s409 = ssub.s32 %s43, %s50
      %p410 = scmp.eq.s32.totalorder %s409, 0
      %s412 = sadd.s32 %s411, 1
      %s413 = scalar_select %p410, %s411, %s412
      %p416 = pneg %p410
      %p417 = scmp.eq.s32.totalorder %s35, 1
      %p418 = por %p416, %p417
      %p419 = scmp.ne.s32.totalorder %s411, %s414
      %p420 = scmp.eq.s32.totalorder %s35, 0
      %p421 = por %p419, %p420
      %p422 = scmp.ne.s32.totalorder %s411, %s414
      %p423 = scmp.eq.s32.totalorder %s40, 1
      %p424 = por %p422, %p423
      %p425 = scmp.ne.s32.totalorder %s414, %s415
      %p426 = scmp.eq.s32.totalorder %s40, 0
      %p427 = por %p425, %p426
      %p428 = scmp.ne.s32.totalorder %s414, %s415
      %p429 = scmp.eq.s32.totalorder %s41, 1
      %p430 = por %p428, %p429
      %p432 = scmp.ne.s32.totalorder %s415, %s431
      %p433 = scmp.eq.s32.totalorder %s41, 0
      %p434 = por %p432, %p433
      %s436 = sadd.s32 %s435, 1
      %p439 = scmp.eq.s32.totalorder %s35, 1
      %p440 = scmp.ne.s32.totalorder %s435, %s437
      %p441 = scmp.eq.s32.totalorder %s35, 0
      %p442 = por %p440, %p441
      %p443 = scmp.ne.s32.totalorder %s435, %s437
      %p444 = scmp.eq.s32.totalorder %s40, 1
      %p445 = por %p443, %p444
      %p446 = scmp.ne.s32.totalorder %s437, %s438
      %p447 = scmp.eq.s32.totalorder %s40, 0
      %p448 = por %p446, %p447
      %p449 = scmp.ne.s32.totalorder %s437, %s438
      %p450 = scmp.eq.s32.totalorder %s41, 1
      %p451 = por %p449, %p450
      %p453 = scmp.ne.s32.totalorder %s438, %s452
      %p454 = scmp.eq.s32.totalorder %s41, 0
      %p455 = por %p453, %p454
      %s457 = sadd.s32 %s456, 1
      %p460 = scmp.eq.s32.totalorder %s35, 1
      %p461 = scmp.ne.s32.totalorder %s456, %s458
      %p462 = scmp.eq.s32.totalorder %s35, 0
      %p463 = por %p461, %p462
      %p464 = scmp.ne.s32.totalorder %s456, %s458
      %p465 = scmp.eq.s32.totalorder %s40, 1
      %p466 = por %p464, %p465
      %p467 = scmp.ne.s32.totalorder %s458, %s459
      %p468 = scmp.eq.s32.totalorder %s40, 0
      %p469 = por %p467, %p468
      %p470 = scmp.ne.s32.totalorder %s458, %s459
      %p471 = scmp.eq.s32.totalorder %s41, 1
      %p472 = por %p470, %p471
      %p474 = scmp.ne.s32.totalorder %s459, %s473
      %p475 = scmp.eq.s32.totalorder %s41, 0
      %p476 = por %p474, %p475
      %s477 = ssub.s32 %s42, %s54
      %p478 = scmp.eq.s32.totalorder %s477, 0
      %s480 = sadd.s32 %s479, 1
      %s481 = scalar_select %p478, %s479, %s480
      %p484 = pneg %p478
      %p485 = scmp.eq.s32.totalorder %s35, 1
      %p486 = por %p484, %p485
      %p487 = scmp.ne.s32.totalorder %s479, %s482
      %p488 = scmp.eq.s32.totalorder %s35, 0
      %p489 = por %p487, %p488
      %p490 = scmp.ne.s32.totalorder %s479, %s482
      %p491 = scmp.eq.s32.totalorder %s40, 1
      %p492 = por %p490, %p491
      %p493 = scmp.ne.s32.totalorder %s482, %s483
      %p494 = scmp.eq.s32.totalorder %s40, 0
      %p495 = por %p493, %p494
      %p496 = scmp.ne.s32.totalorder %s482, %s483
      %p497 = scmp.eq.s32.totalorder %s41, 1
      %p498 = por %p496, %p497
      %p500 = scmp.ne.s32.totalorder %s483, %s499
      %p501 = scmp.eq.s32.totalorder %s41, 0
      %p502 = por %p500, %p501
      %p503 = scmp.le.s32.totalorder 1, %s35
      %p504 = scmp.lt.s32.totalorder %s35, 3
      %p505 = pnand %p503, %p504
      %p506 = pneg %p505
      // Predicated region
      $region9: #{transformer_classification_forward.1} parent=5 // pred_check
        _
      $region10: #{transformer_classification_forward.1} parent=5 // pred_check_branch
        %508 = sbr.rel (%p505) target = $region12
      $region11: #{transformer_classification_forward.1} parent=5 // pred_region
        %s509 = ssub.s32 %s35, 1
        // Predicated region
        $region13: #{transformer_classification_forward.1} parent=11 // pred_check
          %p510 = pneg %p73
        $region14: #{transformer_classification_forward.1} parent=11 // pred_check_branch
          %512 = sbr.rel (%p510) target = $region16
        $region15: #{transformer_classification_forward.1} parent=11 // pred_region
          %514 = vsyncadd [#allocation4], 0
          %s515 = smul.addr %s44, 8
          %s516 = scalar_lea.hbm %s0, %s515
          %s518 = sshll.u32 %s516, 4
          %s519 = int_to_ptr.hbm [resolvable:$true] %s518
          %s520 = sshll.u32 [#allocation3], 4
          %s521 = int_to_ptr.vmem [resolvable:$true] %s520
          %523 = dma.hbm_to_vmem [thread:$0]  %s519, 128, %s521, [#allocation4]
        $region16: #{transformer_classification_forward.1} parent=11 // pred_fallthru
          _
        // Predicated region
        $region17: #{transformer_classification_forward.1} parent=11 // pred_check
          %p524 = pneg %p94
        $region18: #{transformer_classification_forward.1} parent=11 // pred_check_branch
          %526 = sbr.rel (%p524) target = $region20
        $region19: #{transformer_classification_forward.1} parent=11 // pred_region
          %528 = vsyncadd [#allocation6], 0
          %s529 = sshll.u32 %s1, 4
          %s530 = int_to_ptr.hbm [resolvable:$true] %s529
          %s531 = sshll.u32 [#allocation5], 4
          %s532 = int_to_ptr.vmem [resolvable:$true] %s531
          %537 = dma.hbm_to_vmem [thread:$0]  %s530, 128, %s532, [#allocation6], 64, 64, 4
        $region20: #{transformer_classification_forward.1} parent=11 // pred_fallthru
          _
        // Predicated region
        $region21: #{transformer_classification_forward.1} parent=11 // pred_check
          %p538 = pneg %p115
        $region22: #{transformer_classification_forward.1} parent=11 // pred_check_branch
          %540 = sbr.rel (%p538) target = $region24
        $region23: #{transformer_classification_forward.1} parent=11 // pred_region
          %542 = vsyncadd [#allocation6], 0
          %s544 = sshll.u32 %s2, 4
          %s545 = int_to_ptr.hbm [resolvable:$true] %s544
          %s546 = sshll.u32 [#allocation7], 4
          %s547 = int_to_ptr.vmem [resolvable:$true] %s546
          %549 = dma.hbm_to_vmem [thread:$0]  %s545, 16, %s547, [#allocation6]
        $region24: #{transformer_classification_forward.1} parent=11 // pred_fallthru
          _
        // Predicated region
        $region25: #{transformer_classification_forward.1} parent=11 // pred_check
          %p550 = pneg %p448
        $region26: #{transformer_classification_forward.1} parent=11 // pred_check_branch
          %552 = sbr.rel (%p550) target = $region28
        $region27: #{transformer_classification_forward.1} parent=11 // pred_region
          %554 = vsyncadd [#allocation18], 0
          %s555 = sshll.u32 %s15, 4
          %s556 = int_to_ptr.hbm [resolvable:$true] %s555
          %s557 = sshll.u32 [#allocation17], 4
          %s558 = int_to_ptr.vmem [resolvable:$true] %s557
          %563 = dma.hbm_to_vmem [thread:$0]  %s556, 1024, %s558, [#allocation18], 64, 64, 4
        $region28: #{transformer_classification_forward.1} parent=11 // pred_fallthru
          _
        // Predicated region
        $region29: #{transformer_classification_forward.1} parent=11 // pred_check
          %p564 = pneg %p469
        $region30: #{transformer_classification_forward.1} parent=11 // pred_check_branch
          %566 = sbr.rel (%p564) target = $region32
        $region31: #{transformer_classification_forward.1} parent=11 // pred_region
          _
        $region32: #{transformer_classification_forward.1} parent=11 // pred_fallthru
          _
      $region12: #{transformer_classification_forward.1} parent=5 // pred_fallthru
        _
      %p567 = scmp.lt.s32.totalorder %s35, 2
      // Predicated region
      $region33: #{transformer_classification_forward.1} parent=5 // pred_check
        %p568 = pneg %p567
      $region34: #{transformer_classification_forward.1} parent=5 // pred_check_branch
        %570 = sbr.rel (%p568) target = $region36
      $region35: #{transformer_classification_forward.1} parent=5 // pred_region
        // Predicated region
        $region37: #{transformer_classification_forward.1} parent=35 // pred_check
          %p571 = pneg %p135
        $region38: #{transformer_classification_forward.1} parent=35 // pred_check_branch
          %573 = sbr.rel (%p571) target = $region40
        $region39: #{transformer_classification_forward.1} parent=35 // pred_region
          %s574 = sand.u32 %s35, 1
          %s575 = scalar_lea.sflag [#allocation9], %s574
          %s576 = sand.u32 %s125, 1
          %s577 = smul.addr %s576, 64
          %s578 = scalar_lea.vmem [#allocation8], %s577
          %580 = vsyncadd %s575, 0
          %s581 = smul.addr %s43, 16
          %s582 = smul.addr %s581, 4
          %s583 = scalar_lea.hbm %s3, %s582
          %s584 = sshll.u32 %s583, 4
          %s585 = int_to_ptr.hbm [resolvable:$true] %s584
          %s586 = sshll.u32 %s578, 4
          %s587 = int_to_ptr.vmem [resolvable:$true] %s586
          %592 = dma.hbm_to_vmem [thread:$0]  %s585, 1024, %s587, %s575, 64, 64, 4
        $region40: #{transformer_classification_forward.1} parent=35 // pred_fallthru
          _
        // Predicated region
        $region41: #{transformer_classification_forward.1} parent=35 // pred_check
          %p593 = pneg %p161
        $region42: #{transformer_classification_forward.1} parent=35 // pred_check_branch
          %595 = sbr.rel (%p593) target = $region44
        $region43: #{transformer_classification_forward.1} parent=35 // pred_region
          %s596 = sand.u32 %s35, 1
          %s597 = scalar_lea.sflag [#allocation9], %s596
          %s598 = sand.u32 %s151, 1
          %s599 = scalar_lea.vmem [#allocation10], %s598
          %601 = vsyncadd %s597, 0
          %s602 = scalar_lea.hbm %s4, %s43
          %s604 = sshll.u32 %s602, 4
          %s605 = int_to_ptr.hbm [resolvable:$true] %s604
          %s606 = sshll.u32 %s599, 4
          %s607 = int_to_ptr.vmem [resolvable:$true] %s606
          %609 = dma.hbm_to_vmem [thread:$0]  %s605, 16, %s607, %s597
        $region44: #{transformer_classification_forward.1} parent=35 // pred_fallthru
          _
        // Predicated region
        $region45: #{transformer_classification_forward.1} parent=35 // pred_check
          %p610 = pneg %p187
        $region46: #{transformer_classification_forward.1} parent=35 // pred_check_branch
          %612 = sbr.rel (%p610) target = $region48
        $region47: #{transformer_classification_forward.1} parent=35 // pred_region
          %s613 = sand.u32 %s35, 1
          %s614 = scalar_lea.sflag [#allocation12], %s613
          %s615 = sand.u32 %s177, 1
          %s616 = smul.addr %s615, 64
          %s617 = scalar_lea.vmem [#allocation11], %s616
          %619 = vsyncadd %s614, 0
          %s620 = smul.addr %s43, 16
          %s621 = smul.addr %s620, 4
          %s622 = scalar_lea.hbm %s5, %s621
          %s623 = sshll.u32 %s622, 4
          %s624 = int_to_ptr.hbm [resolvable:$true] %s623
          %s625 = sshll.u32 %s617, 4
          %s626 = int_to_ptr.vmem [resolvable:$true] %s625
          %631 = dma.hbm_to_vmem [thread:$0]  %s624, 1024, %s626, %s614, 64, 64, 4
        $region48: #{transformer_classification_forward.1} parent=35 // pred_fallthru
          _
        // Predicated region
        $region49: #{transformer_classification_forward.1} parent=35 // pred_check
          %p632 = pneg %p213
        $region50: #{transformer_classification_forward.1} parent=35 // pred_check_branch
          %634 = sbr.rel (%p632) target = $region52
        $region51: #{transformer_classification_forward.1} parent=35 // pred_region
          %p635 = scmp.lt.s32.totalorder %s43, 1
          %s636 = scalar_select %p635, %s43, 1
          %s637 = scalar_lea.vmem %s6, %s636
        $region52: #{transformer_classification_forward.1} parent=35 // pred_fallthru
          _
        // Predicated region
        $region53: #{transformer_classification_forward.1} parent=35 // pred_check
          %p638 = pneg %p239
        $region54: #{transformer_classification_forward.1} parent=35 // pred_check_branch
          %640 = sbr.rel (%p638) target = $region56
        $region55: #{transformer_classification_forward.1} parent=35 // pred_region
          %p641 = scmp.lt.s32.totalorder %s43, 1
          %s642 = scalar_select %p641, %s43, 1
          %s643 = scalar_lea.vmem %s7, %s642
        $region56: #{transformer_classification_forward.1} parent=35 // pred_fallthru
          _
        // Predicated region
        $region57: #{transformer_classification_forward.1} parent=35 // pred_check
          %p644 = pneg %p265
        $region58: #{transformer_classification_forward.1} parent=35 // pred_check_branch
          %646 = sbr.rel (%p644) target = $region60
        $region59: #{transformer_classification_forward.1} parent=35 // pred_region
          %p647 = scmp.lt.s32.totalorder %s43, 1
          %s648 = scalar_select %p647, %s43, 1
          %s649 = scalar_lea.vmem %s8, %s648
        $region60: #{transformer_classification_forward.1} parent=35 // pred_fallthru
          _
        // Predicated region
        $region61: #{transformer_classification_forward.1} parent=35 // pred_check
          %p650 = pneg %p291
        $region62: #{transformer_classification_forward.1} parent=35 // pred_check_branch
          %652 = sbr.rel (%p650) target = $region64
        $region63: #{transformer_classification_forward.1} parent=35 // pred_region
          %s653 = sand.u32 %s35, 1
          %s654 = scalar_lea.sflag [#allocation12], %s653
          %s655 = sand.u32 %s281, 1
          %s656 = smul.addr %s655, 1024
          %s657 = scalar_lea.vmem [#allocation13], %s656
          %659 = vsyncadd %s654, 0
          %s660 = smul.addr %s43, 256
          %s661 = smul.addr %s660, 4
          %s662 = scalar_lea.hbm %s9, %s661
          %s663 = sshll.u32 %s662, 4
          %s664 = int_to_ptr.hbm [resolvable:$true] %s663
          %s665 = sshll.u32 %s657, 4
          %s666 = int_to_ptr.vmem [resolvable:$true] %s665
          %671 = dma.hbm_to_vmem [thread:$0]  %s664, 16384, %s666, %s654, 1024, 1024, 64
        $region64: #{transformer_classification_forward.1} parent=35 // pred_fallthru
          _
        // Predicated region
        $region65: #{transformer_classification_forward.1} parent=35 // pred_check
          %p672 = pneg %p317
        $region66: #{transformer_classification_forward.1} parent=35 // pred_check_branch
          %674 = sbr.rel (%p672) target = $region68
        $region67: #{transformer_classification_forward.1} parent=35 // pred_region
          %s675 = sand.u32 %s35, 1
          %s676 = scalar_lea.sflag [#allocation15], %s675
          %s677 = sand.u32 %s307, 1
          %s678 = smul.addr %s677, 16
          %s679 = scalar_lea.vmem [#allocation14], %s678
          %681 = vsyncadd %s676, 0
          %s682 = smul.addr %s43, 16
          %s683 = scalar_lea.hbm %s10, %s682
          %s685 = sshll.u32 %s683, 4
          %s686 = int_to_ptr.hbm [resolvable:$true] %s685
          %s687 = sshll.u32 %s679, 4
          %s688 = int_to_ptr.vmem [resolvable:$true] %s687
          %690 = dma.hbm_to_vmem [thread:$0]  %s686, 256, %s688, %s676
        $region68: #{transformer_classification_forward.1} parent=35 // pred_fallthru
          _
        // Predicated region
        $region69: #{transformer_classification_forward.1} parent=35 // pred_check
          %p691 = pneg %p343
        $region70: #{transformer_classification_forward.1} parent=35 // pred_check_branch
          %693 = sbr.rel (%p691) target = $region72
        $region71: #{transformer_classification_forward.1} parent=35 // pred_region
          %s694 = sand.u32 %s35, 1
          %s695 = scalar_lea.sflag [#allocation15], %s694
          %s696 = sand.u32 %s333, 1
          %s697 = smul.addr %s696, 1024
          %s698 = scalar_lea.vmem [#allocation16], %s697
          %700 = vsyncadd %s695, 0
          %s701 = smul.addr %s43, 256
          %s702 = smul.addr %s701, 4
          %s703 = scalar_lea.hbm %s11, %s702
          %s704 = sshll.u32 %s703, 4
          %s705 = int_to_ptr.hbm [resolvable:$true] %s704
          %s706 = sshll.u32 %s698, 4
          %s707 = int_to_ptr.vmem [resolvable:$true] %s706
          %712 = dma.hbm_to_vmem [thread:$0]  %s705, 16384, %s707, %s695, 64, 64, 4
        $region72: #{transformer_classification_forward.1} parent=35 // pred_fallthru
          _
        // Predicated region
        $region73: #{transformer_classification_forward.1} parent=35 // pred_check
          %p713 = pneg %p369
        $region74: #{transformer_classification_forward.1} parent=35 // pred_check_branch
          %715 = sbr.rel (%p713) target = $region76
        $region75: #{transformer_classification_forward.1} parent=35 // pred_region
          %p716 = scmp.lt.s32.totalorder %s43, 1
          %s717 = scalar_select %p716, %s43, 1
          %s718 = scalar_lea.vmem %s12, %s717
        $region76: #{transformer_classification_forward.1} parent=35 // pred_fallthru
          _
        // Predicated region
        $region77: #{transformer_classification_forward.1} parent=35 // pred_check
          %p719 = pneg %p395
        $region78: #{transformer_classification_forward.1} parent=35 // pred_check_branch
          %721 = sbr.rel (%p719) target = $region80
        $region79: #{transformer_classification_forward.1} parent=35 // pred_region
          %p722 = scmp.lt.s32.totalorder %s43, 1
          %s723 = scalar_select %p722, %s43, 1
          %s724 = scalar_lea.vmem %s13, %s723
        $region80: #{transformer_classification_forward.1} parent=35 // pred_fallthru
          _
        // Predicated region
        $region81: #{transformer_classification_forward.1} parent=35 // pred_check
          %p725 = pneg %p421
        $region82: #{transformer_classification_forward.1} parent=35 // pred_check_branch
          %727 = sbr.rel (%p725) target = $region84
        $region83: #{transformer_classification_forward.1} parent=35 // pred_region
          %p728 = scmp.lt.s32.totalorder %s43, 1
          %s729 = scalar_select %p728, %s43, 1
          %s730 = scalar_lea.vmem %s14, %s729
        $region84: #{transformer_classification_forward.1} parent=35 // pred_fallthru
          _
      $region36: #{transformer_classification_forward.1} parent=5 // pred_fallthru
        _
      %p731 = scmp.le.s32.totalorder 1, %s35
      %p732 = scmp.lt.s32.totalorder %s35, 3
      %p733 = pnand %p731, %p732
      %p734 = pneg %p733
      // Predicated region
      $region85: #{transformer_classification_forward.1} parent=5 // pred_check
        _
      $region86: #{transformer_classification_forward.1} parent=5 // pred_check_branch
        %736 = sbr.rel (%p733) target = $region88
      $region87: #{transformer_classification_forward.1} parent=5 // pred_region
        %s737 = ssub.s32 %s35, 1
        // Predicated region
        $region89: #{transformer_classification_forward.1} parent=87 // pred_check
          %p738 = pneg %p73
        $region90: #{transformer_classification_forward.1} parent=87 // pred_check_branch
          %740 = sbr.rel (%p738) target = $region92
        $region91: #{transformer_classification_forward.1} parent=87 // pred_region
          %742 = dma.done [#allocation4], 128
        $region92: #{transformer_classification_forward.1} parent=87 // pred_fallthru
          _
        // Predicated region
        $region93: #{transformer_classification_forward.1} parent=87 // pred_check
          %p743 = pneg %p94
        $region94: #{transformer_classification_forward.1} parent=87 // pred_check_branch
          %745 = sbr.rel (%p743) target = $region96
        $region95: #{transformer_classification_forward.1} parent=87 // pred_region
          %747 = dma.done [#allocation6], 128
        $region96: #{transformer_classification_forward.1} parent=87 // pred_fallthru
          _
        // Predicated region
        $region97: #{transformer_classification_forward.1} parent=87 // pred_check
          %p748 = pneg %p115
        $region98: #{transformer_classification_forward.1} parent=87 // pred_check_branch
          %750 = sbr.rel (%p748) target = $region100
        $region99: #{transformer_classification_forward.1} parent=87 // pred_region
          %752 = dma.done [#allocation6], 16
        $region100: #{transformer_classification_forward.1} parent=87 // pred_fallthru
          _
        %s753 = sand.u32 %s40, 1
        %s754 = scalar_lea.sflag [#allocation9], %s753
        %s755 = sand.u32 %s128, 1
        %s756 = smul.addr %s755, 64
        %s757 = scalar_lea.vmem [#allocation8], %s756
        // Predicated region
        $region101: #{transformer_classification_forward.1} parent=87 // pred_check
          %p758 = pneg %p141
        $region102: #{transformer_classification_forward.1} parent=87 // pred_check_branch
          %760 = sbr.rel (%p758) target = $region104
        $region103: #{transformer_classification_forward.1} parent=87 // pred_region
          %762 = dma.done %s754, 1024
        $region104: #{transformer_classification_forward.1} parent=87 // pred_fallthru
          _
        %s763 = sand.u32 %s40, 1
        %s764 = scalar_lea.sflag [#allocation9], %s763
        %s765 = sand.u32 %s154, 1
        %s766 = scalar_lea.vmem [#allocation10], %s765
        // Predicated region
        $region105: #{transformer_classification_forward.1} parent=87 // pred_check
          %p767 = pneg %p167
        $region106: #{transformer_classification_forward.1} parent=87 // pred_check_branch
          %769 = sbr.rel (%p767) target = $region108
        $region107: #{transformer_classification_forward.1} parent=87 // pred_region
          %771 = dma.done %s764, 16
        $region108: #{transformer_classification_forward.1} parent=87 // pred_fallthru
          _
        %s772 = sand.u32 %s40, 1
        %s773 = scalar_lea.sflag [#allocation12], %s772
        %s774 = sand.u32 %s180, 1
        %s775 = smul.addr %s774, 64
        %s776 = scalar_lea.vmem [#allocation11], %s775
        // Predicated region
        $region109: #{transformer_classification_forward.1} parent=87 // pred_check
          %p777 = pneg %p193
        $region110: #{transformer_classification_forward.1} parent=87 // pred_check_branch
          %779 = sbr.rel (%p777) target = $region112
        $region111: #{transformer_classification_forward.1} parent=87 // pred_region
          %781 = dma.done %s773, 1024
        $region112: #{transformer_classification_forward.1} parent=87 // pred_fallthru
          _
        %s782 = sand.u32 %s40, 1
        %s783 = scalar_lea.sflag [#allocation12], %s782
        %s784 = sand.u32 %s284, 1
        %s785 = smul.addr %s784, 1024
        %s786 = scalar_lea.vmem [#allocation13], %s785
        // Predicated region
        $region113: #{transformer_classification_forward.1} parent=87 // pred_check
          %p787 = pneg %p297
        $region114: #{transformer_classification_forward.1} parent=87 // pred_check_branch
          %789 = sbr.rel (%p787) target = $region116
        $region115: #{transformer_classification_forward.1} parent=87 // pred_region
          %791 = dma.done %s783, 16384
        $region116: #{transformer_classification_forward.1} parent=87 // pred_fallthru
          _
        %s792 = sand.u32 %s40, 1
        %s793 = scalar_lea.sflag [#allocation15], %s792
        %s794 = sand.u32 %s310, 1
        %s795 = smul.addr %s794, 16
        %s796 = scalar_lea.vmem [#allocation14], %s795
        // Predicated region
        $region117: #{transformer_classification_forward.1} parent=87 // pred_check
          %p797 = pneg %p323
        $region118: #{transformer_classification_forward.1} parent=87 // pred_check_branch
          %799 = sbr.rel (%p797) target = $region120
        $region119: #{transformer_classification_forward.1} parent=87 // pred_region
          %801 = dma.done %s793, 256
        $region120: #{transformer_classification_forward.1} parent=87 // pred_fallthru
          _
        %s802 = sand.u32 %s40, 1
        %s803 = scalar_lea.sflag [#allocation15], %s802
        %s804 = sand.u32 %s336, 1
        %s805 = smul.addr %s804, 1024
        %s806 = scalar_lea.vmem [#allocation16], %s805
        // Predicated region
        $region121: #{transformer_classification_forward.1} parent=87 // pred_check
          %p807 = pneg %p349
        $region122: #{transformer_classification_forward.1} parent=87 // pred_check_branch
          %809 = sbr.rel (%p807) target = $region124
        $region123: #{transformer_classification_forward.1} parent=87 // pred_region
          %811 = dma.done %s803, 16384
        $region124: #{transformer_classification_forward.1} parent=87 // pred_fallthru
          _
        // Predicated region
        $region125: #{transformer_classification_forward.1} parent=87 // pred_check
          %p812 = pneg %p448
        $region126: #{transformer_classification_forward.1} parent=87 // pred_check_branch
          %814 = sbr.rel (%p812) target = $region128
        $region127: #{transformer_classification_forward.1} parent=87 // pred_region
          %816 = dma.done [#allocation18], 1024
        $region128: #{transformer_classification_forward.1} parent=87 // pred_fallthru
          _
        %p817 = pneg %p73
        %p818 = pneg %p70
        %p819 = pneg %p94
        %p820 = pneg %p91
        %p821 = pneg %p115
        %p822 = pneg %p112
        %s823 = sand.u32 %s40, 1
        %s824 = scalar_lea.sflag [#allocation9], %s823
        %s825 = sand.u32 %s128, 1
        %s826 = smul.addr %s825, 64
        %s827 = scalar_lea.vmem [#allocation8], %s826
        %p828 = pneg %p141
        %p829 = pneg %p138
        %s830 = sand.u32 %s40, 1
        %s831 = scalar_lea.sflag [#allocation9], %s830
        %s832 = sand.u32 %s154, 1
        %s833 = scalar_lea.vmem [#allocation10], %s832
        %p834 = pneg %p167
        %p835 = pneg %p164
        %s836 = sand.u32 %s40, 1
        %s837 = scalar_lea.sflag [#allocation12], %s836
        %s838 = sand.u32 %s180, 1
        %s839 = smul.addr %s838, 64
        %s840 = scalar_lea.vmem [#allocation11], %s839
        %p841 = pneg %p193
        %p842 = pneg %p190
        %p843 = scmp.lt.s32.totalorder %s45, 1
        %s844 = scalar_select %p843, %s45, 1
        %s845 = scalar_lea.vmem %s6, %s844
        %p846 = pneg %p219
        %p847 = pneg %p216
        %p848 = scmp.lt.s32.totalorder %s45, 1
        %s849 = scalar_select %p848, %s45, 1
        %s850 = scalar_lea.vmem %s7, %s849
        %p851 = pneg %p245
        %p852 = pneg %p242
        %p853 = scmp.lt.s32.totalorder %s45, 1
        %s854 = scalar_select %p853, %s45, 1
        %s855 = scalar_lea.vmem %s8, %s854
        %p856 = pneg %p271
        %p857 = pneg %p268
        %s858 = sand.u32 %s40, 1
        %s859 = scalar_lea.sflag [#allocation12], %s858
        %s860 = sand.u32 %s284, 1
        %s861 = smul.addr %s860, 1024
        %s862 = scalar_lea.vmem [#allocation13], %s861
        %p863 = pneg %p297
        %p864 = pneg %p294
        %s865 = sand.u32 %s40, 1
        %s866 = scalar_lea.sflag [#allocation15], %s865
        %s867 = sand.u32 %s310, 1
        %s868 = smul.addr %s867, 16
        %s869 = scalar_lea.vmem [#allocation14], %s868
        %p870 = pneg %p323
        %p871 = pneg %p320
        %s872 = sand.u32 %s40, 1
        %s873 = scalar_lea.sflag [#allocation15], %s872
        %s874 = sand.u32 %s336, 1
        %s875 = smul.addr %s874, 1024
        %s876 = scalar_lea.vmem [#allocation16], %s875
        %p877 = pneg %p349
        %p878 = pneg %p346
        %p879 = scmp.lt.s32.totalorder %s45, 1
        %s880 = scalar_select %p879, %s45, 1
        %s881 = scalar_lea.vmem %s12, %s880
        %p882 = pneg %p375
        %p883 = pneg %p372
        %p884 = scmp.lt.s32.totalorder %s45, 1
        %s885 = scalar_select %p884, %s45, 1
        %s886 = scalar_lea.vmem %s13, %s885
        %p887 = pneg %p401
        %p888 = pneg %p398
        %p889 = scmp.lt.s32.totalorder %s45, 1
        %s890 = scalar_select %p889, %s45, 1
        %s891 = scalar_lea.vmem %s14, %s890
        %p892 = pneg %p427
        %p893 = pneg %p424
        %p894 = pneg %p448
        %p895 = pneg %p445
        %p896 = pneg %p469
        %p897 = pneg %p466
        %p898 = pneg %p495
        %p899 = pneg %p492
        %p900 = scmp.lt.s32.totalorder %s44, 0
        %s901 = scalar_select %p900, %s44, 0
        %s902 = smul.addr %s901, 8
        %s903 = scalar_lea.vmem %s17, %s902
        %p904 = scmp.lt.s32.totalorder %s45, 1
        %s905 = scalar_select %p904, %s45, 1
        %s906 = scalar_lea.vmem %s6, %s905
        %p907 = scmp.lt.s32.totalorder %s45, 1
        %s908 = scalar_select %p907, %s45, 1
        %s909 = scalar_lea.vmem %s7, %s908
        %p910 = scmp.lt.s32.totalorder %s45, 1
        %s911 = scalar_select %p910, %s45, 1
        %s912 = scalar_lea.vmem %s8, %s911
        %p913 = scmp.lt.s32.totalorder %s45, 1
        %s914 = scalar_select %p913, %s45, 1
        %s915 = scalar_lea.vmem %s12, %s914
        %p916 = scmp.lt.s32.totalorder %s45, 1
        %s917 = scalar_select %p916, %s45, 1
        %s918 = scalar_lea.vmem %s13, %s917
        %p919 = scmp.lt.s32.totalorder %s45, 1
        %s920 = scalar_select %p919, %s45, 1
        %s921 = scalar_lea.vmem %s14, %s920
        %p922 = scmp.lt.s32.totalorder %s44, 0
        %s923 = scalar_select %p922, %s44, 0
        %s924 = smul.addr %s923, 8
        %s925 = scalar_lea.vmem %s17, %s924
        %v927 = vlaneseq
        %v928 = vand.u32 %v927, 127
        %vm929 = vcmp.lt.s32.totalorder %v928, 32
        %p930 = scmp.eq.s32.totalorder %s45, 0
        // Predicated region
        $region129: #{transformer_classification_forward.1} parent=87 // pred_check
          %p931 = pneg %p930
        $region130: #{transformer_classification_forward.1} parent=87 // pred_check_branch
          %933 = sbr.rel (%p931) target = $region132
        $region131: #{transformer_classification_forward.1} parent=87 // pred_region
          %v934 = vld [vmem:[#allocation3] sm:$0xff]
          %v935 = vpack.c.bf16 %v934, %v934
          %v936 = vld [vmem:[#allocation5] sm:$0xf]
          %v937 = vld [vmem:[#allocation5 + $0x4] sm:$0xf]
          %v938 = vld [vmem:[#allocation7] sm:$0x1]
          %v940 = vperm.slane %v938, 0
          %v944 = vunpack.c.l.b16 %v936
          %v945 = vunpack.c.l.b16 %v937
          %v946 = vpack.c.b16 %v945, %v944
          %vm948 = vcmask 130048
          %v950 = vsel %vm948, %v935, 0
          %952 = vmatpush.bf16.msra.mxu0 0
          %953 = vmatpush.bf16.msra.mxu0 0
          %954 = vmatpush.bf16.msra.mxu0 0
          %955 = vmatpush.bf16.msra.mxu0 0
          %956 = vmatpush.bf16.msra.mxu0 0
          %957 = vmatpush.bf16.msra.mxu0 0
          %958 = vmatpush.bf16.msra.mxu0 0
          %959 = vmatpush.bf16.msra.mxu0 %v946
          %960 = vmatmul.bf16.gmra.mxu0 %v950
          %v961 = vpop.f32.mrf.mxu0
          %v962 = vadd.f32 %v940, %v961
          %v963 = vpop.f32.mrf.mxu0
          %964 = vdwg.mxu0
          %965 = vst [vmem:[#allocation2] sm:$0xff] %v962
        $region132: #{transformer_classification_forward.1} parent=87 // pred_fallthru
          _
        %v966 = vld [vmem:[#allocation2] sm:$0xff]
        %v967 = vpack.c.bf16 %v966, %v966
        %v968 = vld [vmem:[%s757] sm:$0xf]
        %v969 = vld [vmem:[%s757 + $0x4] sm:$0xf]
        %v970 = vld [vmem:[%s757 + $0x8] sm:$0xf]
        %v971 = vld [vmem:[%s757 + $0xc] sm:$0xf]
        %v972 = vld [vmem:[%s757 + $0x10] sm:$0xf]
        %v973 = vld [vmem:[%s757 + $0x14] sm:$0xf]
        %v974 = vld [vmem:[%s757 + $0x18] sm:$0xf]
        %v975 = vld [vmem:[%s757 + $0x1c] sm:$0xf]
        %v976 = vld [vmem:[%s757 + $0x20] sm:$0xf]
        %v977 = vld [vmem:[%s757 + $0x24] sm:$0xf]
        %v978 = vld [vmem:[%s757 + $0x28] sm:$0xf]
        %v979 = vld [vmem:[%s757 + $0x2c] sm:$0xf]
        %v980 = vld [vmem:[%s757 + $0x30] sm:$0xf]
        %v981 = vld [vmem:[%s757 + $0x34] sm:$0xf]
        %v982 = vld [vmem:[%s757 + $0x38] sm:$0xf]
        %v983 = vld [vmem:[%s757 + $0x3c] sm:$0xf]
        %v984 = vld [vmem:[%s766] sm:$0x1]
        %v986 = vperm.slane %v984, 0
        %v1004 = vunpack.c.l.b16 %v968
        %v1005 = vunpack.c.l.b16 %v969
        %v1006 = vunpack.c.l.b16 %v970
        %v1007 = vunpack.c.l.b16 %v971
        %v1008 = vunpack.c.l.b16 %v972
        %v1009 = vunpack.c.l.b16 %v973
        %v1010 = vunpack.c.l.b16 %v974
        %v1011 = vunpack.c.l.b16 %v975
        %v1012 = vunpack.c.l.b16 %v976
        %v1013 = vunpack.c.l.b16 %v977
        %v1014 = vunpack.c.l.b16 %v978
        %v1015 = vunpack.c.l.b16 %v979
        %v1016 = vunpack.c.l.b16 %v980
        %v1017 = vunpack.c.l.b16 %v981
        %v1018 = vunpack.c.l.b16 %v982
        %v1019 = vunpack.c.l.b16 %v983
        %v1020 = vpack.c.b16 %v1005, %v1004
        %v1021 = vpack.c.b16 %v1007, %v1006
        %v1022 = vpack.c.b16 %v1009, %v1008
        %v1023 = vpack.c.b16 %v1011, %v1010
        %v1024 = vpack.c.b16 %v1013, %v1012
        %v1025 = vpack.c.b16 %v1015, %v1014
        %v1026 = vpack.c.b16 %v1017, %v1016
        %v1027 = vpack.c.b16 %v1019, %v1018
        %1036 = vmatpush.bf16.msra.mxu0 %v1027
        %1037 = vmatpush.bf16.msra.mxu0 %v1026
        %1038 = vmatpush.bf16.msra.mxu0 %v1025
        %1039 = vmatpush.bf16.msra.mxu0 %v1024
        %1040 = vmatpush.bf16.msra.mxu0 %v1023
        %1041 = vmatpush.bf16.msra.mxu0 %v1022
        %1042 = vmatpush.bf16.msra.mxu0 %v1021
        %1043 = vmatpush.bf16.msra.mxu0 %v1020
        %1044 = vmatmul.bf16.gmra.mxu0 %v967
        %v1045 = vpop.f32.mrf.mxu0
        %v1046 = vadd.f32 %v986, %v1045
        %v1047 = vpop.f32.mrf.mxu0
        %1048 = vdwg.mxu0
        %v1049 = vpack.c.bf16 %v1046, %v1046
        %v1050 = vld [vmem:[%s776] sm:$0xf]
        %v1051 = vld [vmem:[%s776 + $0x4] sm:$0xf]
        %v1052 = vld [vmem:[%s776 + $0x8] sm:$0xf]
        %v1053 = vld [vmem:[%s776 + $0xc] sm:$0xf]
        %v1054 = vld [vmem:[%s776 + $0x10] sm:$0xf]
        %v1055 = vld [vmem:[%s776 + $0x14] sm:$0xf]
        %v1056 = vld [vmem:[%s776 + $0x18] sm:$0xf]
        %v1057 = vld [vmem:[%s776 + $0x1c] sm:$0xf]
        %v1058 = vld [vmem:[%s776 + $0x20] sm:$0xf]
        %v1059 = vld [vmem:[%s776 + $0x24] sm:$0xf]
        %v1060 = vld [vmem:[%s776 + $0x28] sm:$0xf]
        %v1061 = vld [vmem:[%s776 + $0x2c] sm:$0xf]
        %v1062 = vld [vmem:[%s776 + $0x30] sm:$0xf]
        %v1063 = vld [vmem:[%s776 + $0x34] sm:$0xf]
        %v1064 = vld [vmem:[%s776 + $0x38] sm:$0xf]
        %v1065 = vld [vmem:[%s776 + $0x3c] sm:$0xf]
        %v1066 = vld [vmem:[%s906] sm:$0x1]
        %v1068 = vperm.slane %v1066, 0
        %v1086 = vunpack.c.l.b16 %v1050
        %v1087 = vunpack.c.l.b16 %v1051
        %v1088 = vunpack.c.l.b16 %v1052
        %v1089 = vunpack.c.l.b16 %v1053
        %v1090 = vunpack.c.l.b16 %v1054
        %v1091 = vunpack.c.l.b16 %v1055
        %v1092 = vunpack.c.l.b16 %v1056
        %v1093 = vunpack.c.l.b16 %v1057
        %v1094 = vunpack.c.l.b16 %v1058
        %v1095 = vunpack.c.l.b16 %v1059
        %v1096 = vunpack.c.l.b16 %v1060
        %v1097 = vunpack.c.l.b16 %v1061
        %v1098 = vunpack.c.l.b16 %v1062
        %v1099 = vunpack.c.l.b16 %v1063
        %v1100 = vunpack.c.l.b16 %v1064
        %v1101 = vunpack.c.l.b16 %v1065
        %v1102 = vpack.c.b16 %v1087, %v1086
        %v1103 = vpack.c.b16 %v1089, %v1088
        %v1104 = vpack.c.b16 %v1091, %v1090
        %v1105 = vpack.c.b16 %v1093, %v1092
        %v1106 = vpack.c.b16 %v1095, %v1094
        %v1107 = vpack.c.b16 %v1097, %v1096
        %v1108 = vpack.c.b16 %v1099, %v1098
        %v1109 = vpack.c.b16 %v1101, %v1100
        %1118 = vmatpush.bf16.msra.mxu0 %v1109
        %1119 = vmatpush.bf16.msra.mxu0 %v1108
        %1120 = vmatpush.bf16.msra.mxu0 %v1107
        %1121 = vmatpush.bf16.msra.mxu0 %v1106
        %1122 = vmatpush.bf16.msra.mxu0 %v1105
        %1123 = vmatpush.bf16.msra.mxu0 %v1104
        %1124 = vmatpush.bf16.msra.mxu0 %v1103
        %1125 = vmatpush.bf16.msra.mxu0 %v1102
        %1126 = vmatmul.bf16.gmra.mxu0 %v1049
        %v1127 = vpop.f32.mrf.mxu0
        %v1128 = vadd.f32 %v1068, %v1127
        %v1129 = vpop.f32.mrf.mxu0
        %1130 = vdwg.mxu0
        %v1131 = vadd.f32 %v966, %v1128
        %v1132 = vld [vmem:[%s909] sm:$0x1]
        %v1133 = vld [vmem:[%s912] sm:$0x1]
        %1134 = vadd.xlane.f32.xlu0 %v1131
        %v1135 = vpop.xlane.xlu0 %1134
        %v1136 = vmul.f32 %v1135, 0.03125
        %v1137 = vsub.f32 %v1131, %v1136
        %v1138 = vsel %vm929, 1, 0
        %vm1139 = vcmp.eq.s32.totalorder %v1138, 1
        %v1140 = vsel %vm1139, %v1137, 0.0
        %v1141 = vmul.f32 %v1140, %v1140
        %1142 = vadd.xlane.f32.xlu0 %v1141
        %v1143 = vpop.xlane.xlu0 %1142
        %v1144 = vmul.f32 %v1143, 0.03125
        %v1145 = vadd.f32 %v1144, 1e-05
        %v1146 = vrsqrt.pop %v1145
        %v1147 = vmul.f32 %v1146, %v1145
        %v1148 = vmul.f32 %v1147, %v1146
        %v1149 = vmul.f32 0.5, %v1148
        %v1150 = vsub.f32 1.5, %v1149
        %v1151 = vmul.f32 %v1146, %v1150
        %vm1152 = vweird.f32 %v1145
        %vm1153 = vweird.f32 %v1146
        %vm1154 = vmor %vm1152, %vm1153
        %v1155 = vsel %vm1154, %v1146, %v1151
        %v1156 = vmul.f32 %v1140, %v1155
        %v1158 = vperm.slane %v1132, 0
        %v1160 = vmul.f32 %v1156, %v1158
        %v1162 = vperm.slane %v1133, 0
        %v1164 = vadd.f32 %v1160, %v1162
        %v1165 = vpack.c.bf16 %v1164, %v1164
        %v1166 = vld [vmem:[%s786] sm:$0xff]
        %v1167 = vld [vmem:[%s786 + $0x8] sm:$0xff]
        %v1168 = vld [vmem:[%s786 + $0x10] sm:$0xff]
        %v1169 = vld [vmem:[%s786 + $0x18] sm:$0xff]
        %v1170 = vld [vmem:[%s786 + $0x20] sm:$0xff]
        %v1171 = vld [vmem:[%s786 + $0x28] sm:$0xff]
        %v1172 = vld [vmem:[%s786 + $0x30] sm:$0xff]
        %v1173 = vld [vmem:[%s786 + $0x38] sm:$0xff]
        %v1174 = vld [vmem:[%s786 + $0x40] sm:$0xff]
        %v1175 = vld [vmem:[%s786 + $0x48] sm:$0xff]
        %v1176 = vld [vmem:[%s786 + $0x50] sm:$0xff]
        %v1177 = vld [vmem:[%s786 + $0x58] sm:$0xff]
        %v1178 = vld [vmem:[%s786 + $0x60] sm:$0xff]
        %v1179 = vld [vmem:[%s786 + $0x68] sm:$0xff]
        %v1180 = vld [vmem:[%s786 + $0x70] sm:$0xff]
        %v1181 = vld [vmem:[%s786 + $0x78] sm:$0xff]
        %v1182 = vld [vmem:[%s786 + $0x80] sm:$0xff]
        %v1183 = vld [vmem:[%s786 + $0x88] sm:$0xff]
        %v1184 = vld [vmem:[%s786 + $0x90] sm:$0xff]
        %v1185 = vld [vmem:[%s786 + $0x98] sm:$0xff]
        %v1186 = vld [vmem:[%s786 + $0xa0] sm:$0xff]
        %v1187 = vld [vmem:[%s786 + $0xa8] sm:$0xff]
        %v1188 = vld [vmem:[%s786 + $0xb0] sm:$0xff]
        %v1189 = vld [vmem:[%s786 + $0xb8] sm:$0xff]
        %v1190 = vld [vmem:[%s786 + $0xc0] sm:$0xff]
        %v1191 = vld [vmem:[%s786 + $0xc8] sm:$0xff]
        %v1192 = vld [vmem:[%s786 + $0xd0] sm:$0xff]
        %v1193 = vld [vmem:[%s786 + $0xd8] sm:$0xff]
        %v1194 = vld [vmem:[%s786 + $0xe0] sm:$0xff]
        %v1195 = vld [vmem:[%s786 + $0xe8] sm:$0xff]
        %v1196 = vld [vmem:[%s786 + $0xf0] sm:$0xff]
        %v1197 = vld [vmem:[%s786 + $0xf8] sm:$0xff]
        %v1198 = vld [vmem:[%s786 + $0x100] sm:$0xff]
        %v1199 = vld [vmem:[%s786 + $0x108] sm:$0xff]
        %v1200 = vld [vmem:[%s786 + $0x110] sm:$0xff]
        %v1201 = vld [vmem:[%s786 + $0x118] sm:$0xff]
        %v1202 = vld [vmem:[%s786 + $0x120] sm:$0xff]
        %v1203 = vld [vmem:[%s786 + $0x128] sm:$0xff]
        %v1204 = vld [vmem:[%s786 + $0x130] sm:$0xff]
        %v1205 = vld [vmem:[%s786 + $0x138] sm:$0xff]
        %v1206 = vld [vmem:[%s786 + $0x140] sm:$0xff]
        %v1207 = vld [vmem:[%s786 + $0x148] sm:$0xff]
        %v1208 = vld [vmem:[%s786 + $0x150] sm:$0xff]
        %v1209 = vld [vmem:[%s786 + $0x158] sm:$0xff]
        %v1210 = vld [vmem:[%s786 + $0x160] sm:$0xff]
        %v1211 = vld [vmem:[%s786 + $0x168] sm:$0xff]
        %v1212 = vld [vmem:[%s786 + $0x170] sm:$0xff]
        %v1213 = vld [vmem:[%s786 + $0x178] sm:$0xff]
        %v1214 = vld [vmem:[%s786 + $0x180] sm:$0xff]
        %v1215 = vld [vmem:[%s786 + $0x188] sm:$0xff]
        %v1216 = vld [vmem:[%s786 + $0x190] sm:$0xff]
        %v1217 = vld [vmem:[%s786 + $0x198] sm:$0xff]
        %v1218 = vld [vmem:[%s786 + $0x1a0] sm:$0xff]
        %v1219 = vld [vmem:[%s786 + $0x1a8] sm:$0xff]
        %v1220 = vld [vmem:[%s786 + $0x1b0] sm:$0xff]
        %v1221 = vld [vmem:[%s786 + $0x1b8] sm:$0xff]
        %v1222 = vld [vmem:[%s786 + $0x1c0] sm:$0xff]
        %v1223 = vld [vmem:[%s786 + $0x1c8] sm:$0xff]
        %v1224 = vld [vmem:[%s786 + $0x1d0] sm:$0xff]
        %v1225 = vld [vmem:[%s786 + $0x1d8] sm:$0xff]
        %v1226 = vld [vmem:[%s786 + $0x1e0] sm:$0xff]
        %v1227 = vld [vmem:[%s786 + $0x1e8] sm:$0xff]
        %v1228 = vld [vmem:[%s786 + $0x1f0] sm:$0xff]
        %v1229 = vld [vmem:[%s786 + $0x1f8] sm:$0xff]
        %v1230 = vld [vmem:[%s786 + $0x200] sm:$0xff]
        %v1231 = vld [vmem:[%s786 + $0x208] sm:$0xff]
        %v1232 = vld [vmem:[%s786 + $0x210] sm:$0xff]
        %v1233 = vld [vmem:[%s786 + $0x218] sm:$0xff]
        %v1234 = vld [vmem:[%s786 + $0x220] sm:$0xff]
        %v1235 = vld [vmem:[%s786 + $0x228] sm:$0xff]
        %v1236 = vld [vmem:[%s786 + $0x230] sm:$0xff]
        %v1237 = vld [vmem:[%s786 + $0x238] sm:$0xff]
        %v1238 = vld [vmem:[%s786 + $0x240] sm:$0xff]
        %v1239 = vld [vmem:[%s786 + $0x248] sm:$0xff]
        %v1240 = vld [vmem:[%s786 + $0x250] sm:$0xff]
        %v1241 = vld [vmem:[%s786 + $0x258] sm:$0xff]
        %v1242 = vld [vmem:[%s786 + $0x260] sm:$0xff]
        %v1243 = vld [vmem:[%s786 + $0x268] sm:$0xff]
        %v1244 = vld [vmem:[%s786 + $0x270] sm:$0xff]
        %v1245 = vld [vmem:[%s786 + $0x278] sm:$0xff]
        %v1246 = vld [vmem:[%s786 + $0x280] sm:$0xff]
        %v1247 = vld [vmem:[%s786 + $0x288] sm:$0xff]
        %v1248 = vld [vmem:[%s786 + $0x290] sm:$0xff]
        %v1249 = vld [vmem:[%s786 + $0x298] sm:$0xff]
        %v1250 = vld [vmem:[%s786 + $0x2a0] sm:$0xff]
        %v1251 = vld [vmem:[%s786 + $0x2a8] sm:$0xff]
        %v1252 = vld [vmem:[%s786 + $0x2b0] sm:$0xff]
        %v1253 = vld [vmem:[%s786 + $0x2b8] sm:$0xff]
        %v1254 = vld [vmem:[%s786 + $0x2c0] sm:$0xff]
        %v1255 = vld [vmem:[%s786 + $0x2c8] sm:$0xff]
        %v1256 = vld [vmem:[%s786 + $0x2d0] sm:$0xff]
        %v1257 = vld [vmem:[%s786 + $0x2d8] sm:$0xff]
        %v1258 = vld [vmem:[%s786 + $0x2e0] sm:$0xff]
        %v1259 = vld [vmem:[%s786 + $0x2e8] sm:$0xff]
        %v1260 = vld [vmem:[%s786 + $0x2f0] sm:$0xff]
        %v1261 = vld [vmem:[%s786 + $0x2f8] sm:$0xff]
        %v1262 = vld [vmem:[%s786 + $0x300] sm:$0xff]
        %v1263 = vld [vmem:[%s786 + $0x308] sm:$0xff]
        %v1264 = vld [vmem:[%s786 + $0x310] sm:$0xff]
        %v1265 = vld [vmem:[%s786 + $0x318] sm:$0xff]
        %v1266 = vld [vmem:[%s786 + $0x320] sm:$0xff]
        %v1267 = vld [vmem:[%s786 + $0x328] sm:$0xff]
        %v1268 = vld [vmem:[%s786 + $0x330] sm:$0xff]
        %v1269 = vld [vmem:[%s786 + $0x338] sm:$0xff]
        %v1270 = vld [vmem:[%s786 + $0x340] sm:$0xff]
        %v1271 = vld [vmem:[%s786 + $0x348] sm:$0xff]
        %v1272 = vld [vmem:[%s786 + $0x350] sm:$0xff]
        %v1273 = vld [vmem:[%s786 + $0x358] sm:$0xff]
        %v1274 = vld [vmem:[%s786 + $0x360] sm:$0xff]
        %v1275 = vld [vmem:[%s786 + $0x368] sm:$0xff]
        %v1276 = vld [vmem:[%s786 + $0x370] sm:$0xff]
        %v1277 = vld [vmem:[%s786 + $0x378] sm:$0xff]
        %v1278 = vld [vmem:[%s786 + $0x380] sm:$0xff]
        %v1279 = vld [vmem:[%s786 + $0x388] sm:$0xff]
        %v1280 = vld [vmem:[%s786 + $0x390] sm:$0xff]
        %v1281 = vld [vmem:[%s786 + $0x398] sm:$0xff]
        %v1282 = vld [vmem:[%s786 + $0x3a0] sm:$0xff]
        %v1283 = vld [vmem:[%s786 + $0x3a8] sm:$0xff]
        %v1284 = vld [vmem:[%s786 + $0x3b0] sm:$0xff]
        %v1285 = vld [vmem:[%s786 + $0x3b8] sm:$0xff]
        %v1286 = vld [vmem:[%s786 + $0x3c0] sm:$0xff]
        %v1287 = vld [vmem:[%s786 + $0x3c8] sm:$0xff]
        %v1288 = vld [vmem:[%s786 + $0x3d0] sm:$0xff]
        %v1289 = vld [vmem:[%s786 + $0x3d8] sm:$0xff]
        %v1290 = vld [vmem:[%s786 + $0x3e0] sm:$0xff]
        %v1291 = vld [vmem:[%s786 + $0x3e8] sm:$0xff]
        %v1292 = vld [vmem:[%s786 + $0x3f0] sm:$0xff]
        %v1293 = vld [vmem:[%s786 + $0x3f8] sm:$0xff]
        %v1294 = vld [vmem:[%s796] sm:$0xff]
        %v1295 = vld [vmem:[%s796 + $0x8] sm:$0xff]
        %v1298 = vperm.slane %v1294, 0
        %v1299 = vperm.slane %v1294, 1
        %v1300 = vperm.slane %v1294, 2
        %v1301 = vperm.slane %v1294, 3
        %v1302 = vperm.slane %v1294, 4
        %v1303 = vperm.slane %v1294, 5
        %v1304 = vperm.slane %v1294, 6
        %v1305 = vperm.slane %v1294, 7
        %v1306 = vperm.slane %v1295, 0
        %v1307 = vperm.slane %v1295, 1
        %v1308 = vperm.slane %v1295, 2
        %v1309 = vperm.slane %v1295, 3
        %v1310 = vperm.slane %v1295, 4
        %v1311 = vperm.slane %v1295, 5
        %v1312 = vperm.slane %v1295, 6
        %v1313 = vperm.slane %v1295, 7
        %v1458 = vunpack.c.l.b16 %v1166
        %v1459 = vunpack.c.h.b16 %v1166
        %v1460 = vunpack.c.l.b16 %v1167
        %v1461 = vunpack.c.h.b16 %v1167
        %v1462 = vunpack.c.l.b16 %v1168
        %v1463 = vunpack.c.h.b16 %v1168
        %v1464 = vunpack.c.l.b16 %v1169
        %v1465 = vunpack.c.h.b16 %v1169
        %v1466 = vunpack.c.l.b16 %v1170
        %v1467 = vunpack.c.h.b16 %v1170
        %v1468 = vunpack.c.l.b16 %v1171
        %v1469 = vunpack.c.h.b16 %v1171
        %v1470 = vunpack.c.l.b16 %v1172
        %v1471 = vunpack.c.h.b16 %v1172
        %v1472 = vunpack.c.l.b16 %v1173
        %v1473 = vunpack.c.h.b16 %v1173
        %v1474 = vunpack.c.l.b16 %v1174
        %v1475 = vunpack.c.h.b16 %v1174
        %v1476 = vunpack.c.l.b16 %v1175
        %v1477 = vunpack.c.h.b16 %v1175
        %v1478 = vunpack.c.l.b16 %v1176
        %v1479 = vunpack.c.h.b16 %v1176
        %v1480 = vunpack.c.l.b16 %v1177
        %v1481 = vunpack.c.h.b16 %v1177
        %v1482 = vunpack.c.l.b16 %v1178
        %v1483 = vunpack.c.h.b16 %v1178
        %v1484 = vunpack.c.l.b16 %v1179
        %v1485 = vunpack.c.h.b16 %v1179
        %v1486 = vunpack.c.l.b16 %v1180
        %v1487 = vunpack.c.h.b16 %v1180
        %v1488 = vunpack.c.l.b16 %v1181
        %v1489 = vunpack.c.h.b16 %v1181
        %v1490 = vunpack.c.l.b16 %v1182
        %v1491 = vunpack.c.h.b16 %v1182
        %v1492 = vunpack.c.l.b16 %v1183
        %v1493 = vunpack.c.h.b16 %v1183
        %v1494 = vunpack.c.l.b16 %v1184
        %v1495 = vunpack.c.h.b16 %v1184
        %v1496 = vunpack.c.l.b16 %v1185
        %v1497 = vunpack.c.h.b16 %v1185
        %v1498 = vunpack.c.l.b16 %v1186
        %v1499 = vunpack.c.h.b16 %v1186
        %v1500 = vunpack.c.l.b16 %v1187
        %v1501 = vunpack.c.h.b16 %v1187
        %v1502 = vunpack.c.l.b16 %v1188
        %v1503 = vunpack.c.h.b16 %v1188
        %v1504 = vunpack.c.l.b16 %v1189
        %v1505 = vunpack.c.h.b16 %v1189
        %v1506 = vunpack.c.l.b16 %v1190
        %v1507 = vunpack.c.h.b16 %v1190
        %v1508 = vunpack.c.l.b16 %v1191
        %v1509 = vunpack.c.h.b16 %v1191
        %v1510 = vunpack.c.l.b16 %v1192
        %v1511 = vunpack.c.h.b16 %v1192
        %v1512 = vunpack.c.l.b16 %v1193
        %v1513 = vunpack.c.h.b16 %v1193
        %v1514 = vunpack.c.l.b16 %v1194
        %v1515 = vunpack.c.h.b16 %v1194
        %v1516 = vunpack.c.l.b16 %v1195
        %v1517 = vunpack.c.h.b16 %v1195
        %v1518 = vunpack.c.l.b16 %v1196
        %v1519 = vunpack.c.h.b16 %v1196
        %v1520 = vunpack.c.l.b16 %v1197
        %v1521 = vunpack.c.h.b16 %v1197
        %v1522 = vunpack.c.l.b16 %v1198
        %v1523 = vunpack.c.h.b16 %v1198
        %v1524 = vunpack.c.l.b16 %v1199
        %v1525 = vunpack.c.h.b16 %v1199
        %v1526 = vunpack.c.l.b16 %v1200
        %v1527 = vunpack.c.h.b16 %v1200
        %v1528 = vunpack.c.l.b16 %v1201
        %v1529 = vunpack.c.h.b16 %v1201
        %v1530 = vunpack.c.l.b16 %v1202
        %v1531 = vunpack.c.h.b16 %v1202
        %v1532 = vunpack.c.l.b16 %v1203
        %v1533 = vunpack.c.h.b16 %v1203
        %v1534 = vunpack.c.l.b16 %v1204
        %v1535 = vunpack.c.h.b16 %v1204
        %v1536 = vunpack.c.l.b16 %v1205
        %v1537 = vunpack.c.h.b16 %v1205
        %v1538 = vunpack.c.l.b16 %v1206
        %v1539 = vunpack.c.h.b16 %v1206
        %v1540 = vunpack.c.l.b16 %v1207
        %v1541 = vunpack.c.h.b16 %v1207
        %v1542 = vunpack.c.l.b16 %v1208
        %v1543 = vunpack.c.h.b16 %v1208
        %v1544 = vunpack.c.l.b16 %v1209
        %v1545 = vunpack.c.h.b16 %v1209
        %v1546 = vunpack.c.l.b16 %v1210
        %v1547 = vunpack.c.h.b16 %v1210
        %v1548 = vunpack.c.l.b16 %v1211
        %v1549 = vunpack.c.h.b16 %v1211
        %v1550 = vunpack.c.l.b16 %v1212
        %v1551 = vunpack.c.h.b16 %v1212
        %v1552 = vunpack.c.l.b16 %v1213
        %v1553 = vunpack.c.h.b16 %v1213
        %v1554 = vunpack.c.l.b16 %v1214
        %v1555 = vunpack.c.h.b16 %v1214
        %v1556 = vunpack.c.l.b16 %v1215
        %v1557 = vunpack.c.h.b16 %v1215
        %v1558 = vunpack.c.l.b16 %v1216
        %v1559 = vunpack.c.h.b16 %v1216
        %v1560 = vunpack.c.l.b16 %v1217
        %v1561 = vunpack.c.h.b16 %v1217
        %v1562 = vunpack.c.l.b16 %v1218
        %v1563 = vunpack.c.h.b16 %v1218
        %v1564 = vunpack.c.l.b16 %v1219
        %v1565 = vunpack.c.h.b16 %v1219
        %v1566 = vunpack.c.l.b16 %v1220
        %v1567 = vunpack.c.h.b16 %v1220
        %v1568 = vunpack.c.l.b16 %v1221
        %v1569 = vunpack.c.h.b16 %v1221
        %v1570 = vunpack.c.l.b16 %v1222
        %v1571 = vunpack.c.h.b16 %v1222
        %v1572 = vunpack.c.l.b16 %v1223
        %v1573 = vunpack.c.h.b16 %v1223
        %v1574 = vunpack.c.l.b16 %v1224
        %v1575 = vunpack.c.h.b16 %v1224
        %v1576 = vunpack.c.l.b16 %v1225
        %v1577 = vunpack.c.h.b16 %v1225
        %v1578 = vunpack.c.l.b16 %v1226
        %v1579 = vunpack.c.h.b16 %v1226
        %v1580 = vunpack.c.l.b16 %v1227
        %v1581 = vunpack.c.h.b16 %v1227
        %v1582 = vunpack.c.l.b16 %v1228
        %v1583 = vunpack.c.h.b16 %v1228
        %v1584 = vunpack.c.l.b16 %v1229
        %v1585 = vunpack.c.h.b16 %v1229
        %v1586 = vunpack.c.l.b16 %v1230
        %v1587 = vunpack.c.h.b16 %v1230
        %v1588 = vunpack.c.l.b16 %v1231
        %v1589 = vunpack.c.h.b16 %v1231
        %v1590 = vunpack.c.l.b16 %v1232
        %v1591 = vunpack.c.h.b16 %v1232
        %v1592 = vunpack.c.l.b16 %v1233
        %v1593 = vunpack.c.h.b16 %v1233
        %v1594 = vunpack.c.l.b16 %v1234
        %v1595 = vunpack.c.h.b16 %v1234
        %v1596 = vunpack.c.l.b16 %v1235
        %v1597 = vunpack.c.h.b16 %v1235
        %v1598 = vunpack.c.l.b16 %v1236
        %v1599 = vunpack.c.h.b16 %v1236
        %v1600 = vunpack.c.l.b16 %v1237
        %v1601 = vunpack.c.h.b16 %v1237
        %v1602 = vunpack.c.l.b16 %v1238
        %v1603 = vunpack.c.h.b16 %v1238
        %v1604 = vunpack.c.l.b16 %v1239
        %v1605 = vunpack.c.h.b16 %v1239
        %v1606 = vunpack.c.l.b16 %v1240
        %v1607 = vunpack.c.h.b16 %v1240
        %v1608 = vunpack.c.l.b16 %v1241
        %v1609 = vunpack.c.h.b16 %v1241
        %v1610 = vunpack.c.l.b16 %v1242
        %v1611 = vunpack.c.h.b16 %v1242
        %v1612 = vunpack.c.l.b16 %v1243
        %v1613 = vunpack.c.h.b16 %v1243
        %v1614 = vunpack.c.l.b16 %v1244
        %v1615 = vunpack.c.h.b16 %v1244
        %v1616 = vunpack.c.l.b16 %v1245
        %v1617 = vunpack.c.h.b16 %v1245
        %v1618 = vunpack.c.l.b16 %v1246
        %v1619 = vunpack.c.h.b16 %v1246
        %v1620 = vunpack.c.l.b16 %v1247
        %v1621 = vunpack.c.h.b16 %v1247
        %v1622 = vunpack.c.l.b16 %v1248
        %v1623 = vunpack.c.h.b16 %v1248
        %v1624 = vunpack.c.l.b16 %v1249
        %v1625 = vunpack.c.h.b16 %v1249
        %v1626 = vunpack.c.l.b16 %v1250
        %v1627 = vunpack.c.h.b16 %v1250
        %v1628 = vunpack.c.l.b16 %v1251
        %v1629 = vunpack.c.h.b16 %v1251
        %v1630 = vunpack.c.l.b16 %v1252
        %v1631 = vunpack.c.h.b16 %v1252
        %v1632 = vunpack.c.l.b16 %v1253
        %v1633 = vunpack.c.h.b16 %v1253
        %v1634 = vunpack.c.l.b16 %v1254
        %v1635 = vunpack.c.h.b16 %v1254
        %v1636 = vunpack.c.l.b16 %v1255
        %v1637 = vunpack.c.h.b16 %v1255
        %v1638 = vunpack.c.l.b16 %v1256
        %v1639 = vunpack.c.h.b16 %v1256
        %v1640 = vunpack.c.l.b16 %v1257
        %v1641 = vunpack.c.h.b16 %v1257
        %v1642 = vunpack.c.l.b16 %v1258
        %v1643 = vunpack.c.h.b16 %v1258
        %v1644 = vunpack.c.l.b16 %v1259
        %v1645 = vunpack.c.h.b16 %v1259
        %v1646 = vunpack.c.l.b16 %v1260
        %v1647 = vunpack.c.h.b16 %v1260
        %v1648 = vunpack.c.l.b16 %v1261
        %v1649 = vunpack.c.h.b16 %v1261
        %v1650 = vunpack.c.l.b16 %v1262
        %v1651 = vunpack.c.h.b16 %v1262
        %v1652 = vunpack.c.l.b16 %v1263
        %v1653 = vunpack.c.h.b16 %v1263
        %v1654 = vunpack.c.l.b16 %v1264
        %v1655 = vunpack.c.h.b16 %v1264
        %v1656 = vunpack.c.l.b16 %v1265
        %v1657 = vunpack.c.h.b16 %v1265
        %v1658 = vunpack.c.l.b16 %v1266
        %v1659 = vunpack.c.h.b16 %v1266
        %v1660 = vunpack.c.l.b16 %v1267
        %v1661 = vunpack.c.h.b16 %v1267
        %v1662 = vunpack.c.l.b16 %v1268
        %v1663 = vunpack.c.h.b16 %v1268
        %v1664 = vunpack.c.l.b16 %v1269
        %v1665 = vunpack.c.h.b16 %v1269
        %v1666 = vunpack.c.l.b16 %v1270
        %v1667 = vunpack.c.h.b16 %v1270
        %v1668 = vunpack.c.l.b16 %v1271
        %v1669 = vunpack.c.h.b16 %v1271
        %v1670 = vunpack.c.l.b16 %v1272
        %v1671 = vunpack.c.h.b16 %v1272
        %v1672 = vunpack.c.l.b16 %v1273
        %v1673 = vunpack.c.h.b16 %v1273
        %v1674 = vunpack.c.l.b16 %v1274
        %v1675 = vunpack.c.h.b16 %v1274
        %v1676 = vunpack.c.l.b16 %v1275
        %v1677 = vunpack.c.h.b16 %v1275
        %v1678 = vunpack.c.l.b16 %v1276
        %v1679 = vunpack.c.h.b16 %v1276
        %v1680 = vunpack.c.l.b16 %v1277
        %v1681 = vunpack.c.h.b16 %v1277
        %v1682 = vunpack.c.l.b16 %v1278
        %v1683 = vunpack.c.h.b16 %v1278
        %v1684 = vunpack.c.l.b16 %v1279
        %v1685 = vunpack.c.h.b16 %v1279
        %v1686 = vunpack.c.l.b16 %v1280
        %v1687 = vunpack.c.h.b16 %v1280
        %v1688 = vunpack.c.l.b16 %v1281
        %v1689 = vunpack.c.h.b16 %v1281
        %v1690 = vunpack.c.l.b16 %v1282
        %v1691 = vunpack.c.h.b16 %v1282
        %v1692 = vunpack.c.l.b16 %v1283
        %v1693 = vunpack.c.h.b16 %v1283
        %v1694 = vunpack.c.l.b16 %v1284
        %v1695 = vunpack.c.h.b16 %v1284
        %v1696 = vunpack.c.l.b16 %v1285
        %v1697 = vunpack.c.h.b16 %v1285
        %v1698 = vunpack.c.l.b16 %v1286
        %v1699 = vunpack.c.h.b16 %v1286
        %v1700 = vunpack.c.l.b16 %v1287
        %v1701 = vunpack.c.h.b16 %v1287
        %v1702 = vunpack.c.l.b16 %v1288
        %v1703 = vunpack.c.h.b16 %v1288
        %v1704 = vunpack.c.l.b16 %v1289
        %v1705 = vunpack.c.h.b16 %v1289
        %v1706 = vunpack.c.l.b16 %v1290
        %v1707 = vunpack.c.h.b16 %v1290
        %v1708 = vunpack.c.l.b16 %v1291
        %v1709 = vunpack.c.h.b16 %v1291
        %v1710 = vunpack.c.l.b16 %v1292
        %v1711 = vunpack.c.h.b16 %v1292
        %v1712 = vunpack.c.l.b16 %v1293
        %v1713 = vunpack.c.h.b16 %v1293
        %v1714 = vpack.c.b16 %v1474, %v1458
        %v1715 = vpack.c.b16 %v1475, %v1459
        %v1716 = vpack.c.b16 %v1476, %v1460
        %v1717 = vpack.c.b16 %v1477, %v1461
        %v1718 = vpack.c.b16 %v1478, %v1462
        %v1719 = vpack.c.b16 %v1479, %v1463
        %v1720 = vpack.c.b16 %v1480, %v1464
        %v1721 = vpack.c.b16 %v1481, %v1465
        %v1722 = vpack.c.b16 %v1482, %v1466
        %v1723 = vpack.c.b16 %v1483, %v1467
        %v1724 = vpack.c.b16 %v1484, %v1468
        %v1725 = vpack.c.b16 %v1485, %v1469
        %v1726 = vpack.c.b16 %v1486, %v1470
        %v1727 = vpack.c.b16 %v1487, %v1471
        %v1728 = vpack.c.b16 %v1488, %v1472
        %v1729 = vpack.c.b16 %v1489, %v1473
        %v1730 = vpack.c.b16 %v1506, %v1490
        %v1731 = vpack.c.b16 %v1507, %v1491
        %v1732 = vpack.c.b16 %v1508, %v1492
        %v1733 = vpack.c.b16 %v1509, %v1493
        %v1734 = vpack.c.b16 %v1510, %v1494
        %v1735 = vpack.c.b16 %v1511, %v1495
        %v1736 = vpack.c.b16 %v1512, %v1496
        %v1737 = vpack.c.b16 %v1513, %v1497
        %v1738 = vpack.c.b16 %v1514, %v1498
        %v1739 = vpack.c.b16 %v1515, %v1499
        %v1740 = vpack.c.b16 %v1516, %v1500
        %v1741 = vpack.c.b16 %v1517, %v1501
        %v1742 = vpack.c.b16 %v1518, %v1502
        %v1743 = vpack.c.b16 %v1519, %v1503
        %v1744 = vpack.c.b16 %v1520, %v1504
        %v1745 = vpack.c.b16 %v1521, %v1505
        %v1746 = vpack.c.b16 %v1538, %v1522
        %v1747 = vpack.c.b16 %v1539, %v1523
        %v1748 = vpack.c.b16 %v1540, %v1524
        %v1749 = vpack.c.b16 %v1541, %v1525
        %v1750 = vpack.c.b16 %v1542, %v1526
        %v1751 = vpack.c.b16 %v1543, %v1527
        %v1752 = vpack.c.b16 %v1544, %v1528
        %v1753 = vpack.c.b16 %v1545, %v1529
        %v1754 = vpack.c.b16 %v1546, %v1530
        %v1755 = vpack.c.b16 %v1547, %v1531
        %v1756 = vpack.c.b16 %v1548, %v1532
        %v1757 = vpack.c.b16 %v1549, %v1533
        %v1758 = vpack.c.b16 %v1550, %v1534
        %v1759 = vpack.c.b16 %v1551, %v1535
        %v1760 = vpack.c.b16 %v1552, %v1536
        %v1761 = vpack.c.b16 %v1553, %v1537
        %v1762 = vpack.c.b16 %v1570, %v1554
        %v1763 = vpack.c.b16 %v1571, %v1555
        %v1764 = vpack.c.b16 %v1572, %v1556
        %v1765 = vpack.c.b16 %v1573, %v1557
        %v1766 = vpack.c.b16 %v1574, %v1558
        %v1767 = vpack.c.b16 %v1575, %v1559
        %v1768 = vpack.c.b16 %v1576, %v1560
        %v1769 = vpack.c.b16 %v1577, %v1561
        %v1770 = vpack.c.b16 %v1578, %v1562
        %v1771 = vpack.c.b16 %v1579, %v1563
        %v1772 = vpack.c.b16 %v1580, %v1564
        %v1773 = vpack.c.b16 %v1581, %v1565
        %v1774 = vpack.c.b16 %v1582, %v1566
        %v1775 = vpack.c.b16 %v1583, %v1567
        %v1776 = vpack.c.b16 %v1584, %v1568
        %v1777 = vpack.c.b16 %v1585, %v1569
        %v1778 = vpack.c.b16 %v1602, %v1586
        %v1779 = vpack.c.b16 %v1603, %v1587
        %v1780 = vpack.c.b16 %v1604, %v1588
        %v1781 = vpack.c.b16 %v1605, %v1589
        %v1782 = vpack.c.b16 %v1606, %v1590
        %v1783 = vpack.c.b16 %v1607, %v1591
        %v1784 = vpack.c.b16 %v1608, %v1592
        %v1785 = vpack.c.b16 %v1609, %v1593
        %v1786 = vpack.c.b16 %v1610, %v1594
        %v1787 = vpack.c.b16 %v1611, %v1595
        %v1788 = vpack.c.b16 %v1612, %v1596
        %v1789 = vpack.c.b16 %v1613, %v1597
        %v1790 = vpack.c.b16 %v1614, %v1598
        %v1791 = vpack.c.b16 %v1615, %v1599
        %v1792 = vpack.c.b16 %v1616, %v1600
        %v1793 = vpack.c.b16 %v1617, %v1601
        %v1794 = vpack.c.b16 %v1634, %v1618
        %v1795 = vpack.c.b16 %v1635, %v1619
        %v1796 = vpack.c.b16 %v1636, %v1620
        %v1797 = vpack.c.b16 %v1637, %v1621
        %v1798 = vpack.c.b16 %v1638, %v1622
        %v1799 = vpack.c.b16 %v1639, %v1623
        %v1800 = vpack.c.b16 %v1640, %v1624
        %v1801 = vpack.c.b16 %v1641, %v1625
        %v1802 = vpack.c.b16 %v1642, %v1626
        %v1803 = vpack.c.b16 %v1643, %v1627
        %v1804 = vpack.c.b16 %v1644, %v1628
        %v1805 = vpack.c.b16 %v1645, %v1629
        %v1806 = vpack.c.b16 %v1646, %v1630
        %v1807 = vpack.c.b16 %v1647, %v1631
        %v1808 = vpack.c.b16 %v1648, %v1632
        %v1809 = vpack.c.b16 %v1649, %v1633
        %v1810 = vpack.c.b16 %v1666, %v1650
        %v1811 = vpack.c.b16 %v1667, %v1651
        %v1812 = vpack.c.b16 %v1668, %v1652
        %v1813 = vpack.c.b16 %v1669, %v1653
        %v1814 = vpack.c.b16 %v1670, %v1654
        %v1815 = vpack.c.b16 %v1671, %v1655
        %v1816 = vpack.c.b16 %v1672, %v1656
        %v1817 = vpack.c.b16 %v1673, %v1657
        %v1818 = vpack.c.b16 %v1674, %v1658
        %v1819 = vpack.c.b16 %v1675, %v1659
        %v1820 = vpack.c.b16 %v1676, %v1660
        %v1821 = vpack.c.b16 %v1677, %v1661
        %v1822 = vpack.c.b16 %v1678, %v1662
        %v1823 = vpack.c.b16 %v1679, %v1663
        %v1824 = vpack.c.b16 %v1680, %v1664
        %v1825 = vpack.c.b16 %v1681, %v1665
        %v1826 = vpack.c.b16 %v1698, %v1682
        %v1827 = vpack.c.b16 %v1699, %v1683
        %v1828 = vpack.c.b16 %v1700, %v1684
        %v1829 = vpack.c.b16 %v1701, %v1685
        %v1830 = vpack.c.b16 %v1702, %v1686
        %v1831 = vpack.c.b16 %v1703, %v1687
        %v1832 = vpack.c.b16 %v1704, %v1688
        %v1833 = vpack.c.b16 %v1705, %v1689
        %v1834 = vpack.c.b16 %v1706, %v1690
        %v1835 = vpack.c.b16 %v1707, %v1691
        %v1836 = vpack.c.b16 %v1708, %v1692
        %v1837 = vpack.c.b16 %v1709, %v1693
        %v1838 = vpack.c.b16 %v1710, %v1694
        %v1839 = vpack.c.b16 %v1711, %v1695
        %v1840 = vpack.c.b16 %v1712, %v1696
        %v1841 = vpack.c.b16 %v1713, %v1697
        %1970 = vmatpush.bf16.msra.mxu0 %v1826
        %1971 = vmatpush.bf16.msra.mxu0 %v1810
        %1972 = vmatpush.bf16.msra.mxu0 %v1794
        %1973 = vmatpush.bf16.msra.mxu0 %v1778
        %1974 = vmatpush.bf16.msra.mxu0 %v1762
        %1975 = vmatpush.bf16.msra.mxu0 %v1746
        %1976 = vmatpush.bf16.msra.mxu0 %v1730
        %1977 = vmatpush.bf16.msra.mxu0 %v1714
        %1978 = vmatmul.bf16.gmra.mxu0 %v1165
        %v1979 = vpop.f32.mrf.mxu0
        %v1980 = vadd.f32 %v1298, %v1979
        %v1981 = vpop.f32.mrf.mxu0
        %1982 = vdwg.mxu0
        %1983 = vmatpush.bf16.msra.mxu0 %v1827
        %1984 = vmatpush.bf16.msra.mxu0 %v1811
        %1985 = vmatpush.bf16.msra.mxu0 %v1795
        %1986 = vmatpush.bf16.msra.mxu0 %v1779
        %1987 = vmatpush.bf16.msra.mxu0 %v1763
        %1988 = vmatpush.bf16.msra.mxu0 %v1747
        %1989 = vmatpush.bf16.msra.mxu0 %v1731
        %1990 = vmatpush.bf16.msra.mxu0 %v1715
        %1991 = vmatmul.bf16.gmra.mxu0 %v1165
        %v1992 = vpop.f32.mrf.mxu0
        %v1993 = vadd.f32 %v1299, %v1992
        %v1994 = vpop.f32.mrf.mxu0
        %1995 = vdwg.mxu0
        %1996 = vmatpush.bf16.msra.mxu0 %v1828
        %1997 = vmatpush.bf16.msra.mxu0 %v1812
        %1998 = vmatpush.bf16.msra.mxu0 %v1796
        %1999 = vmatpush.bf16.msra.mxu0 %v1780
        %2000 = vmatpush.bf16.msra.mxu0 %v1764
        %2001 = vmatpush.bf16.msra.mxu0 %v1748
        %2002 = vmatpush.bf16.msra.mxu0 %v1732
        %2003 = vmatpush.bf16.msra.mxu0 %v1716
        %2004 = vmatmul.bf16.gmra.mxu0 %v1165
        %v2005 = vpop.f32.mrf.mxu0
        %v2006 = vadd.f32 %v1300, %v2005
        %v2007 = vpop.f32.mrf.mxu0
        %2008 = vdwg.mxu0
        %2009 = vmatpush.bf16.msra.mxu0 %v1829
        %2010 = vmatpush.bf16.msra.mxu0 %v1813
        %2011 = vmatpush.bf16.msra.mxu0 %v1797
        %2012 = vmatpush.bf16.msra.mxu0 %v1781
        %2013 = vmatpush.bf16.msra.mxu0 %v1765
        %2014 = vmatpush.bf16.msra.mxu0 %v1749
        %2015 = vmatpush.bf16.msra.mxu0 %v1733
        %2016 = vmatpush.bf16.msra.mxu0 %v1717
        %2017 = vmatmul.bf16.gmra.mxu0 %v1165
        %v2018 = vpop.f32.mrf.mxu0
        %v2019 = vadd.f32 %v1301, %v2018
        %v2020 = vpop.f32.mrf.mxu0
        %2021 = vdwg.mxu0
        %2022 = vmatpush.bf16.msra.mxu0 %v1830
        %2023 = vmatpush.bf16.msra.mxu0 %v1814
        %2024 = vmatpush.bf16.msra.mxu0 %v1798
        %2025 = vmatpush.bf16.msra.mxu0 %v1782
        %2026 = vmatpush.bf16.msra.mxu0 %v1766
        %2027 = vmatpush.bf16.msra.mxu0 %v1750
        %2028 = vmatpush.bf16.msra.mxu0 %v1734
        %2029 = vmatpush.bf16.msra.mxu0 %v1718
        %2030 = vmatmul.bf16.gmra.mxu0 %v1165
        %v2031 = vpop.f32.mrf.mxu0
        %v2032 = vadd.f32 %v1302, %v2031
        %v2033 = vpop.f32.mrf.mxu0
        %2034 = vdwg.mxu0
        %2035 = vmatpush.bf16.msra.mxu0 %v1831
        %2036 = vmatpush.bf16.msra.mxu0 %v1815
        %2037 = vmatpush.bf16.msra.mxu0 %v1799
        %2038 = vmatpush.bf16.msra.mxu0 %v1783
        %2039 = vmatpush.bf16.msra.mxu0 %v1767
        %2040 = vmatpush.bf16.msra.mxu0 %v1751
        %2041 = vmatpush.bf16.msra.mxu0 %v1735
        %2042 = vmatpush.bf16.msra.mxu0 %v1719
        %2043 = vmatmul.bf16.gmra.mxu0 %v1165
        %v2044 = vpop.f32.mrf.mxu0
        %v2045 = vadd.f32 %v1303, %v2044
        %v2046 = vpop.f32.mrf.mxu0
        %2047 = vdwg.mxu0
        %2048 = vmatpush.bf16.msra.mxu0 %v1832
        %2049 = vmatpush.bf16.msra.mxu0 %v1816
        %2050 = vmatpush.bf16.msra.mxu0 %v1800
        %2051 = vmatpush.bf16.msra.mxu0 %v1784
        %2052 = vmatpush.bf16.msra.mxu0 %v1768
        %2053 = vmatpush.bf16.msra.mxu0 %v1752
        %2054 = vmatpush.bf16.msra.mxu0 %v1736
        %2055 = vmatpush.bf16.msra.mxu0 %v1720
        %2056 = vmatmul.bf16.gmra.mxu0 %v1165
        %v2057 = vpop.f32.mrf.mxu0
        %v2058 = vadd.f32 %v1304, %v2057
        %v2059 = vpop.f32.mrf.mxu0
        %2060 = vdwg.mxu0
        %2061 = vmatpush.bf16.msra.mxu0 %v1833
        %2062 = vmatpush.bf16.msra.mxu0 %v1817
        %2063 = vmatpush.bf16.msra.mxu0 %v1801
        %2064 = vmatpush.bf16.msra.mxu0 %v1785
        %2065 = vmatpush.bf16.msra.mxu0 %v1769
        %2066 = vmatpush.bf16.msra.mxu0 %v1753
        %2067 = vmatpush.bf16.msra.mxu0 %v1737
        %2068 = vmatpush.bf16.msra.mxu0 %v1721
        %2069 = vmatmul.bf16.gmra.mxu0 %v1165
        %v2070 = vpop.f32.mrf.mxu0
        %v2071 = vadd.f32 %v1305, %v2070
        %v2072 = vpop.f32.mrf.mxu0
        %2073 = vdwg.mxu0
        %2074 = vmatpush.bf16.msra.mxu0 %v1834
        %2075 = vmatpush.bf16.msra.mxu0 %v1818
        %2076 = vmatpush.bf16.msra.mxu0 %v1802
        %2077 = vmatpush.bf16.msra.mxu0 %v1786
        %2078 = vmatpush.bf16.msra.mxu0 %v1770
        %2079 = vmatpush.bf16.msra.mxu0 %v1754
        %2080 = vmatpush.bf16.msra.mxu0 %v1738
        %2081 = vmatpush.bf16.msra.mxu0 %v1722
        %2082 = vmatmul.bf16.gmra.mxu0 %v1165
        %v2083 = vpop.f32.mrf.mxu0
        %v2084 = vadd.f32 %v1306, %v2083
        %v2085 = vpop.f32.mrf.mxu0
        %2086 = vdwg.mxu0
        %2087 = vmatpush.bf16.msra.mxu0 %v1835
        %2088 = vmatpush.bf16.msra.mxu0 %v1819
        %2089 = vmatpush.bf16.msra.mxu0 %v1803
        %2090 = vmatpush.bf16.msra.mxu0 %v1787
        %2091 = vmatpush.bf16.msra.mxu0 %v1771
        %2092 = vmatpush.bf16.msra.mxu0 %v1755
        %2093 = vmatpush.bf16.msra.mxu0 %v1739
        %2094 = vmatpush.bf16.msra.mxu0 %v1723
        %2095 = vmatmul.bf16.gmra.mxu0 %v1165
        %v2096 = vpop.f32.mrf.mxu0
        %v2097 = vadd.f32 %v1307, %v2096
        %v2098 = vpop.f32.mrf.mxu0
        %2099 = vdwg.mxu0
        %2100 = vmatpush.bf16.msra.mxu0 %v1836
        %2101 = vmatpush.bf16.msra.mxu0 %v1820
        %2102 = vmatpush.bf16.msra.mxu0 %v1804
        %2103 = vmatpush.bf16.msra.mxu0 %v1788
        %2104 = vmatpush.bf16.msra.mxu0 %v1772
        %2105 = vmatpush.bf16.msra.mxu0 %v1756
        %2106 = vmatpush.bf16.msra.mxu0 %v1740
        %2107 = vmatpush.bf16.msra.mxu0 %v1724
        %2108 = vmatmul.bf16.gmra.mxu0 %v1165
        %v2109 = vpop.f32.mrf.mxu0
        %v2110 = vadd.f32 %v1308, %v2109
        %v2111 = vpop.f32.mrf.mxu0
        %2112 = vdwg.mxu0
        %2113 = vmatpush.bf16.msra.mxu0 %v1837
        %2114 = vmatpush.bf16.msra.mxu0 %v1821
        %2115 = vmatpush.bf16.msra.mxu0 %v1805
        %2116 = vmatpush.bf16.msra.mxu0 %v1789
        %2117 = vmatpush.bf16.msra.mxu0 %v1773
        %2118 = vmatpush.bf16.msra.mxu0 %v1757
        %2119 = vmatpush.bf16.msra.mxu0 %v1741
        %2120 = vmatpush.bf16.msra.mxu0 %v1725
        %2121 = vmatmul.bf16.gmra.mxu0 %v1165
        %v2122 = vpop.f32.mrf.mxu0
        %v2123 = vadd.f32 %v1309, %v2122
        %v2124 = vpop.f32.mrf.mxu0
        %2125 = vdwg.mxu0
        %2126 = vmatpush.bf16.msra.mxu0 %v1838
        %2127 = vmatpush.bf16.msra.mxu0 %v1822
        %2128 = vmatpush.bf16.msra.mxu0 %v1806
        %2129 = vmatpush.bf16.msra.mxu0 %v1790
        %2130 = vmatpush.bf16.msra.mxu0 %v1774
        %2131 = vmatpush.bf16.msra.mxu0 %v1758
        %2132 = vmatpush.bf16.msra.mxu0 %v1742
        %2133 = vmatpush.bf16.msra.mxu0 %v1726
        %2134 = vmatmul.bf16.gmra.mxu0 %v1165
        %v2135 = vpop.f32.mrf.mxu0
        %v2136 = vadd.f32 %v1310, %v2135
        %v2137 = vpop.f32.mrf.mxu0
        %2138 = vdwg.mxu0
        %2139 = vmatpush.bf16.msra.mxu0 %v1839
        %2140 = vmatpush.bf16.msra.mxu0 %v1823
        %2141 = vmatpush.bf16.msra.mxu0 %v1807
        %2142 = vmatpush.bf16.msra.mxu0 %v1791
        %2143 = vmatpush.bf16.msra.mxu0 %v1775
        %2144 = vmatpush.bf16.msra.mxu0 %v1759
        %2145 = vmatpush.bf16.msra.mxu0 %v1743
        %2146 = vmatpush.bf16.msra.mxu0 %v1727
        %2147 = vmatmul.bf16.gmra.mxu0 %v1165
        %v2148 = vpop.f32.mrf.mxu0
        %v2149 = vadd.f32 %v1311, %v2148
        %v2150 = vpop.f32.mrf.mxu0
        %2151 = vdwg.mxu0
        %2152 = vmatpush.bf16.msra.mxu0 %v1840
        %2153 = vmatpush.bf16.msra.mxu0 %v1824
        %2154 = vmatpush.bf16.msra.mxu0 %v1808
        %2155 = vmatpush.bf16.msra.mxu0 %v1792
        %2156 = vmatpush.bf16.msra.mxu0 %v1776
        %2157 = vmatpush.bf16.msra.mxu0 %v1760
        %2158 = vmatpush.bf16.msra.mxu0 %v1744
        %2159 = vmatpush.bf16.msra.mxu0 %v1728
        %2160 = vmatmul.bf16.gmra.mxu0 %v1165
        %v2161 = vpop.f32.mrf.mxu0
        %v2162 = vadd.f32 %v1312, %v2161
        %v2163 = vpop.f32.mrf.mxu0
        %2164 = vdwg.mxu0
        %2165 = vmatpush.bf16.msra.mxu0 %v1841
        %2166 = vmatpush.bf16.msra.mxu0 %v1825
        %2167 = vmatpush.bf16.msra.mxu0 %v1809
        %2168 = vmatpush.bf16.msra.mxu0 %v1793
        %2169 = vmatpush.bf16.msra.mxu0 %v1777
        %2170 = vmatpush.bf16.msra.mxu0 %v1761
        %2171 = vmatpush.bf16.msra.mxu0 %v1745
        %2172 = vmatpush.bf16.msra.mxu0 %v1729
        %2173 = vmatmul.bf16.gmra.mxu0 %v1165
        %v2174 = vpop.f32.mrf.mxu0
        %v2175 = vadd.f32 %v1313, %v2174
        %v2176 = vpop.f32.mrf.mxu0
        %2177 = vdwg.mxu0
        %v2178 = vmax.f32 %v1980, 0.0
        %v2179 = vmax.f32 %v1993, 0.0
        %v2180 = vmax.f32 %v2006, 0.0
        %v2181 = vmax.f32 %v2019, 0.0
        %v2182 = vmax.f32 %v2032, 0.0
        %v2183 = vmax.f32 %v2045, 0.0
        %v2184 = vmax.f32 %v2058, 0.0
        %v2185 = vmax.f32 %v2071, 0.0
        %v2186 = vmax.f32 %v2084, 0.0
        %v2187 = vmax.f32 %v2097, 0.0
        %v2188 = vmax.f32 %v2110, 0.0
        %v2189 = vmax.f32 %v2123, 0.0
        %v2190 = vmax.f32 %v2136, 0.0
        %v2191 = vmax.f32 %v2149, 0.0
        %v2192 = vmax.f32 %v2162, 0.0
        %v2193 = vmax.f32 %v2175, 0.0
        %v2194 = vpack.c.bf16 %v2178, %v2178
        %v2195 = vpack.c.bf16 %v2179, %v2179
        %v2196 = vpack.c.bf16 %v2180, %v2180
        %v2197 = vpack.c.bf16 %v2181, %v2181
        %v2198 = vpack.c.bf16 %v2182, %v2182
        %v2199 = vpack.c.bf16 %v2183, %v2183
        %v2200 = vpack.c.bf16 %v2184, %v2184
        %v2201 = vpack.c.bf16 %v2185, %v2185
        %v2202 = vpack.c.bf16 %v2186, %v2186
        %v2203 = vpack.c.bf16 %v2187, %v2187
        %v2204 = vpack.c.bf16 %v2188, %v2188
        %v2205 = vpack.c.bf16 %v2189, %v2189
        %v2206 = vpack.c.bf16 %v2190, %v2190
        %v2207 = vpack.c.bf16 %v2191, %v2191
        %v2208 = vpack.c.bf16 %v2192, %v2192
        %v2209 = vpack.c.bf16 %v2193, %v2193
        %v2210 = vld [vmem:[%s806] sm:$0xf]
        %v2211 = vld [vmem:[%s806 + $0x4] sm:$0xf]
        %v2212 = vld [vmem:[%s806 + $0x8] sm:$0xf]
        %v2213 = vld [vmem:[%s806 + $0xc] sm:$0xf]
        %v2214 = vld [vmem:[%s806 + $0x10] sm:$0xf]
        %v2215 = vld [vmem:[%s806 + $0x14] sm:$0xf]
        %v2216 = vld [vmem:[%s806 + $0x18] sm:$0xf]
        %v2217 = vld [vmem:[%s806 + $0x1c] sm:$0xf]
        %v2218 = vld [vmem:[%s806 + $0x20] sm:$0xf]
        %v2219 = vld [vmem:[%s806 + $0x24] sm:$0xf]
        %v2220 = vld [vmem:[%s806 + $0x28] sm:$0xf]
        %v2221 = vld [vmem:[%s806 + $0x2c] sm:$0xf]
        %v2222 = vld [vmem:[%s806 + $0x30] sm:$0xf]
        %v2223 = vld [vmem:[%s806 + $0x34] sm:$0xf]
        %v2224 = vld [vmem:[%s806 + $0x38] sm:$0xf]
        %v2225 = vld [vmem:[%s806 + $0x3c] sm:$0xf]
        %v2226 = vld [vmem:[%s806 + $0x40] sm:$0xf]
        %v2227 = vld [vmem:[%s806 + $0x44] sm:$0xf]
        %v2228 = vld [vmem:[%s806 + $0x48] sm:$0xf]
        %v2229 = vld [vmem:[%s806 + $0x4c] sm:$0xf]
        %v2230 = vld [vmem:[%s806 + $0x50] sm:$0xf]
        %v2231 = vld [vmem:[%s806 + $0x54] sm:$0xf]
        %v2232 = vld [vmem:[%s806 + $0x58] sm:$0xf]
        %v2233 = vld [vmem:[%s806 + $0x5c] sm:$0xf]
        %v2234 = vld [vmem:[%s806 + $0x60] sm:$0xf]
        %v2235 = vld [vmem:[%s806 + $0x64] sm:$0xf]
        %v2236 = vld [vmem:[%s806 + $0x68] sm:$0xf]
        %v2237 = vld [vmem:[%s806 + $0x6c] sm:$0xf]
        %v2238 = vld [vmem:[%s806 + $0x70] sm:$0xf]
        %v2239 = vld [vmem:[%s806 + $0x74] sm:$0xf]
        %v2240 = vld [vmem:[%s806 + $0x78] sm:$0xf]
        %v2241 = vld [vmem:[%s806 + $0x7c] sm:$0xf]
        %v2242 = vld [vmem:[%s806 + $0x80] sm:$0xf]
        %v2243 = vld [vmem:[%s806 + $0x84] sm:$0xf]
        %v2244 = vld [vmem:[%s806 + $0x88] sm:$0xf]
        %v2245 = vld [vmem:[%s806 + $0x8c] sm:$0xf]
        %v2246 = vld [vmem:[%s806 + $0x90] sm:$0xf]
        %v2247 = vld [vmem:[%s806 + $0x94] sm:$0xf]
        %v2248 = vld [vmem:[%s806 + $0x98] sm:$0xf]
        %v2249 = vld [vmem:[%s806 + $0x9c] sm:$0xf]
        %v2250 = vld [vmem:[%s806 + $0xa0] sm:$0xf]
        %v2251 = vld [vmem:[%s806 + $0xa4] sm:$0xf]
        %v2252 = vld [vmem:[%s806 + $0xa8] sm:$0xf]
        %v2253 = vld [vmem:[%s806 + $0xac] sm:$0xf]
        %v2254 = vld [vmem:[%s806 + $0xb0] sm:$0xf]
        %v2255 = vld [vmem:[%s806 + $0xb4] sm:$0xf]
        %v2256 = vld [vmem:[%s806 + $0xb8] sm:$0xf]
        %v2257 = vld [vmem:[%s806 + $0xbc] sm:$0xf]
        %v2258 = vld [vmem:[%s806 + $0xc0] sm:$0xf]
        %v2259 = vld [vmem:[%s806 + $0xc4] sm:$0xf]
        %v2260 = vld [vmem:[%s806 + $0xc8] sm:$0xf]
        %v2261 = vld [vmem:[%s806 + $0xcc] sm:$0xf]
        %v2262 = vld [vmem:[%s806 + $0xd0] sm:$0xf]
        %v2263 = vld [vmem:[%s806 + $0xd4] sm:$0xf]
        %v2264 = vld [vmem:[%s806 + $0xd8] sm:$0xf]
        %v2265 = vld [vmem:[%s806 + $0xdc] sm:$0xf]
        %v2266 = vld [vmem:[%s806 + $0xe0] sm:$0xf]
        %v2267 = vld [vmem:[%s806 + $0xe4] sm:$0xf]
        %v2268 = vld [vmem:[%s806 + $0xe8] sm:$0xf]
        %v2269 = vld [vmem:[%s806 + $0xec] sm:$0xf]
        %v2270 = vld [vmem:[%s806 + $0xf0] sm:$0xf]
        %v2271 = vld [vmem:[%s806 + $0xf4] sm:$0xf]
        %v2272 = vld [vmem:[%s806 + $0xf8] sm:$0xf]
        %v2273 = vld [vmem:[%s806 + $0xfc] sm:$0xf]
        %v2274 = vld [vmem:[%s806 + $0x100] sm:$0xf]
        %v2275 = vld [vmem:[%s806 + $0x104] sm:$0xf]
        %v2276 = vld [vmem:[%s806 + $0x108] sm:$0xf]
        %v2277 = vld [vmem:[%s806 + $0x10c] sm:$0xf]
        %v2278 = vld [vmem:[%s806 + $0x110] sm:$0xf]
        %v2279 = vld [vmem:[%s806 + $0x114] sm:$0xf]
        %v2280 = vld [vmem:[%s806 + $0x118] sm:$0xf]
        %v2281 = vld [vmem:[%s806 + $0x11c] sm:$0xf]
        %v2282 = vld [vmem:[%s806 + $0x120] sm:$0xf]
        %v2283 = vld [vmem:[%s806 + $0x124] sm:$0xf]
        %v2284 = vld [vmem:[%s806 + $0x128] sm:$0xf]
        %v2285 = vld [vmem:[%s806 + $0x12c] sm:$0xf]
        %v2286 = vld [vmem:[%s806 + $0x130] sm:$0xf]
        %v2287 = vld [vmem:[%s806 + $0x134] sm:$0xf]
        %v2288 = vld [vmem:[%s806 + $0x138] sm:$0xf]
        %v2289 = vld [vmem:[%s806 + $0x13c] sm:$0xf]
        %v2290 = vld [vmem:[%s806 + $0x140] sm:$0xf]
        %v2291 = vld [vmem:[%s806 + $0x144] sm:$0xf]
        %v2292 = vld [vmem:[%s806 + $0x148] sm:$0xf]
        %v2293 = vld [vmem:[%s806 + $0x14c] sm:$0xf]
        %v2294 = vld [vmem:[%s806 + $0x150] sm:$0xf]
        %v2295 = vld [vmem:[%s806 + $0x154] sm:$0xf]
        %v2296 = vld [vmem:[%s806 + $0x158] sm:$0xf]
        %v2297 = vld [vmem:[%s806 + $0x15c] sm:$0xf]
        %v2298 = vld [vmem:[%s806 + $0x160] sm:$0xf]
        %v2299 = vld [vmem:[%s806 + $0x164] sm:$0xf]
        %v2300 = vld [vmem:[%s806 + $0x168] sm:$0xf]
        %v2301 = vld [vmem:[%s806 + $0x16c] sm:$0xf]
        %v2302 = vld [vmem:[%s806 + $0x170] sm:$0xf]
        %v2303 = vld [vmem:[%s806 + $0x174] sm:$0xf]
        %v2304 = vld [vmem:[%s806 + $0x178] sm:$0xf]
        %v2305 = vld [vmem:[%s806 + $0x17c] sm:$0xf]
        %v2306 = vld [vmem:[%s806 + $0x180] sm:$0xf]
        %v2307 = vld [vmem:[%s806 + $0x184] sm:$0xf]
        %v2308 = vld [vmem:[%s806 + $0x188] sm:$0xf]
        %v2309 = vld [vmem:[%s806 + $0x18c] sm:$0xf]
        %v2310 = vld [vmem:[%s806 + $0x190] sm:$0xf]
        %v2311 = vld [vmem:[%s806 + $0x194] sm:$0xf]
        %v2312 = vld [vmem:[%s806 + $0x198] sm:$0xf]
        %v2313 = vld [vmem:[%s806 + $0x19c] sm:$0xf]
        %v2314 = vld [vmem:[%s806 + $0x1a0] sm:$0xf]
        %v2315 = vld [vmem:[%s806 + $0x1a4] sm:$0xf]
        %v2316 = vld [vmem:[%s806 + $0x1a8] sm:$0xf]
        %v2317 = vld [vmem:[%s806 + $0x1ac] sm:$0xf]
        %v2318 = vld [vmem:[%s806 + $0x1b0] sm:$0xf]
        %v2319 = vld [vmem:[%s806 + $0x1b4] sm:$0xf]
        %v2320 = vld [vmem:[%s806 + $0x1b8] sm:$0xf]
        %v2321 = vld [vmem:[%s806 + $0x1bc] sm:$0xf]
        %v2322 = vld [vmem:[%s806 + $0x1c0] sm:$0xf]
        %v2323 = vld [vmem:[%s806 + $0x1c4] sm:$0xf]
        %v2324 = vld [vmem:[%s806 + $0x1c8] sm:$0xf]
        %v2325 = vld [vmem:[%s806 + $0x1cc] sm:$0xf]
        %v2326 = vld [vmem:[%s806 + $0x1d0] sm:$0xf]
        %v2327 = vld [vmem:[%s806 + $0x1d4] sm:$0xf]
        %v2328 = vld [vmem:[%s806 + $0x1d8] sm:$0xf]
        %v2329 = vld [vmem:[%s806 + $0x1dc] sm:$0xf]
        %v2330 = vld [vmem:[%s806 + $0x1e0] sm:$0xf]
        %v2331 = vld [vmem:[%s806 + $0x1e4] sm:$0xf]
        %v2332 = vld [vmem:[%s806 + $0x1e8] sm:$0xf]
        %v2333 = vld [vmem:[%s806 + $0x1ec] sm:$0xf]
        %v2334 = vld [vmem:[%s806 + $0x1f0] sm:$0xf]
        %v2335 = vld [vmem:[%s806 + $0x1f4] sm:$0xf]
        %v2336 = vld [vmem:[%s806 + $0x1f8] sm:$0xf]
        %v2337 = vld [vmem:[%s806 + $0x1fc] sm:$0xf]
        %v2338 = vld [vmem:[%s806 + $0x200] sm:$0xf]
        %v2339 = vld [vmem:[%s806 + $0x204] sm:$0xf]
        %v2340 = vld [vmem:[%s806 + $0x208] sm:$0xf]
        %v2341 = vld [vmem:[%s806 + $0x20c] sm:$0xf]
        %v2342 = vld [vmem:[%s806 + $0x210] sm:$0xf]
        %v2343 = vld [vmem:[%s806 + $0x214] sm:$0xf]
        %v2344 = vld [vmem:[%s806 + $0x218] sm:$0xf]
        %v2345 = vld [vmem:[%s806 + $0x21c] sm:$0xf]
        %v2346 = vld [vmem:[%s806 + $0x220] sm:$0xf]
        %v2347 = vld [vmem:[%s806 + $0x224] sm:$0xf]
        %v2348 = vld [vmem:[%s806 + $0x228] sm:$0xf]
        %v2349 = vld [vmem:[%s806 + $0x22c] sm:$0xf]
        %v2350 = vld [vmem:[%s806 + $0x230] sm:$0xf]
        %v2351 = vld [vmem:[%s806 + $0x234] sm:$0xf]
        %v2352 = vld [vmem:[%s806 + $0x238] sm:$0xf]
        %v2353 = vld [vmem:[%s806 + $0x23c] sm:$0xf]
        %v2354 = vld [vmem:[%s806 + $0x240] sm:$0xf]
        %v2355 = vld [vmem:[%s806 + $0x244] sm:$0xf]
        %v2356 = vld [vmem:[%s806 + $0x248] sm:$0xf]
        %v2357 = vld [vmem:[%s806 + $0x24c] sm:$0xf]
        %v2358 = vld [vmem:[%s806 + $0x250] sm:$0xf]
        %v2359 = vld [vmem:[%s806 + $0x254] sm:$0xf]
        %v2360 = vld [vmem:[%s806 + $0x258] sm:$0xf]
        %v2361 = vld [vmem:[%s806 + $0x25c] sm:$0xf]
        %v2362 = vld [vmem:[%s806 + $0x260] sm:$0xf]
        %v2363 = vld [vmem:[%s806 + $0x264] sm:$0xf]
        %v2364 = vld [vmem:[%s806 + $0x268] sm:$0xf]
        %v2365 = vld [vmem:[%s806 + $0x26c] sm:$0xf]
        %v2366 = vld [vmem:[%s806 + $0x270] sm:$0xf]
        %v2367 = vld [vmem:[%s806 + $0x274] sm:$0xf]
        %v2368 = vld [vmem:[%s806 + $0x278] sm:$0xf]
        %v2369 = vld [vmem:[%s806 + $0x27c] sm:$0xf]
        %v2370 = vld [vmem:[%s806 + $0x280] sm:$0xf]
        %v2371 = vld [vmem:[%s806 + $0x284] sm:$0xf]
        %v2372 = vld [vmem:[%s806 + $0x288] sm:$0xf]
        %v2373 = vld [vmem:[%s806 + $0x28c] sm:$0xf]
        %v2374 = vld [vmem:[%s806 + $0x290] sm:$0xf]
        %v2375 = vld [vmem:[%s806 + $0x294] sm:$0xf]
        %v2376 = vld [vmem:[%s806 + $0x298] sm:$0xf]
        %v2377 = vld [vmem:[%s806 + $0x29c] sm:$0xf]
        %v2378 = vld [vmem:[%s806 + $0x2a0] sm:$0xf]
        %v2379 = vld [vmem:[%s806 + $0x2a4] sm:$0xf]
        %v2380 = vld [vmem:[%s806 + $0x2a8] sm:$0xf]
        %v2381 = vld [vmem:[%s806 + $0x2ac] sm:$0xf]
        %v2382 = vld [vmem:[%s806 + $0x2b0] sm:$0xf]
        %v2383 = vld [vmem:[%s806 + $0x2b4] sm:$0xf]
        %v2384 = vld [vmem:[%s806 + $0x2b8] sm:$0xf]
        %v2385 = vld [vmem:[%s806 + $0x2bc] sm:$0xf]
        %v2386 = vld [vmem:[%s806 + $0x2c0] sm:$0xf]
        %v2387 = vld [vmem:[%s806 + $0x2c4] sm:$0xf]
        %v2388 = vld [vmem:[%s806 + $0x2c8] sm:$0xf]
        %v2389 = vld [vmem:[%s806 + $0x2cc] sm:$0xf]
        %v2390 = vld [vmem:[%s806 + $0x2d0] sm:$0xf]
        %v2391 = vld [vmem:[%s806 + $0x2d4] sm:$0xf]
        %v2392 = vld [vmem:[%s806 + $0x2d8] sm:$0xf]
        %v2393 = vld [vmem:[%s806 + $0x2dc] sm:$0xf]
        %v2394 = vld [vmem:[%s806 + $0x2e0] sm:$0xf]
        %v2395 = vld [vmem:[%s806 + $0x2e4] sm:$0xf]
        %v2396 = vld [vmem:[%s806 + $0x2e8] sm:$0xf]
        %v2397 = vld [vmem:[%s806 + $0x2ec] sm:$0xf]
        %v2398 = vld [vmem:[%s806 + $0x2f0] sm:$0xf]
        %v2399 = vld [vmem:[%s806 + $0x2f4] sm:$0xf]
        %v2400 = vld [vmem:[%s806 + $0x2f8] sm:$0xf]
        %v2401 = vld [vmem:[%s806 + $0x2fc] sm:$0xf]
        %v2402 = vld [vmem:[%s806 + $0x300] sm:$0xf]
        %v2403 = vld [vmem:[%s806 + $0x304] sm:$0xf]
        %v2404 = vld [vmem:[%s806 + $0x308] sm:$0xf]
        %v2405 = vld [vmem:[%s806 + $0x30c] sm:$0xf]
        %v2406 = vld [vmem:[%s806 + $0x310] sm:$0xf]
        %v2407 = vld [vmem:[%s806 + $0x314] sm:$0xf]
        %v2408 = vld [vmem:[%s806 + $0x318] sm:$0xf]
        %v2409 = vld [vmem:[%s806 + $0x31c] sm:$0xf]
        %v2410 = vld [vmem:[%s806 + $0x320] sm:$0xf]
        %v2411 = vld [vmem:[%s806 + $0x324] sm:$0xf]
        %v2412 = vld [vmem:[%s806 + $0x328] sm:$0xf]
        %v2413 = vld [vmem:[%s806 + $0x32c] sm:$0xf]
        %v2414 = vld [vmem:[%s806 + $0x330] sm:$0xf]
        %v2415 = vld [vmem:[%s806 + $0x334] sm:$0xf]
        %v2416 = vld [vmem:[%s806 + $0x338] sm:$0xf]
        %v2417 = vld [vmem:[%s806 + $0x33c] sm:$0xf]
        %v2418 = vld [vmem:[%s806 + $0x340] sm:$0xf]
        %v2419 = vld [vmem:[%s806 + $0x344] sm:$0xf]
        %v2420 = vld [vmem:[%s806 + $0x348] sm:$0xf]
        %v2421 = vld [vmem:[%s806 + $0x34c] sm:$0xf]
        %v2422 = vld [vmem:[%s806 + $0x350] sm:$0xf]
        %v2423 = vld [vmem:[%s806 + $0x354] sm:$0xf]
        %v2424 = vld [vmem:[%s806 + $0x358] sm:$0xf]
        %v2425 = vld [vmem:[%s806 + $0x35c] sm:$0xf]
        %v2426 = vld [vmem:[%s806 + $0x360] sm:$0xf]
        %v2427 = vld [vmem:[%s806 + $0x364] sm:$0xf]
        %v2428 = vld [vmem:[%s806 + $0x368] sm:$0xf]
        %v2429 = vld [vmem:[%s806 + $0x36c] sm:$0xf]
        %v2430 = vld [vmem:[%s806 + $0x370] sm:$0xf]
        %v2431 = vld [vmem:[%s806 + $0x374] sm:$0xf]
        %v2432 = vld [vmem:[%s806 + $0x378] sm:$0xf]
        %v2433 = vld [vmem:[%s806 + $0x37c] sm:$0xf]
        %v2434 = vld [vmem:[%s806 + $0x380] sm:$0xf]
        %v2435 = vld [vmem:[%s806 + $0x384] sm:$0xf]
        %v2436 = vld [vmem:[%s806 + $0x388] sm:$0xf]
        %v2437 = vld [vmem:[%s806 + $0x38c] sm:$0xf]
        %v2438 = vld [vmem:[%s806 + $0x390] sm:$0xf]
        %v2439 = vld [vmem:[%s806 + $0x394] sm:$0xf]
        %v2440 = vld [vmem:[%s806 + $0x398] sm:$0xf]
        %v2441 = vld [vmem:[%s806 + $0x39c] sm:$0xf]
        %v2442 = vld [vmem:[%s806 + $0x3a0] sm:$0xf]
        %v2443 = vld [vmem:[%s806 + $0x3a4] sm:$0xf]
        %v2444 = vld [vmem:[%s806 + $0x3a8] sm:$0xf]
        %v2445 = vld [vmem:[%s806 + $0x3ac] sm:$0xf]
        %v2446 = vld [vmem:[%s806 + $0x3b0] sm:$0xf]
        %v2447 = vld [vmem:[%s806 + $0x3b4] sm:$0xf]
        %v2448 = vld [vmem:[%s806 + $0x3b8] sm:$0xf]
        %v2449 = vld [vmem:[%s806 + $0x3bc] sm:$0xf]
        %v2450 = vld [vmem:[%s806 + $0x3c0] sm:$0xf]
        %v2451 = vld [vmem:[%s806 + $0x3c4] sm:$0xf]
        %v2452 = vld [vmem:[%s806 + $0x3c8] sm:$0xf]
        %v2453 = vld [vmem:[%s806 + $0x3cc] sm:$0xf]
        %v2454 = vld [vmem:[%s806 + $0x3d0] sm:$0xf]
        %v2455 = vld [vmem:[%s806 + $0x3d4] sm:$0xf]
        %v2456 = vld [vmem:[%s806 + $0x3d8] sm:$0xf]
        %v2457 = vld [vmem:[%s806 + $0x3dc] sm:$0xf]
        %v2458 = vld [vmem:[%s806 + $0x3e0] sm:$0xf]
        %v2459 = vld [vmem:[%s806 + $0x3e4] sm:$0xf]
        %v2460 = vld [vmem:[%s806 + $0x3e8] sm:$0xf]
        %v2461 = vld [vmem:[%s806 + $0x3ec] sm:$0xf]
        %v2462 = vld [vmem:[%s806 + $0x3f0] sm:$0xf]
        %v2463 = vld [vmem:[%s806 + $0x3f4] sm:$0xf]
        %v2464 = vld [vmem:[%s806 + $0x3f8] sm:$0xf]
        %v2465 = vld [vmem:[%s806 + $0x3fc] sm:$0xf]
        %v2466 = vld [vmem:[%s915] sm:$0x1]
        %v2468 = vperm.slane %v2466, 0
        %v2726 = vunpack.c.l.b16 %v2210
        %v2727 = vunpack.c.l.b16 %v2211
        %v2728 = vunpack.c.l.b16 %v2212
        %v2729 = vunpack.c.l.b16 %v2213
        %v2730 = vunpack.c.l.b16 %v2214
        %v2731 = vunpack.c.l.b16 %v2215
        %v2732 = vunpack.c.l.b16 %v2216
        %v2733 = vunpack.c.l.b16 %v2217
        %v2734 = vunpack.c.l.b16 %v2218
        %v2735 = vunpack.c.l.b16 %v2219
        %v2736 = vunpack.c.l.b16 %v2220
        %v2737 = vunpack.c.l.b16 %v2221
        %v2738 = vunpack.c.l.b16 %v2222
        %v2739 = vunpack.c.l.b16 %v2223
        %v2740 = vunpack.c.l.b16 %v2224
        %v2741 = vunpack.c.l.b16 %v2225
        %v2742 = vunpack.c.l.b16 %v2226
        %v2743 = vunpack.c.l.b16 %v2227
        %v2744 = vunpack.c.l.b16 %v2228
        %v2745 = vunpack.c.l.b16 %v2229
        %v2746 = vunpack.c.l.b16 %v2230
        %v2747 = vunpack.c.l.b16 %v2231
        %v2748 = vunpack.c.l.b16 %v2232
        %v2749 = vunpack.c.l.b16 %v2233
        %v2750 = vunpack.c.l.b16 %v2234
        %v2751 = vunpack.c.l.b16 %v2235
        %v2752 = vunpack.c.l.b16 %v2236
        %v2753 = vunpack.c.l.b16 %v2237
        %v2754 = vunpack.c.l.b16 %v2238
        %v2755 = vunpack.c.l.b16 %v2239
        %v2756 = vunpack.c.l.b16 %v2240
        %v2757 = vunpack.c.l.b16 %v2241
        %v2758 = vunpack.c.l.b16 %v2242
        %v2759 = vunpack.c.l.b16 %v2243
        %v2760 = vunpack.c.l.b16 %v2244
        %v2761 = vunpack.c.l.b16 %v2245
        %v2762 = vunpack.c.l.b16 %v2246
        %v2763 = vunpack.c.l.b16 %v2247
        %v2764 = vunpack.c.l.b16 %v2248
        %v2765 = vunpack.c.l.b16 %v2249
        %v2766 = vunpack.c.l.b16 %v2250
        %v2767 = vunpack.c.l.b16 %v2251
        %v2768 = vunpack.c.l.b16 %v2252
        %v2769 = vunpack.c.l.b16 %v2253
        %v2770 = vunpack.c.l.b16 %v2254
        %v2771 = vunpack.c.l.b16 %v2255
        %v2772 = vunpack.c.l.b16 %v2256
        %v2773 = vunpack.c.l.b16 %v2257
        %v2774 = vunpack.c.l.b16 %v2258
        %v2775 = vunpack.c.l.b16 %v2259
        %v2776 = vunpack.c.l.b16 %v2260
        %v2777 = vunpack.c.l.b16 %v2261
        %v2778 = vunpack.c.l.b16 %v2262
        %v2779 = vunpack.c.l.b16 %v2263
        %v2780 = vunpack.c.l.b16 %v2264
        %v2781 = vunpack.c.l.b16 %v2265
        %v2782 = vunpack.c.l.b16 %v2266
        %v2783 = vunpack.c.l.b16 %v2267
        %v2784 = vunpack.c.l.b16 %v2268
        %v2785 = vunpack.c.l.b16 %v2269
        %v2786 = vunpack.c.l.b16 %v2270
        %v2787 = vunpack.c.l.b16 %v2271
        %v2788 = vunpack.c.l.b16 %v2272
        %v2789 = vunpack.c.l.b16 %v2273
        %v2790 = vunpack.c.l.b16 %v2274
        %v2791 = vunpack.c.l.b16 %v2275
        %v2792 = vunpack.c.l.b16 %v2276
        %v2793 = vunpack.c.l.b16 %v2277
        %v2794 = vunpack.c.l.b16 %v2278
        %v2795 = vunpack.c.l.b16 %v2279
        %v2796 = vunpack.c.l.b16 %v2280
        %v2797 = vunpack.c.l.b16 %v2281
        %v2798 = vunpack.c.l.b16 %v2282
        %v2799 = vunpack.c.l.b16 %v2283
        %v2800 = vunpack.c.l.b16 %v2284
        %v2801 = vunpack.c.l.b16 %v2285
        %v2802 = vunpack.c.l.b16 %v2286
        %v2803 = vunpack.c.l.b16 %v2287
        %v2804 = vunpack.c.l.b16 %v2288
        %v2805 = vunpack.c.l.b16 %v2289
        %v2806 = vunpack.c.l.b16 %v2290
        %v2807 = vunpack.c.l.b16 %v2291
        %v2808 = vunpack.c.l.b16 %v2292
        %v2809 = vunpack.c.l.b16 %v2293
        %v2810 = vunpack.c.l.b16 %v2294
        %v2811 = vunpack.c.l.b16 %v2295
        %v2812 = vunpack.c.l.b16 %v2296
        %v2813 = vunpack.c.l.b16 %v2297
        %v2814 = vunpack.c.l.b16 %v2298
        %v2815 = vunpack.c.l.b16 %v2299
        %v2816 = vunpack.c.l.b16 %v2300
        %v2817 = vunpack.c.l.b16 %v2301
        %v2818 = vunpack.c.l.b16 %v2302
        %v2819 = vunpack.c.l.b16 %v2303
        %v2820 = vunpack.c.l.b16 %v2304
        %v2821 = vunpack.c.l.b16 %v2305
        %v2822 = vunpack.c.l.b16 %v2306
        %v2823 = vunpack.c.l.b16 %v2307
        %v2824 = vunpack.c.l.b16 %v2308
        %v2825 = vunpack.c.l.b16 %v2309
        %v2826 = vunpack.c.l.b16 %v2310
        %v2827 = vunpack.c.l.b16 %v2311
        %v2828 = vunpack.c.l.b16 %v2312
        %v2829 = vunpack.c.l.b16 %v2313
        %v2830 = vunpack.c.l.b16 %v2314
        %v2831 = vunpack.c.l.b16 %v2315
        %v2832 = vunpack.c.l.b16 %v2316
        %v2833 = vunpack.c.l.b16 %v2317
        %v2834 = vunpack.c.l.b16 %v2318
        %v2835 = vunpack.c.l.b16 %v2319
        %v2836 = vunpack.c.l.b16 %v2320
        %v2837 = vunpack.c.l.b16 %v2321
        %v2838 = vunpack.c.l.b16 %v2322
        %v2839 = vunpack.c.l.b16 %v2323
        %v2840 = vunpack.c.l.b16 %v2324
        %v2841 = vunpack.c.l.b16 %v2325
        %v2842 = vunpack.c.l.b16 %v2326
        %v2843 = vunpack.c.l.b16 %v2327
        %v2844 = vunpack.c.l.b16 %v2328
        %v2845 = vunpack.c.l.b16 %v2329
        %v2846 = vunpack.c.l.b16 %v2330
        %v2847 = vunpack.c.l.b16 %v2331
        %v2848 = vunpack.c.l.b16 %v2332
        %v2849 = vunpack.c.l.b16 %v2333
        %v2850 = vunpack.c.l.b16 %v2334
        %v2851 = vunpack.c.l.b16 %v2335
        %v2852 = vunpack.c.l.b16 %v2336
        %v2853 = vunpack.c.l.b16 %v2337
        %v2854 = vunpack.c.l.b16 %v2338
        %v2855 = vunpack.c.l.b16 %v2339
        %v2856 = vunpack.c.l.b16 %v2340
        %v2857 = vunpack.c.l.b16 %v2341
        %v2858 = vunpack.c.l.b16 %v2342
        %v2859 = vunpack.c.l.b16 %v2343
        %v2860 = vunpack.c.l.b16 %v2344
        %v2861 = vunpack.c.l.b16 %v2345
        %v2862 = vunpack.c.l.b16 %v2346
        %v2863 = vunpack.c.l.b16 %v2347
        %v2864 = vunpack.c.l.b16 %v2348
        %v2865 = vunpack.c.l.b16 %v2349
        %v2866 = vunpack.c.l.b16 %v2350
        %v2867 = vunpack.c.l.b16 %v2351
        %v2868 = vunpack.c.l.b16 %v2352
        %v2869 = vunpack.c.l.b16 %v2353
        %v2870 = vunpack.c.l.b16 %v2354
        %v2871 = vunpack.c.l.b16 %v2355
        %v2872 = vunpack.c.l.b16 %v2356
        %v2873 = vunpack.c.l.b16 %v2357
        %v2874 = vunpack.c.l.b16 %v2358
        %v2875 = vunpack.c.l.b16 %v2359
        %v2876 = vunpack.c.l.b16 %v2360
        %v2877 = vunpack.c.l.b16 %v2361
        %v2878 = vunpack.c.l.b16 %v2362
        %v2879 = vunpack.c.l.b16 %v2363
        %v2880 = vunpack.c.l.b16 %v2364
        %v2881 = vunpack.c.l.b16 %v2365
        %v2882 = vunpack.c.l.b16 %v2366
        %v2883 = vunpack.c.l.b16 %v2367
        %v2884 = vunpack.c.l.b16 %v2368
        %v2885 = vunpack.c.l.b16 %v2369
        %v2886 = vunpack.c.l.b16 %v2370
        %v2887 = vunpack.c.l.b16 %v2371
        %v2888 = vunpack.c.l.b16 %v2372
        %v2889 = vunpack.c.l.b16 %v2373
        %v2890 = vunpack.c.l.b16 %v2374
        %v2891 = vunpack.c.l.b16 %v2375
        %v2892 = vunpack.c.l.b16 %v2376
        %v2893 = vunpack.c.l.b16 %v2377
        %v2894 = vunpack.c.l.b16 %v2378
        %v2895 = vunpack.c.l.b16 %v2379
        %v2896 = vunpack.c.l.b16 %v2380
        %v2897 = vunpack.c.l.b16 %v2381
        %v2898 = vunpack.c.l.b16 %v2382
        %v2899 = vunpack.c.l.b16 %v2383
        %v2900 = vunpack.c.l.b16 %v2384
        %v2901 = vunpack.c.l.b16 %v2385
        %v2902 = vunpack.c.l.b16 %v2386
        %v2903 = vunpack.c.l.b16 %v2387
        %v2904 = vunpack.c.l.b16 %v2388
        %v2905 = vunpack.c.l.b16 %v2389
        %v2906 = vunpack.c.l.b16 %v2390
        %v2907 = vunpack.c.l.b16 %v2391
        %v2908 = vunpack.c.l.b16 %v2392
        %v2909 = vunpack.c.l.b16 %v2393
        %v2910 = vunpack.c.l.b16 %v2394
        %v2911 = vunpack.c.l.b16 %v2395
        %v2912 = vunpack.c.l.b16 %v2396
        %v2913 = vunpack.c.l.b16 %v2397
        %v2914 = vunpack.c.l.b16 %v2398
        %v2915 = vunpack.c.l.b16 %v2399
        %v2916 = vunpack.c.l.b16 %v2400
        %v2917 = vunpack.c.l.b16 %v2401
        %v2918 = vunpack.c.l.b16 %v2402
        %v2919 = vunpack.c.l.b16 %v2403
        %v2920 = vunpack.c.l.b16 %v2404
        %v2921 = vunpack.c.l.b16 %v2405
        %v2922 = vunpack.c.l.b16 %v2406
        %v2923 = vunpack.c.l.b16 %v2407
        %v2924 = vunpack.c.l.b16 %v2408
        %v2925 = vunpack.c.l.b16 %v2409
        %v2926 = vunpack.c.l.b16 %v2410
        %v2927 = vunpack.c.l.b16 %v2411
        %v2928 = vunpack.c.l.b16 %v2412
        %v2929 = vunpack.c.l.b16 %v2413
        %v2930 = vunpack.c.l.b16 %v2414
        %v2931 = vunpack.c.l.b16 %v2415
        %v2932 = vunpack.c.l.b16 %v2416
        %v2933 = vunpack.c.l.b16 %v2417
        %v2934 = vunpack.c.l.b16 %v2418
        %v2935 = vunpack.c.l.b16 %v2419
        %v2936 = vunpack.c.l.b16 %v2420
        %v2937 = vunpack.c.l.b16 %v2421
        %v2938 = vunpack.c.l.b16 %v2422
        %v2939 = vunpack.c.l.b16 %v2423
        %v2940 = vunpack.c.l.b16 %v2424
        %v2941 = vunpack.c.l.b16 %v2425
        %v2942 = vunpack.c.l.b16 %v2426
        %v2943 = vunpack.c.l.b16 %v2427
        %v2944 = vunpack.c.l.b16 %v2428
        %v2945 = vunpack.c.l.b16 %v2429
        %v2946 = vunpack.c.l.b16 %v2430
        %v2947 = vunpack.c.l.b16 %v2431
        %v2948 = vunpack.c.l.b16 %v2432
        %v2949 = vunpack.c.l.b16 %v2433
        %v2950 = vunpack.c.l.b16 %v2434
        %v2951 = vunpack.c.l.b16 %v2435
        %v2952 = vunpack.c.l.b16 %v2436
        %v2953 = vunpack.c.l.b16 %v2437
        %v2954 = vunpack.c.l.b16 %v2438
        %v2955 = vunpack.c.l.b16 %v2439
        %v2956 = vunpack.c.l.b16 %v2440
        %v2957 = vunpack.c.l.b16 %v2441
        %v2958 = vunpack.c.l.b16 %v2442
        %v2959 = vunpack.c.l.b16 %v2443
        %v2960 = vunpack.c.l.b16 %v2444
        %v2961 = vunpack.c.l.b16 %v2445
        %v2962 = vunpack.c.l.b16 %v2446
        %v2963 = vunpack.c.l.b16 %v2447
        %v2964 = vunpack.c.l.b16 %v2448
        %v2965 = vunpack.c.l.b16 %v2449
        %v2966 = vunpack.c.l.b16 %v2450
        %v2967 = vunpack.c.l.b16 %v2451
        %v2968 = vunpack.c.l.b16 %v2452
        %v2969 = vunpack.c.l.b16 %v2453
        %v2970 = vunpack.c.l.b16 %v2454
        %v2971 = vunpack.c.l.b16 %v2455
        %v2972 = vunpack.c.l.b16 %v2456
        %v2973 = vunpack.c.l.b16 %v2457
        %v2974 = vunpack.c.l.b16 %v2458
        %v2975 = vunpack.c.l.b16 %v2459
        %v2976 = vunpack.c.l.b16 %v2460
        %v2977 = vunpack.c.l.b16 %v2461
        %v2978 = vunpack.c.l.b16 %v2462
        %v2979 = vunpack.c.l.b16 %v2463
        %v2980 = vunpack.c.l.b16 %v2464
        %v2981 = vunpack.c.l.b16 %v2465
        %v2982 = vpack.c.b16 %v2727, %v2726
        %v2983 = vpack.c.b16 %v2729, %v2728
        %v2984 = vpack.c.b16 %v2731, %v2730
        %v2985 = vpack.c.b16 %v2733, %v2732
        %v2986 = vpack.c.b16 %v2735, %v2734
        %v2987 = vpack.c.b16 %v2737, %v2736
        %v2988 = vpack.c.b16 %v2739, %v2738
        %v2989 = vpack.c.b16 %v2741, %v2740
        %v2990 = vpack.c.b16 %v2743, %v2742
        %v2991 = vpack.c.b16 %v2745, %v2744
        %v2992 = vpack.c.b16 %v2747, %v2746
        %v2993 = vpack.c.b16 %v2749, %v2748
        %v2994 = vpack.c.b16 %v2751, %v2750
        %v2995 = vpack.c.b16 %v2753, %v2752
        %v2996 = vpack.c.b16 %v2755, %v2754
        %v2997 = vpack.c.b16 %v2757, %v2756
        %v2998 = vpack.c.b16 %v2759, %v2758
        %v2999 = vpack.c.b16 %v2761, %v2760
        %v3000 = vpack.c.b16 %v2763, %v2762
        %v3001 = vpack.c.b16 %v2765, %v2764
        %v3002 = vpack.c.b16 %v2767, %v2766
        %v3003 = vpack.c.b16 %v2769, %v2768
        %v3004 = vpack.c.b16 %v2771, %v2770
        %v3005 = vpack.c.b16 %v2773, %v2772
        %v3006 = vpack.c.b16 %v2775, %v2774
        %v3007 = vpack.c.b16 %v2777, %v2776
        %v3008 = vpack.c.b16 %v2779, %v2778
        %v3009 = vpack.c.b16 %v2781, %v2780
        %v3010 = vpack.c.b16 %v2783, %v2782
        %v3011 = vpack.c.b16 %v2785, %v2784
        %v3012 = vpack.c.b16 %v2787, %v2786
        %v3013 = vpack.c.b16 %v2789, %v2788
        %v3014 = vpack.c.b16 %v2791, %v2790
        %v3015 = vpack.c.b16 %v2793, %v2792
        %v3016 = vpack.c.b16 %v2795, %v2794
        %v3017 = vpack.c.b16 %v2797, %v2796
        %v3018 = vpack.c.b16 %v2799, %v2798
        %v3019 = vpack.c.b16 %v2801, %v2800
        %v3020 = vpack.c.b16 %v2803, %v2802
        %v3021 = vpack.c.b16 %v2805, %v2804
        %v3022 = vpack.c.b16 %v2807, %v2806
        %v3023 = vpack.c.b16 %v2809, %v2808
        %v3024 = vpack.c.b16 %v2811, %v2810
        %v3025 = vpack.c.b16 %v2813, %v2812
        %v3026 = vpack.c.b16 %v2815, %v2814
        %v3027 = vpack.c.b16 %v2817, %v2816
        %v3028 = vpack.c.b16 %v2819, %v2818
        %v3029 = vpack.c.b16 %v2821, %v2820
        %v3030 = vpack.c.b16 %v2823, %v2822
        %v3031 = vpack.c.b16 %v2825, %v2824
        %v3032 = vpack.c.b16 %v2827, %v2826
        %v3033 = vpack.c.b16 %v2829, %v2828
        %v3034 = vpack.c.b16 %v2831, %v2830
        %v3035 = vpack.c.b16 %v2833, %v2832
        %v3036 = vpack.c.b16 %v2835, %v2834
        %v3037 = vpack.c.b16 %v2837, %v2836
        %v3038 = vpack.c.b16 %v2839, %v2838
        %v3039 = vpack.c.b16 %v2841, %v2840
        %v3040 = vpack.c.b16 %v2843, %v2842
        %v3041 = vpack.c.b16 %v2845, %v2844
        %v3042 = vpack.c.b16 %v2847, %v2846
        %v3043 = vpack.c.b16 %v2849, %v2848
        %v3044 = vpack.c.b16 %v2851, %v2850
        %v3045 = vpack.c.b16 %v2853, %v2852
        %v3046 = vpack.c.b16 %v2855, %v2854
        %v3047 = vpack.c.b16 %v2857, %v2856
        %v3048 = vpack.c.b16 %v2859, %v2858
        %v3049 = vpack.c.b16 %v2861, %v2860
        %v3050 = vpack.c.b16 %v2863, %v2862
        %v3051 = vpack.c.b16 %v2865, %v2864
        %v3052 = vpack.c.b16 %v2867, %v2866
        %v3053 = vpack.c.b16 %v2869, %v2868
        %v3054 = vpack.c.b16 %v2871, %v2870
        %v3055 = vpack.c.b16 %v2873, %v2872
        %v3056 = vpack.c.b16 %v2875, %v2874
        %v3057 = vpack.c.b16 %v2877, %v2876
        %v3058 = vpack.c.b16 %v2879, %v2878
        %v3059 = vpack.c.b16 %v2881, %v2880
        %v3060 = vpack.c.b16 %v2883, %v2882
        %v3061 = vpack.c.b16 %v2885, %v2884
        %v3062 = vpack.c.b16 %v2887, %v2886
        %v3063 = vpack.c.b16 %v2889, %v2888
        %v3064 = vpack.c.b16 %v2891, %v2890
        %v3065 = vpack.c.b16 %v2893, %v2892
        %v3066 = vpack.c.b16 %v2895, %v2894
        %v3067 = vpack.c.b16 %v2897, %v2896
        %v3068 = vpack.c.b16 %v2899, %v2898
        %v3069 = vpack.c.b16 %v2901, %v2900
        %v3070 = vpack.c.b16 %v2903, %v2902
        %v3071 = vpack.c.b16 %v2905, %v2904
        %v3072 = vpack.c.b16 %v2907, %v2906
        %v3073 = vpack.c.b16 %v2909, %v2908
        %v3074 = vpack.c.b16 %v2911, %v2910
        %v3075 = vpack.c.b16 %v2913, %v2912
        %v3076 = vpack.c.b16 %v2915, %v2914
        %v3077 = vpack.c.b16 %v2917, %v2916
        %v3078 = vpack.c.b16 %v2919, %v2918
        %v3079 = vpack.c.b16 %v2921, %v2920
        %v3080 = vpack.c.b16 %v2923, %v2922
        %v3081 = vpack.c.b16 %v2925, %v2924
        %v3082 = vpack.c.b16 %v2927, %v2926
        %v3083 = vpack.c.b16 %v2929, %v2928
        %v3084 = vpack.c.b16 %v2931, %v2930
        %v3085 = vpack.c.b16 %v2933, %v2932
        %v3086 = vpack.c.b16 %v2935, %v2934
        %v3087 = vpack.c.b16 %v2937, %v2936
        %v3088 = vpack.c.b16 %v2939, %v2938
        %v3089 = vpack.c.b16 %v2941, %v2940
        %v3090 = vpack.c.b16 %v2943, %v2942
        %v3091 = vpack.c.b16 %v2945, %v2944
        %v3092 = vpack.c.b16 %v2947, %v2946
        %v3093 = vpack.c.b16 %v2949, %v2948
        %v3094 = vpack.c.b16 %v2951, %v2950
        %v3095 = vpack.c.b16 %v2953, %v2952
        %v3096 = vpack.c.b16 %v2955, %v2954
        %v3097 = vpack.c.b16 %v2957, %v2956
        %v3098 = vpack.c.b16 %v2959, %v2958
        %v3099 = vpack.c.b16 %v2961, %v2960
        %v3100 = vpack.c.b16 %v2963, %v2962
        %v3101 = vpack.c.b16 %v2965, %v2964
        %v3102 = vpack.c.b16 %v2967, %v2966
        %v3103 = vpack.c.b16 %v2969, %v2968
        %v3104 = vpack.c.b16 %v2971, %v2970
        %v3105 = vpack.c.b16 %v2973, %v2972
        %v3106 = vpack.c.b16 %v2975, %v2974
        %v3107 = vpack.c.b16 %v2977, %v2976
        %v3108 = vpack.c.b16 %v2979, %v2978
        %v3109 = vpack.c.b16 %v2981, %v2980
        %3238 = vmatpush.bf16.msra.mxu0 %v2989
        %3239 = vmatpush.bf16.msra.mxu0 %v2988
        %3240 = vmatpush.bf16.msra.mxu0 %v2987
        %3241 = vmatpush.bf16.msra.mxu0 %v2986
        %3242 = vmatpush.bf16.msra.mxu0 %v2985
        %3243 = vmatpush.bf16.msra.mxu0 %v2984
        %3244 = vmatpush.bf16.msra.mxu0 %v2983
        %3245 = vmatpush.bf16.msra.mxu0 %v2982
        %3246 = vmatmul.bf16.gmra.mxu0 %v2194
        %v3247 = vpop.f32.mrf.mxu0
        %v3248 = vadd.f32 %v2468, %v3247
        %v3249 = vpop.f32.mrf.mxu0
        %3250 = vdwg.mxu0
        %3251 = vmatpush.bf16.msra.mxu0 %v2997
        %3252 = vmatpush.bf16.msra.mxu0 %v2996
        %3253 = vmatpush.bf16.msra.mxu0 %v2995
        %3254 = vmatpush.bf16.msra.mxu0 %v2994
        %3255 = vmatpush.bf16.msra.mxu0 %v2993
        %3256 = vmatpush.bf16.msra.mxu0 %v2992
        %3257 = vmatpush.bf16.msra.mxu0 %v2991
        %3258 = vmatpush.bf16.msra.mxu0 %v2990
        %3259 = vmatmul.bf16.gmra.mxu0 %v2195
        %v3260 = vpop.f32.mrf.mxu0
        %v3261 = vadd.f32 %v3248, %v3260
        %v3262 = vpop.f32.mrf.mxu0
        %3263 = vdwg.mxu0
        %3264 = vmatpush.bf16.msra.mxu0 %v3005
        %3265 = vmatpush.bf16.msra.mxu0 %v3004
        %3266 = vmatpush.bf16.msra.mxu0 %v3003
        %3267 = vmatpush.bf16.msra.mxu0 %v3002
        %3268 = vmatpush.bf16.msra.mxu0 %v3001
        %3269 = vmatpush.bf16.msra.mxu0 %v3000
        %3270 = vmatpush.bf16.msra.mxu0 %v2999
        %3271 = vmatpush.bf16.msra.mxu0 %v2998
        %3272 = vmatmul.bf16.gmra.mxu0 %v2196
        %v3273 = vpop.f32.mrf.mxu0
        %v3274 = vadd.f32 %v3261, %v3273
        %v3275 = vpop.f32.mrf.mxu0
        %3276 = vdwg.mxu0
        %3277 = vmatpush.bf16.msra.mxu0 %v3013
        %3278 = vmatpush.bf16.msra.mxu0 %v3012
        %3279 = vmatpush.bf16.msra.mxu0 %v3011
        %3280 = vmatpush.bf16.msra.mxu0 %v3010
        %3281 = vmatpush.bf16.msra.mxu0 %v3009
        %3282 = vmatpush.bf16.msra.mxu0 %v3008
        %3283 = vmatpush.bf16.msra.mxu0 %v3007
        %3284 = vmatpush.bf16.msra.mxu0 %v3006
        %3285 = vmatmul.bf16.gmra.mxu0 %v2197
        %v3286 = vpop.f32.mrf.mxu0
        %v3287 = vadd.f32 %v3274, %v3286
        %v3288 = vpop.f32.mrf.mxu0
        %3289 = vdwg.mxu0
        %3290 = vmatpush.bf16.msra.mxu0 %v3021
        %3291 = vmatpush.bf16.msra.mxu0 %v3020
        %3292 = vmatpush.bf16.msra.mxu0 %v3019
        %3293 = vmatpush.bf16.msra.mxu0 %v3018
        %3294 = vmatpush.bf16.msra.mxu0 %v3017
        %3295 = vmatpush.bf16.msra.mxu0 %v3016
        %3296 = vmatpush.bf16.msra.mxu0 %v3015
        %3297 = vmatpush.bf16.msra.mxu0 %v3014
        %3298 = vmatmul.bf16.gmra.mxu0 %v2198
        %v3299 = vpop.f32.mrf.mxu0
        %v3300 = vadd.f32 %v3287, %v3299
        %v3301 = vpop.f32.mrf.mxu0
        %3302 = vdwg.mxu0
        %3303 = vmatpush.bf16.msra.mxu0 %v3029
        %3304 = vmatpush.bf16.msra.mxu0 %v3028
        %3305 = vmatpush.bf16.msra.mxu0 %v3027
        %3306 = vmatpush.bf16.msra.mxu0 %v3026
        %3307 = vmatpush.bf16.msra.mxu0 %v3025
        %3308 = vmatpush.bf16.msra.mxu0 %v3024
        %3309 = vmatpush.bf16.msra.mxu0 %v3023
        %3310 = vmatpush.bf16.msra.mxu0 %v3022
        %3311 = vmatmul.bf16.gmra.mxu0 %v2199
        %v3312 = vpop.f32.mrf.mxu0
        %v3313 = vadd.f32 %v3300, %v3312
        %v3314 = vpop.f32.mrf.mxu0
        %3315 = vdwg.mxu0
        %3316 = vmatpush.bf16.msra.mxu0 %v3037
        %3317 = vmatpush.bf16.msra.mxu0 %v3036
        %3318 = vmatpush.bf16.msra.mxu0 %v3035
        %3319 = vmatpush.bf16.msra.mxu0 %v3034
        %3320 = vmatpush.bf16.msra.mxu0 %v3033
        %3321 = vmatpush.bf16.msra.mxu0 %v3032
        %3322 = vmatpush.bf16.msra.mxu0 %v3031
        %3323 = vmatpush.bf16.msra.mxu0 %v3030
        %3324 = vmatmul.bf16.gmra.mxu0 %v2200
        %v3325 = vpop.f32.mrf.mxu0
        %v3326 = vadd.f32 %v3313, %v3325
        %v3327 = vpop.f32.mrf.mxu0
        %3328 = vdwg.mxu0
        %3329 = vmatpush.bf16.msra.mxu0 %v3045
        %3330 = vmatpush.bf16.msra.mxu0 %v3044
        %3331 = vmatpush.bf16.msra.mxu0 %v3043
        %3332 = vmatpush.bf16.msra.mxu0 %v3042
        %3333 = vmatpush.bf16.msra.mxu0 %v3041
        %3334 = vmatpush.bf16.msra.mxu0 %v3040
        %3335 = vmatpush.bf16.msra.mxu0 %v3039
        %3336 = vmatpush.bf16.msra.mxu0 %v3038
        %3337 = vmatmul.bf16.gmra.mxu0 %v2201
        %v3338 = vpop.f32.mrf.mxu0
        %v3339 = vadd.f32 %v3326, %v3338
        %v3340 = vpop.f32.mrf.mxu0
        %3341 = vdwg.mxu0
        %3342 = vmatpush.bf16.msra.mxu0 %v3053
        %3343 = vmatpush.bf16.msra.mxu0 %v3052
        %3344 = vmatpush.bf16.msra.mxu0 %v3051
        %3345 = vmatpush.bf16.msra.mxu0 %v3050
        %3346 = vmatpush.bf16.msra.mxu0 %v3049
        %3347 = vmatpush.bf16.msra.mxu0 %v3048
        %3348 = vmatpush.bf16.msra.mxu0 %v3047
        %3349 = vmatpush.bf16.msra.mxu0 %v3046
        %3350 = vmatmul.bf16.gmra.mxu0 %v2202
        %v3351 = vpop.f32.mrf.mxu0
        %v3352 = vadd.f32 %v3339, %v3351
        %v3353 = vpop.f32.mrf.mxu0
        %3354 = vdwg.mxu0
        %3355 = vmatpush.bf16.msra.mxu0 %v3061
        %3356 = vmatpush.bf16.msra.mxu0 %v3060
        %3357 = vmatpush.bf16.msra.mxu0 %v3059
        %3358 = vmatpush.bf16.msra.mxu0 %v3058
        %3359 = vmatpush.bf16.msra.mxu0 %v3057
        %3360 = vmatpush.bf16.msra.mxu0 %v3056
        %3361 = vmatpush.bf16.msra.mxu0 %v3055
        %3362 = vmatpush.bf16.msra.mxu0 %v3054
        %3363 = vmatmul.bf16.gmra.mxu0 %v2203
        %v3364 = vpop.f32.mrf.mxu0
        %v3365 = vadd.f32 %v3352, %v3364
        %v3366 = vpop.f32.mrf.mxu0
        %3367 = vdwg.mxu0
        %3368 = vmatpush.bf16.msra.mxu0 %v3069
        %3369 = vmatpush.bf16.msra.mxu0 %v3068
        %3370 = vmatpush.bf16.msra.mxu0 %v3067
        %3371 = vmatpush.bf16.msra.mxu0 %v3066
        %3372 = vmatpush.bf16.msra.mxu0 %v3065
        %3373 = vmatpush.bf16.msra.mxu0 %v3064
        %3374 = vmatpush.bf16.msra.mxu0 %v3063
        %3375 = vmatpush.bf16.msra.mxu0 %v3062
        %3376 = vmatmul.bf16.gmra.mxu0 %v2204
        %v3377 = vpop.f32.mrf.mxu0
        %v3378 = vadd.f32 %v3365, %v3377
        %v3379 = vpop.f32.mrf.mxu0
        %3380 = vdwg.mxu0
        %3381 = vmatpush.bf16.msra.mxu0 %v3077
        %3382 = vmatpush.bf16.msra.mxu0 %v3076
        %3383 = vmatpush.bf16.msra.mxu0 %v3075
        %3384 = vmatpush.bf16.msra.mxu0 %v3074
        %3385 = vmatpush.bf16.msra.mxu0 %v3073
        %3386 = vmatpush.bf16.msra.mxu0 %v3072
        %3387 = vmatpush.bf16.msra.mxu0 %v3071
        %3388 = vmatpush.bf16.msra.mxu0 %v3070
        %3389 = vmatmul.bf16.gmra.mxu0 %v2205
        %v3390 = vpop.f32.mrf.mxu0
        %v3391 = vadd.f32 %v3378, %v3390
        %v3392 = vpop.f32.mrf.mxu0
        %3393 = vdwg.mxu0
        %3394 = vmatpush.bf16.msra.mxu0 %v3085
        %3395 = vmatpush.bf16.msra.mxu0 %v3084
        %3396 = vmatpush.bf16.msra.mxu0 %v3083
        %3397 = vmatpush.bf16.msra.mxu0 %v3082
        %3398 = vmatpush.bf16.msra.mxu0 %v3081
        %3399 = vmatpush.bf16.msra.mxu0 %v3080
        %3400 = vmatpush.bf16.msra.mxu0 %v3079
        %3401 = vmatpush.bf16.msra.mxu0 %v3078
        %3402 = vmatmul.bf16.gmra.mxu0 %v2206
        %v3403 = vpop.f32.mrf.mxu0
        %v3404 = vadd.f32 %v3391, %v3403
        %v3405 = vpop.f32.mrf.mxu0
        %3406 = vdwg.mxu0
        %3407 = vmatpush.bf16.msra.mxu0 %v3093
        %3408 = vmatpush.bf16.msra.mxu0 %v3092
        %3409 = vmatpush.bf16.msra.mxu0 %v3091
        %3410 = vmatpush.bf16.msra.mxu0 %v3090
        %3411 = vmatpush.bf16.msra.mxu0 %v3089
        %3412 = vmatpush.bf16.msra.mxu0 %v3088
        %3413 = vmatpush.bf16.msra.mxu0 %v3087
        %3414 = vmatpush.bf16.msra.mxu0 %v3086
        %3415 = vmatmul.bf16.gmra.mxu0 %v2207
        %v3416 = vpop.f32.mrf.mxu0
        %v3417 = vadd.f32 %v3404, %v3416
        %v3418 = vpop.f32.mrf.mxu0
        %3419 = vdwg.mxu0
        %3420 = vmatpush.bf16.msra.mxu0 %v3101
        %3421 = vmatpush.bf16.msra.mxu0 %v3100
        %3422 = vmatpush.bf16.msra.mxu0 %v3099
        %3423 = vmatpush.bf16.msra.mxu0 %v3098
        %3424 = vmatpush.bf16.msra.mxu0 %v3097
        %3425 = vmatpush.bf16.msra.mxu0 %v3096
        %3426 = vmatpush.bf16.msra.mxu0 %v3095
        %3427 = vmatpush.bf16.msra.mxu0 %v3094
        %3428 = vmatmul.bf16.gmra.mxu0 %v2208
        %v3429 = vpop.f32.mrf.mxu0
        %v3430 = vadd.f32 %v3417, %v3429
        %v3431 = vpop.f32.mrf.mxu0
        %3432 = vdwg.mxu0
        %3433 = vmatpush.bf16.msra.mxu0 %v3109
        %3434 = vmatpush.bf16.msra.mxu0 %v3108
        %3435 = vmatpush.bf16.msra.mxu0 %v3107
        %3436 = vmatpush.bf16.msra.mxu0 %v3106
        %3437 = vmatpush.bf16.msra.mxu0 %v3105
        %3438 = vmatpush.bf16.msra.mxu0 %v3104
        %3439 = vmatpush.bf16.msra.mxu0 %v3103
        %3440 = vmatpush.bf16.msra.mxu0 %v3102
        %3441 = vmatmul.bf16.gmra.mxu0 %v2209
        %v3442 = vpop.f32.mrf.mxu0
        %v3443 = vadd.f32 %v3430, %v3442
        %v3444 = vpop.f32.mrf.mxu0
        %3445 = vdwg.mxu0
        %v3446 = vadd.f32 %v1164, %v3443
        %v3447 = vld [vmem:[%s918] sm:$0x1]
        %v3448 = vld [vmem:[%s921] sm:$0x1]
        %3449 = vadd.xlane.f32.xlu0 %v3446
        %v3450 = vpop.xlane.xlu0 %3449
        %v3451 = vmul.f32 %v3450, 0.03125
        %v3452 = vsub.f32 %v3446, %v3451
        %v3453 = vsel %vm1139, %v3452, 0.0
        %v3454 = vmul.f32 %v3453, %v3453
        %3455 = vadd.xlane.f32.xlu0 %v3454
        %v3456 = vpop.xlane.xlu0 %3455
        %v3457 = vmul.f32 %v3456, 0.03125
        %v3458 = vadd.f32 %v3457, 1e-05
        %v3459 = vrsqrt.pop %v3458
        %v3460 = vmul.f32 %v3459, %v3458
        %v3461 = vmul.f32 %v3460, %v3459
        %v3462 = vmul.f32 0.5, %v3461
        %v3463 = vsub.f32 1.5, %v3462
        %v3464 = vmul.f32 %v3459, %v3463
        %vm3465 = vweird.f32 %v3458
        %vm3466 = vweird.f32 %v3459
        %vm3467 = vmor %vm3465, %vm3466
        %v3468 = vsel %vm3467, %v3459, %v3464
        %v3469 = vmul.f32 %v3453, %v3468
        %v3471 = vperm.slane %v3447, 0
        %v3473 = vmul.f32 %v3469, %v3471
        %v3475 = vperm.slane %v3448, 0
        %v3477 = vadd.f32 %v3473, %v3475
        %3478 = vst [vmem:[#allocation2] sm:$0xff] %v3477
        %p3479 = scmp.eq.s32.totalorder %s45, 1
        // Predicated region
        $region133: #{transformer_classification_forward.1} parent=87 // pred_check
          %p3480 = pneg %p3479
        $region134: #{transformer_classification_forward.1} parent=87 // pred_check_branch
          %3482 = sbr.rel (%p3480) target = $region136
        $region135: #{transformer_classification_forward.1} parent=87 // pred_region
          %v3483 = vpack.c.bf16 %v3477, %v3477
          %v3484 = vld [vmem:[#allocation17] sm:$0xf]
          %v3485 = vld [vmem:[#allocation17 + $0x4] sm:$0xf]
          %v3486 = vld [vmem:[#allocation17 + $0x8] sm:$0xf]
          %v3487 = vld [vmem:[#allocation17 + $0xc] sm:$0xf]
          %v3488 = vld [vmem:[#allocation17 + $0x10] sm:$0xf]
          %v3489 = vld [vmem:[#allocation17 + $0x14] sm:$0xf]
          %v3490 = vld [vmem:[#allocation17 + $0x18] sm:$0xf]
          %v3491 = vld [vmem:[#allocation17 + $0x1c] sm:$0xf]
          %v3492 = vld [vmem:[#allocation17 + $0x20] sm:$0xf]
          %v3493 = vld [vmem:[#allocation17 + $0x24] sm:$0xf]
          %v3494 = vld [vmem:[#allocation17 + $0x28] sm:$0xf]
          %v3495 = vld [vmem:[#allocation17 + $0x2c] sm:$0xf]
          %v3496 = vld [vmem:[#allocation17 + $0x30] sm:$0xf]
          %v3497 = vld [vmem:[#allocation17 + $0x34] sm:$0xf]
          %v3498 = vld [vmem:[#allocation17 + $0x38] sm:$0xf]
          %v3499 = vld [vmem:[#allocation17 + $0x3c] sm:$0xf]
          %v3500 = vld [vmem:[%s16] sm:$0x1]
          %v3502 = vperm.slane %v3500, 0
          %v3520 = vunpack.c.l.b16 %v3484
          %v3521 = vunpack.c.l.b16 %v3485
          %v3522 = vunpack.c.l.b16 %v3486
          %v3523 = vunpack.c.l.b16 %v3487
          %v3524 = vunpack.c.l.b16 %v3488
          %v3525 = vunpack.c.l.b16 %v3489
          %v3526 = vunpack.c.l.b16 %v3490
          %v3527 = vunpack.c.l.b16 %v3491
          %v3528 = vunpack.c.l.b16 %v3492
          %v3529 = vunpack.c.l.b16 %v3493
          %v3530 = vunpack.c.l.b16 %v3494
          %v3531 = vunpack.c.l.b16 %v3495
          %v3532 = vunpack.c.l.b16 %v3496
          %v3533 = vunpack.c.l.b16 %v3497
          %v3534 = vunpack.c.l.b16 %v3498
          %v3535 = vunpack.c.l.b16 %v3499
          %v3536 = vpack.c.b16 %v3521, %v3520
          %v3537 = vpack.c.b16 %v3523, %v3522
          %v3538 = vpack.c.b16 %v3525, %v3524
          %v3539 = vpack.c.b16 %v3527, %v3526
          %v3540 = vpack.c.b16 %v3529, %v3528
          %v3541 = vpack.c.b16 %v3531, %v3530
          %v3542 = vpack.c.b16 %v3533, %v3532
          %v3543 = vpack.c.b16 %v3535, %v3534
          %3552 = vmatpush.bf16.msra.mxu0 %v3543
          %3553 = vmatpush.bf16.msra.mxu0 %v3542
          %3554 = vmatpush.bf16.msra.mxu0 %v3541
          %3555 = vmatpush.bf16.msra.mxu0 %v3540
          %3556 = vmatpush.bf16.msra.mxu0 %v3539
          %3557 = vmatpush.bf16.msra.mxu0 %v3538
          %3558 = vmatpush.bf16.msra.mxu0 %v3537
          %3559 = vmatpush.bf16.msra.mxu0 %v3536
          %3560 = vmatmul.bf16.gmra.mxu0 %v3483
          %v3561 = vpop.f32.mrf.mxu0
          %v3562 = vadd.f32 %v3502, %v3561
          %v3563 = vpop.f32.mrf.mxu0
          %3564 = vdwg.mxu0
          %3565 = vst [vmem:[%s925] sm:$0xff] %v3562
        $region136: #{transformer_classification_forward.1} parent=87 // pred_fallthru
          _
        %p3566 = scmp.lt.s32.totalorder %s44, 0
        %s3567 = scalar_select %p3566, %s44, 0
        %s3568 = smul.addr %s3567, 8
        %s3569 = scalar_lea.vmem %s17, %s3568
        // Predicated region
        $region137: #{transformer_classification_forward.1} parent=87 // pred_check
          %p3570 = pneg %p492
        $region138: #{transformer_classification_forward.1} parent=87 // pred_check_branch
          %3572 = sbr.rel (%p3570) target = $region140
        $region139: #{transformer_classification_forward.1} parent=87 // pred_region
          _
        $region140: #{transformer_classification_forward.1} parent=87 // pred_fallthru
          _
        // Predicated region
        $region141: #{transformer_classification_forward.1} parent=87 // pred_check
          %p3573 = pneg %p492
        $region142: #{transformer_classification_forward.1} parent=87 // pred_check_branch
          %3575 = sbr.rel (%p3573) target = $region144
        $region143: #{transformer_classification_forward.1} parent=87 // pred_region
          %p3576 = scmp.lt.s32.totalorder %s44, 0
          %s3577 = scalar_select %p3576, %s44, 0
          %s3578 = smul.addr %s3577, 8
          %s3579 = scalar_lea.vmem %s17, %s3578
        $region144: #{transformer_classification_forward.1} parent=87 // pred_fallthru
          _
      $region88: #{transformer_classification_forward.1} parent=5 // pred_fallthru
        _
      %p3580 = scmp.le.s32.totalorder 2, %s35
      // Predicated region
      $region145: #{transformer_classification_forward.1} parent=5 // pred_check
        %p3581 = pneg %p3580
      $region146: #{transformer_classification_forward.1} parent=5 // pred_check_branch
        %3583 = sbr.rel (%p3581) target = $region148
      $region147: #{transformer_classification_forward.1} parent=5 // pred_region
        %s3584 = ssub.s32 %s35, 2
      $region148: #{transformer_classification_forward.1} parent=5 // pred_fallthru
        _
    $region6: #{transformer_classification_forward.1} parent=1 // loop_footer
      %s39 = sadd.s32 1, %s35
    $region7: #{transformer_classification_forward.1} parent=1 // loop_footer_branch
      %34 = sbr.rel target = $region3
    $region8: #{transformer_classification_forward.1} parent=1 // loop_exit
      _
    %3585 = vsyncpa [#allocation4], 1
    %s3586 = scalar_lea.sflag [#allocation4], 1
    %3587 = vsyncpa %s3586, 1
    %3588 = vsyncpa [#allocation6], 1
    %3589 = vsyncpa [#allocation9], 1
    %s3590 = scalar_lea.sflag [#allocation9], 1
    %3591 = vsyncpa %s3590, 1
    %3592 = vsyncpa [#allocation12], 1
    %s3593 = scalar_lea.sflag [#allocation12], 1
    %3594 = vsyncpa %s3593, 1
    %3595 = vsyncpa [#allocation15], 1
    %s3596 = scalar_lea.sflag [#allocation15], 1
    %3597 = vsyncpa %s3596, 1
    %3598 = vsyncpa [#allocation18], 1

</llo_original>
